<compile_context>
chip_gen: v6e
topology: v6e:2x2x1
jax: 0.10.0
libtpu: 0.0.40
codegen_flags: <defaults>
</compile_context>

<pallas_src>
import functools

import numpy as np
import jax
import jax.numpy as jnp
from jax import lax
from jax.experimental import pallas as pl
from jax.experimental.pallas import tpu as pltpu


# ----------------------------------------------------------------------------
# Fixed Net geometry (Conv2d(3,12,5) -> pool -> Conv2d(12,16,5) -> pool -> FCs;
# 32x32 input so the flatten is 16*5*5 = 400).
# ----------------------------------------------------------------------------
H1, W1, C1 = 32, 32, 3
KH = 5
C1_OUT, C2_OUT = 12, 16
OH1, OW1 = H1 - KH + 1, W1 - KH + 1        # 28, 28
PH1, PW1 = OH1 // 2, OW1 // 2              # 14, 14
OH2, OW2 = PH1 - KH + 1, PW1 - KH + 1      # 10, 10
PH2, PW2 = OH2 // 2, OW2 // 2              # 5, 5
F1_OUT, F2_OUT, F3_OUT = 120, 84, 10
FLAT_BLK = 2 * 128                         # lane-aligned block per pooled row
F1_IN_WIDE = PH2 * FLAT_BLK                # 1280: fc1's padded K dimension

_VMEM_SPEC = pl.BlockSpec(memory_space=pltpu.MemorySpace.VMEM)


# ----------------------------------------------------------------------------
# The single fused kernel (no grid; whole working set ~2.6 MiB in VMEM)
# ----------------------------------------------------------------------------
def _net_kernel(x_ref, slab_a_ref, slab_b_ref, out_ref, p2f_ref, *,
                n_batch, offs_a, offs_b):
    dot = functools.partial(jnp.dot, preferred_element_type=jnp.float32)

    def carve(ref, offs, name):                 # static slices: cheap VMEM view
        o, r, c = offs[name]
        return ref[o:o + r, 0:c]

    # fc1's wide weight has zero rows under the unwritten lane gaps of p2f, but
    # 0 * (uninitialized VMEM) can still be NaN -> zero the scratch once.
    p2f_ref[...] = jnp.zeros_like(p2f_ref)

    # ---- hoisted loop invariants: loaded / broadcast exactly once (review 1) --
    b1b = jnp.broadcast_to(carve(slab_a_ref, offs_a, "b1"), (OH1, OW1 * C1_OUT))
    b2b = jnp.broadcast_to(carve(slab_b_ref, offs_b, "b2"), (OH2, OW2 * C2_OUT))
    e1 = carve(slab_a_ref, offs_a, "e1")        # (14, 27)  even-row compaction
    s1 = carve(slab_a_ref, offs_a, "s1")        # (324, 168) even-width compaction
    e2 = carve(slab_b_ref, offs_b, "e2")        # (5, 9)   even-row compaction

    t1_off = offs_a["t1"][0]
    t2_off = offs_b["t2"][0]
    wa, na = W1 * C1, OW1 * C1_OUT              # 96, 336
    wb, nb = PW1 * C1_OUT, OW2 * C2_OUT         # 168, 160

    # Per-image pipeline.  All intermediates are SSA values and each image only
    # writes its own row of p2f, so there is no cross-image scratch hazard and
    # the scheduler can interleave the (unrolled) images (review 3).
    for n in range(n_batch):
        r0 = n * H1

        # ---- conv1 + bias + ReLU: banded-Toeplitz matmul per kernel row ------
        y1 = dot(x_ref[r0:r0 + OH1, :], slab_a_ref[t1_off:t1_off + wa, 0:na])
        for i in range(1, KH):
            y1 = y1 + dot(x_ref[r0 + i:r0 + i + OH1, :],
                          slab_a_ref[t1_off + i * wa:t1_off + (i + 1) * wa, 0:na])
        y1 = jnp.maximum(y1 + b1b, 0.0)                              # (28, 336)

        # ---- maxpool1 2x2: shifted-slice max (VPU) + ONE compaction matmul
        #      per direction (review 4) ------------------------------------------
        y1r = jnp.maximum(y1[:OH1 - 1, :], y1[1:, :])                # (27, 336)
        r1 = dot(e1, y1r)                                            # (14, 336)
        r1w = jnp.maximum(r1[:, :-C1_OUT], r1[:, C1_OUT:])           # (14, 324)
        p1 = dot(r1w, s1)                                            # (14, 168)

        # ---- conv2 + bias + ReLU ---------------------------------------------
        y2 = dot(p1[0:OH2, :], slab_b_ref[t2_off:t2_off + wb, 0:nb])
        for i in range(1, KH):
            y2 = y2 + dot(p1[i:i + OH2, :],
                          slab_b_ref[t2_off + i * wb:t2_off + (i + 1) * wb, 0:nb])
        y2 = jnp.maximum(y2 + b2b, 0.0)                              # (10, 160)

        # ---- maxpool2: row compaction matmul only; even-width selection and
        #      the PyTorch (C,H,W) flatten are folded into fc1's wide weight ----
        y2r = jnp.maximum(y2[:OH2 - 1, :], y2[1:, :])                # (9, 160)
        r2 = dot(e2, y2r)                                            # (5, 160)
        r2w = jnp.maximum(r2[:, :-C2_OUT], r2[:, C2_OUT:])           # (5, 144)

        # Scatter the 5 pooled rows into image n's flat row (256-aligned lanes).
        for r in range(PH2):
            p2f_ref[n:n + 1, r * FLAT_BLK:r * FLAT_BLK + (OW2 - 1) * C2_OUT] = \
                r2w[r:r + 1, :]

    # ---- batched FC head (review 2): 3 matmuls with M = n_batch, one store ----
    h = dot(p2f_ref[...], carve(slab_b_ref, offs_b, "wf1"))          # (N, 120)
    h = jnp.maximum(h + carve(slab_b_ref, offs_b, "bf1"), 0.0)
    h = dot(h, carve(slab_b_ref, offs_b, "wf2"))                     # (N, 84)
    h = jnp.maximum(h + carve(slab_b_ref, offs_b, "bf2"), 0.0)
    out_ref[...] = (dot(h, carve(slab_b_ref, offs_b, "wf3"))
                    + carve(slab_b_ref, offs_b, "bf3"))              # (N, 10)


# ----------------------------------------------------------------------------
# Host-side one-off weight re-packing (outside jit)
# ----------------------------------------------------------------------------
def _banded_conv_weights(w_oihw, in_w):
    """(Cout,Cin,KH,KW) -> (KH*in_w*Cin, OW*Cout) banded matrices stacked by i.

    Row layout (w*Cin + ci), column layout (ow*Cout + co), so that
    A[i:i+OH, :] @ T_i accumulated over i is the VALID cross-correlation."""
    w = np.asarray(w_oihw, np.float32)
    cout, cin, kh, kw = w.shape
    ow = in_w - kw + 1
    t = np.zeros((kh, in_w * cin, ow * cout), np.float32)
    for i in range(kh):
        for j in range(kw):
            blk = w[:, :, i, j].T                          # (cin, cout)
            for q in range(ow):
                t[i, (q + j) * cin:(q + j) * cin + cin,
                  q * cout:q * cout + cout] = blk
    return t.reshape(kh * in_w * cin, ow * cout)


def _even_row_selector(out_rows, in_rows):
    m = np.zeros((out_rows, in_rows), np.float32)
    m[np.arange(out_rows), 2 * np.arange(out_rows)] = 1.0
    return m


def _even_width_selector(ow, c):
    """((ow-1)*c, (ow//2)*c) selector: width block 2q -> output block q."""
    owp = ow // 2
    m = np.zeros(((ow - 1) * c, owp * c), np.float32)
    for q in range(owp):
        for ci in range(c):
            m[2 * q * c + ci, q * c + ci] = 1.0
    return m


def _fc1_wide_weight(wf1):
    """Fold PyTorch's (C,H,W) flatten + the even-width pool-2 selection into
    fc1: rows address the (N, 1280) pooled-flat layout (row h at lanes
    [h*256, h*256+144), valid entries at 2*w*16 + c)."""
    wf1 = np.asarray(wf1, np.float32)                      # (120, 400)
    out = np.zeros((PH2 * FLAT_BLK, F1_OUT), np.float32)
    for hh in range(PH2):
        for ww in range(PW2):
            for cc in range(C2_OUT):
                out[hh * FLAT_BLK + 2 * ww * C2_OUT + cc, :] = \
                    wf1[:, cc * PH2 * PW2 + hh * PW2 + ww]
    return out


def _pack_slab(entries, width):
    """Concatenate 2-D arrays into one lane-padded slab (rows padded to x8)."""
    offs, chunks, off = {}, [], 0
    for name, arr in entries:
        arr = np.asarray(arr, np.float32)
        if arr.ndim == 1:
            arr = arr[None, :]
        rows, cols = arr.shape
        assert cols <= width, (name, cols, width)
        rpad = ((rows + 7) // 8) * 8
        buf = np.zeros((rpad, width), np.float32)
        buf[:rows, :cols] = arr
        chunks.append(buf)
        offs[name] = (off, rows, cols)
        off += rpad
    return jnp.asarray(np.concatenate(chunks, axis=0)), offs


def pack_params(p):
    """Fold PyTorch-layout params into two VMEM slabs + static offsets (once)."""
    b1t = np.tile(np.asarray(p["b1"], np.float32), OW1)[None, :]     # (1, 336)
    b2t = np.tile(np.asarray(p["b2"], np.float32), OW2)[None, :]     # (1, 160)
    slab_a, offs_a = _pack_slab(
        [("t1", _banded_conv_weights(p["w1"], W1)),                  # (480, 336)
         ("b1", b1t),
         ("e1", _even_row_selector(PH1, OH1 - 1)),                   # (14, 27)
         ("s1", _even_width_selector(OW1, C1_OUT))],                 # (324, 168)
        width=OW1 * C1_OUT)
    slab_b, offs_b = _pack_slab(
        [("t2", _banded_conv_weights(p["w2"], PW1)),                 # (840, 160)
         ("b2", b2t),
         ("e2", _even_row_selector(PH2, OH2 - 1)),                   # (5, 9)
         ("wf1", _fc1_wide_weight(p["wf1"])),                        # (1280, 120)
         ("bf1", np.asarray(p["bf1"], np.float32)),
         ("wf2", np.asarray(p["wf2"], np.float32).T),                # (120, 84)
         ("bf2", np.asarray(p["bf2"], np.float32)),
         ("wf3", np.asarray(p["wf3"], np.float32).T),                # (84, 10)
         ("bf3", np.asarray(p["bf3"], np.float32))],
        width=OW2 * C2_OUT)
    return (slab_a, slab_b), (offs_a, offs_b)


# ----------------------------------------------------------------------------
# Forward pass (one fused pallas_call)
# ----------------------------------------------------------------------------
def make_forward(offs, n_batch):
    offs_a, offs_b = offs
    kernel = functools.partial(_net_kernel, n_batch=n_batch,
                               offs_a=offs_a, offs_b=offs_b)

    @jax.jit
    def fwd(x_nchw, slab_a, slab_b):
        # NCHW -> NHWC -> image-row layout (N*H, W*C). Tiny, once per call.
        x2d = jnp.transpose(x_nchw, (0, 2, 3, 1)).reshape(n_batch * H1, W1 * C1)
        return pl.pallas_call(
            kernel,
            out_shape=jax.ShapeDtypeStruct((n_batch, F3_OUT), jnp.float32),
            in_specs=[_VMEM_SPEC, _VMEM_SPEC, _VMEM_SPEC],
            out_specs=_VMEM_SPEC,
            scratch_shapes=[pltpu.VMEM((n_batch, F1_IN_WIDE), jnp.float32)],
        )(x2d, slab_a, slab_b)

    return fwd


# ----------------------------------------------------------------------------
# Pure-JAX reference (same math, no Pallas) used as a correctness check.
# ----------------------------------------------------------------------------
def reference_forward(x_nchw, p):
    dn = ("NCHW", "OIHW", "NCHW")
    y = lax.conv_general_dilated(x_nchw, p["w1"], (1, 1), "VALID",
                                 dimension_numbers=dn)
    y = jax.nn.relu(y + p["b1"][None, :, None, None])
    y = lax.reduce_window(y, -jnp.inf, lax.max, (1, 1, 2, 2), (1, 1, 2, 2), "VALID")
    y = lax.conv_general_dilated(y, p["w2"], (1, 1), "VALID",
                                 dimension_numbers=dn)
    y = jax.nn.relu(y + p["b2"][None, :, None, None])
    y = lax.reduce_window(y, -jnp.inf, lax.max, (1, 1, 2, 2), (1, 1, 2, 2), "VALID")
    y = y.reshape(y.shape[0], -1)
    y = jax.nn.relu(y @ p["wf1"].T + p["bf1"])
    y = jax.nn.relu(y @ p["wf2"].T + p["bf2"])
    y = y @ p["wf3"].T + p["bf3"]
    return y


def init_params(key):
    ks = jax.random.split(key, 10)
    s = 0.05
    return {
        # PyTorch parameter layouts: Conv2d (Cout, Cin, KH, KW); Linear (out, in).
        "w1": s * jax.random.normal(ks[0], (C1_OUT, C1, KH, KH), jnp.float32),
        "b1": s * jax.random.normal(ks[1], (C1_OUT,), jnp.float32),
        "w2": s * jax.random.normal(ks[2], (C2_OUT, C1_OUT, KH, KH), jnp.float32),
        "b2": s * jax.random.normal(ks[3], (C2_OUT,), jnp.float32),
        "wf1": s * jax.random.normal(ks[4], (F1_OUT, C2_OUT * PH2 * PW2), jnp.float32),
        "bf1": s * jax.random.normal(ks[5], (F1_OUT,), jnp.float32),
        "wf2": s * jax.random.normal(ks[6], (F2_OUT, F1_OUT), jnp.float32),
        "bf2": s * jax.random.normal(ks[7], (F2_OUT,), jnp.float32),
        "wf3": s * jax.random.normal(ks[8], (F3_OUT, F2_OUT), jnp.float32),
        "bf3": s * jax.random.normal(ks[9], (F3_OUT,), jnp.float32),
    }


if __name__ == "__main__":
    key = jax.random.PRNGKey(0)
    pkey, xkey = jax.random.split(key)
    params = init_params(pkey)
    slabs, offs = pack_params(params)        # one-off host-side re-pack
    # Input (NCHW, PyTorch convention). Spatial must be 32 so the flatten
    # matches fc1's 16*5*5 input size.
    x = jax.random.normal(xkey, (2, 3, 32, 32), jnp.float32)

    fwd = make_forward(offs, n_batch=x.shape[0])
    out = jax.block_until_ready(fwd(x, *slabs))
    assert out.shape == (2, F3_OUT), out.shape

    ref = jax.block_until_ready(jax.jit(reference_forward)(x, params))
    assert jnp.allclose(out, ref, atol=1e-2, rtol=1e-2), (
        f"max abs diff = {jnp.max(jnp.abs(out - ref))}")

    print("KERNEL_OK")
</pallas_src>

<mosaic_0001>
module attributes {stable_mosaic.version = 11 : i64} {
  func.func @_net_kernel(%arg0: memref<64x96xf32, #tpu.memory_space<vmem>>, %arg1: memref<832x336xf32, #tpu.memory_space<vmem>>, %arg2: memref<2368x160xf32, #tpu.memory_space<vmem>>, %arg3: memref<2x10xf32, #tpu.memory_space<vmem>>, %arg4: memref<2x1280xf32, #tpu.memory_space<vmem>>) attributes {dimension_semantics = [], scalar_prefetch = 0 : i64, scratch_operands = 1 : i64, tpu.core_type = #tpu.core_type<tc>} {
    %cst = arith.constant 0.000000e+00 : f32
    %0 = vector.broadcast %cst : f32 to vector<2x1280xf32>
    %c0 = arith.constant 0 : index
    %c0_0 = arith.constant 0 : index
    %1 = vector.load %arg4[%c0, %c0_0] : memref<2x1280xf32, #tpu.memory_space<vmem>>, vector<2x1280xf32>
    tpu.vector_store %arg4[%c0, %c0_0], %0 {strides = array<i32>} : memref<2x1280xf32, #tpu.memory_space<vmem>>, vector<2x1280xf32>,
    %c480 = arith.constant 480 : index
    %c0_1 = arith.constant 0 : index
    %2 = vector.load %arg1[%c480, %c0_1] : memref<832x336xf32, #tpu.memory_space<vmem>>, vector<1x336xf32>
    %3 = vector.shape_cast %2 : vector<1x336xf32> to vector<1x336xf32>
    %4 = vector.broadcast %3 : vector<1x336xf32> to vector<28x336xf32>
    %c840 = arith.constant 840 : index
    %c0_2 = arith.constant 0 : index
    %5 = vector.load %arg2[%c840, %c0_2] : memref<2368x160xf32, #tpu.memory_space<vmem>>, vector<1x160xf32>
    %6 = vector.shape_cast %5 : vector<1x160xf32> to vector<1x160xf32>
    %7 = vector.broadcast %6 : vector<1x160xf32> to vector<10x160xf32>
    %c488 = arith.constant 488 : index
    %c0_3 = arith.constant 0 : index
    %8 = vector.load %arg1[%c488, %c0_3] : memref<832x336xf32, #tpu.memory_space<vmem>>, vector<14x27xf32>
    %c504 = arith.constant 504 : index
    %c0_4 = arith.constant 0 : index
    %9 = vector.load %arg1[%c504, %c0_4] : memref<832x336xf32, #tpu.memory_space<vmem>>, vector<324x168xf32>
    %c848 = arith.constant 848 : index
    %c0_5 = arith.constant 0 : index
    %10 = vector.load %arg2[%c848, %c0_5] : memref<2368x160xf32, #tpu.memory_space<vmem>>, vector<5x9xf32>
    %c0_6 = arith.constant 0 : index
    %c0_7 = arith.constant 0 : index
    %11 = vector.load %arg0[%c0_6, %c0_7] : memref<64x96xf32, #tpu.memory_space<vmem>>, vector<28x96xf32>
    %c0_8 = arith.constant 0 : index
    %c0_9 = arith.constant 0 : index
    %12 = vector.load %arg1[%c0_8, %c0_9] : memref<832x336xf32, #tpu.memory_space<vmem>>, vector<96x336xf32>
    %cst_10 = arith.constant dense<0.000000e+00> : vector<28x336xf32>
    %13 = tpu.matmul %11, %12, %cst_10 {dimension_numbers = #tpu.dot_dimension_numbers<[1], [0], [0], [1], [0, 0, 1, 1], [], []>} : vector<28x96xf32>, vector<96x336xf32>, vector<28x336xf32> -> vector<28x336xf32>
    %c1 = arith.constant 1 : index
    %c0_11 = arith.constant 0 : index
    %14 = vector.load %arg0[%c1, %c0_11] : memref<64x96xf32, #tpu.memory_space<vmem>>, vector<28x96xf32>
    %c96 = arith.constant 96 : index
    %c0_12 = arith.constant 0 : index
    %15 = vector.load %arg1[%c96, %c0_12] : memref<832x336xf32, #tpu.memory_space<vmem>>, vector<96x336xf32>
    %cst_13 = arith.constant dense<0.000000e+00> : vector<28x336xf32>
    %16 = tpu.matmul %14, %15, %cst_13 {dimension_numbers = #tpu.dot_dimension_numbers<[1], [0], [0], [1], [0, 0, 1, 1], [], []>} : vector<28x96xf32>, vector<96x336xf32>, vector<28x336xf32> -> vector<28x336xf32>
    %17 = arith.addf %13, %16 : vector<28x336xf32>
    %c2 = arith.constant 2 : index
    %c0_14 = arith.constant 0 : index
    %18 = vector.load %arg0[%c2, %c0_14] : memref<64x96xf32, #tpu.memory_space<vmem>>, vector<28x96xf32>
    %c192 = arith.constant 192 : index
    %c0_15 = arith.constant 0 : index
    %19 = vector.load %arg1[%c192, %c0_15] : memref<832x336xf32, #tpu.memory_space<vmem>>, vector<96x336xf32>
    %cst_16 = arith.constant dense<0.000000e+00> : vector<28x336xf32>
    %20 = tpu.matmul %18, %19, %cst_16 {dimension_numbers = #tpu.dot_dimension_numbers<[1], [0], [0], [1], [0, 0, 1, 1], [], []>} : vector<28x96xf32>, vector<96x336xf32>, vector<28x336xf32> -> vector<28x336xf32>
    %21 = arith.addf %17, %20 : vector<28x336xf32>
    %c3 = arith.constant 3 : index
    %c0_17 = arith.constant 0 : index
    %22 = vector.load %arg0[%c3, %c0_17] : memref<64x96xf32, #tpu.memory_space<vmem>>, vector<28x96xf32>
    %c288 = arith.constant 288 : index
    %c0_18 = arith.constant 0 : index
    %23 = vector.load %arg1[%c288, %c0_18] : memref<832x336xf32, #tpu.memory_space<vmem>>, vector<96x336xf32>
    %cst_19 = arith.constant dense<0.000000e+00> : vector<28x336xf32>
    %24 = tpu.matmul %22, %23, %cst_19 {dimension_numbers = #tpu.dot_dimension_numbers<[1], [0], [0], [1], [0, 0, 1, 1], [], []>} : vector<28x96xf32>, vector<96x336xf32>, vector<28x336xf32> -> vector<28x336xf32>
    %25 = arith.addf %21, %24 : vector<28x336xf32>
    %c4 = arith.constant 4 : index
    %c0_20 = arith.constant 0 : index
    %26 = vector.load %arg0[%c4, %c0_20] : memref<64x96xf32, #tpu.memory_space<vmem>>, vector<28x96xf32>
    %c384 = arith.constant 384 : index
    %c0_21 = arith.constant 0 : index
    %27 = vector.load %arg1[%c384, %c0_21] : memref<832x336xf32, #tpu.memory_space<vmem>>, vector<96x336xf32>
    %cst_22 = arith.constant dense<0.000000e+00> : vector<28x336xf32>
    %28 = tpu.matmul %26, %27, %cst_22 {dimension_numbers = #tpu.dot_dimension_numbers<[1], [0], [0], [1], [0, 0, 1, 1], [], []>} : vector<28x96xf32>, vector<96x336xf32>, vector<28x336xf32> -> vector<28x336xf32>
    %29 = arith.addf %25, %28 : vector<28x336xf32>
    %30 = arith.addf %29, %4 : vector<28x336xf32>
    %cst_23 = arith.constant 0.000000e+00 : f32
    %31 = vector.broadcast %cst_23 : f32 to vector<28x336xf32>
    %32 = arith.maximumf %30, %31 : vector<28x336xf32>
    %33 = vector.extract_strided_slice %32 {offsets = [0, 0], sizes = [27, 336], strides = [1, 1]} : vector<28x336xf32> to vector<27x336xf32>
    %34 = vector.extract_strided_slice %32 {offsets = [1, 0], sizes = [27, 336], strides = [1, 1]} : vector<28x336xf32> to vector<27x336xf32>
    %35 = arith.maximumf %33, %34 : vector<27x336xf32>
    %cst_24 = arith.constant dense<0.000000e+00> : vector<14x336xf32>
    %36 = tpu.matmul %8, %35, %cst_24 {dimension_numbers = #tpu.dot_dimension_numbers<[1], [0], [0], [1], [0, 0, 1, 1], [], []>} : vector<14x27xf32>, vector<27x336xf32>, vector<14x336xf32> -> vector<14x336xf32>
    %37 = vector.extract_strided_slice %36 {offsets = [0, 0], sizes = [14, 324], strides = [1, 1]} : vector<14x336xf32> to vector<14x324xf32>
    %38 = vector.extract_strided_slice %36 {offsets = [0, 12], sizes = [14, 324], strides = [1, 1]} : vector<14x336xf32> to vector<14x324xf32>
    %39 = arith.maximumf %37, %38 : vector<14x324xf32>
    %cst_25 = arith.constant dense<0.000000e+00> : vector<14x168xf32>
    %40 = tpu.matmul %39, %9, %cst_25 {dimension_numbers = #tpu.dot_dimension_numbers<[1], [0], [0], [1], [0, 0, 1, 1], [], []>} : vector<14x324xf32>, vector<324x168xf32>, vector<14x168xf32> -> vector<14x168xf32>
    %41 = vector.extract_strided_slice %40 {offsets = [0, 0], sizes = [10, 168], strides = [1, 1]} : vector<14x168xf32> to vector<10x168xf32>
    %c0_26 = arith.constant 0 : index
    %c0_27 = arith.constant 0 : index
    %42 = vector.load %arg2[%c0_26, %c0_27] : memref<2368x160xf32, #tpu.memory_space<vmem>>, vector<168x160xf32>
    %cst_28 = arith.constant dense<0.000000e+00> : vector<10x160xf32>
    %43 = tpu.matmul %41, %42, %cst_28 {dimension_numbers = #tpu.dot_dimension_numbers<[1], [0], [0], [1], [0, 0, 1, 1], [], []>} : vector<10x168xf32>, vector<168x160xf32>, vector<10x160xf32> -> vector<10x160xf32>
    %44 = vector.extract_strided_slice %40 {offsets = [1, 0], sizes = [10, 168], strides = [1, 1]} : vector<14x168xf32> to vector<10x168xf32>
    %c168 = arith.constant 168 : index
    %c0_29 = arith.constant 0 : index
    %45 = vector.load %arg2[%c168, %c0_29] : memref<2368x160xf32, #tpu.memory_space<vmem>>, vector<168x160xf32>
    %cst_30 = arith.constant dense<0.000000e+00> : vector<10x160xf32>
    %46 = tpu.matmul %44, %45, %cst_30 {dimension_numbers = #tpu.dot_dimension_numbers<[1], [0], [0], [1], [0, 0, 1, 1], [], []>} : vector<10x168xf32>, vector<168x160xf32>, vector<10x160xf32> -> vector<10x160xf32>
    %47 = arith.addf %43, %46 : vector<10x160xf32>
    %48 = vector.extract_strided_slice %40 {offsets = [2, 0], sizes = [10, 168], strides = [1, 1]} : vector<14x168xf32> to vector<10x168xf32>
    %c336 = arith.constant 336 : index
    %c0_31 = arith.constant 0 : index
    %49 = vector.load %arg2[%c336, %c0_31] : memref<2368x160xf32, #tpu.memory_space<vmem>>, vector<168x160xf32>
    %cst_32 = arith.constant dense<0.000000e+00> : vector<10x160xf32>
    %50 = tpu.matmul %48, %49, %cst_32 {dimension_numbers = #tpu.dot_dimension_numbers<[1], [0], [0], [1], [0, 0, 1, 1], [], []>} : vector<10x168xf32>, vector<168x160xf32>, vector<10x160xf32> -> vector<10x160xf32>
    %51 = arith.addf %47, %50 : vector<10x160xf32>
    %52 = vector.extract_strided_slice %40 {offsets = [3, 0], sizes = [10, 168], strides = [1, 1]} : vector<14x168xf32> to vector<10x168xf32>
    %c504_33 = arith.constant 504 : index
    %c0_34 = arith.constant 0 : index
    %53 = vector.load %arg2[%c504_33, %c0_34] : memref<2368x160xf32, #tpu.memory_space<vmem>>, vector<168x160xf32>
    %cst_35 = arith.constant dense<0.000000e+00> : vector<10x160xf32>
    %54 = tpu.matmul %52, %53, %cst_35 {dimension_numbers = #tpu.dot_dimension_numbers<[1], [0], [0], [1], [0, 0, 1, 1], [], []>} : vector<10x168xf32>, vector<168x160xf32>, vector<10x160xf32> -> vector<10x160xf32>
    %55 = arith.addf %51, %54 : vector<10x160xf32>
    %56 = vector.extract_strided_slice %40 {offsets = [4, 0], sizes = [10, 168], strides = [1, 1]} : vector<14x168xf32> to vector<10x168xf32>
    %c672 = arith.constant 672 : index
    %c0_36 = arith.constant 0 : index
    %57 = vector.load %arg2[%c672, %c0_36] : memref<2368x160xf32, #tpu.memory_space<vmem>>, vector<168x160xf32>
    %cst_37 = arith.constant dense<0.000000e+00> : vector<10x160xf32>
    %58 = tpu.matmul %56, %57, %cst_37 {dimension_numbers = #tpu.dot_dimension_numbers<[1], [0], [0], [1], [0, 0, 1, 1], [], []>} : vector<10x168xf32>, vector<168x160xf32>, vector<10x160xf32> -> vector<10x160xf32>
    %59 = arith.addf %55, %58 : vector<10x160xf32>
    %60 = arith.addf %59, %7 : vector<10x160xf32>
    %cst_38 = arith.constant 0.000000e+00 : f32
    %61 = vector.broadcast %cst_38 : f32 to vector<10x160xf32>
    %62 = arith.maximumf %60, %61 : vector<10x160xf32>
    %63 = vector.extract_strided_slice %62 {offsets = [0, 0], sizes = [9, 160], strides = [1, 1]} : vector<10x160xf32> to vector<9x160xf32>
    %64 = vector.extract_strided_slice %62 {offsets = [1, 0], sizes = [9, 160], strides = [1, 1]} : vector<10x160xf32> to vector<9x160xf32>
    %65 = arith.maximumf %63, %64 : vector<9x160xf32>
    %cst_39 = arith.constant dense<0.000000e+00> : vector<5x160xf32>
    %66 = tpu.matmul %10, %65, %cst_39 {dimension_numbers = #tpu.dot_dimension_numbers<[1], [0], [0], [1], [0, 0, 1, 1], [], []>} : vector<5x9xf32>, vector<9x160xf32>, vector<5x160xf32> -> vector<5x160xf32>
    %67 = vector.extract_strided_slice %66 {offsets = [0, 0], sizes = [5, 144], strides = [1, 1]} : vector<5x160xf32> to vector<5x144xf32>
    %68 = vector.extract_strided_slice %66 {offsets = [0, 16], sizes = [5, 144], strides = [1, 1]} : vector<5x160xf32> to vector<5x144xf32>
    %69 = arith.maximumf %67, %68 : vector<5x144xf32>
    %70 = vector.extract_strided_slice %69 {offsets = [0, 0], sizes = [1, 144], strides = [1, 1]} : vector<5x144xf32> to vector<1x144xf32>
    %c0_40 = arith.constant 0 : index
    %c0_41 = arith.constant 0 : index
    %71 = vector.load %arg4[%c0_40, %c0_41] : memref<2x1280xf32, #tpu.memory_space<vmem>>, vector<1x144xf32>
    tpu.vector_store %arg4[%c0_40, %c0_41], %70 {strides = array<i32>} : memref<2x1280xf32, #tpu.memory_space<vmem>>, vector<1x144xf32>,
    %72 = vector.extract_strided_slice %69 {offsets = [1, 0], sizes = [1, 144], strides = [1, 1]} : vector<5x144xf32> to vector<1x144xf32>
    %c0_42 = arith.constant 0 : index
    %c256 = arith.constant 256 : index
    %73 = vector.load %arg4[%c0_42, %c256] : memref<2x1280xf32, #tpu.memory_space<vmem>>, vector<1x144xf32>
    tpu.vector_store %arg4[%c0_42, %c256], %72 {strides = array<i32>} : memref<2x1280xf32, #tpu.memory_space<vmem>>, vector<1x144xf32>,
    %74 = vector.extract_strided_slice %69 {offsets = [2, 0], sizes = [1, 144], strides = [1, 1]} : vector<5x144xf32> to vector<1x144xf32>
    %c0_43 = arith.constant 0 : index
    %c512 = arith.constant 512 : index
    %75 = vector.load %arg4[%c0_43, %c512] : memref<2x1280xf32, #tpu.memory_space<vmem>>, vector<1x144xf32>
    tpu.vector_store %arg4[%c0_43, %c512], %74 {strides = array<i32>} : memref<2x1280xf32, #tpu.memory_space<vmem>>, vector<1x144xf32>,
    %76 = vector.extract_strided_slice %69 {offsets = [3, 0], sizes = [1, 144], strides = [1, 1]} : vector<5x144xf32> to vector<1x144xf32>
    %c0_44 = arith.constant 0 : index
    %c768 = arith.constant 768 : index
    %77 = vector.load %arg4[%c0_44, %c768] : memref<2x1280xf32, #tpu.memory_space<vmem>>, vector<1x144xf32>
    tpu.vector_store %arg4[%c0_44, %c768], %76 {strides = array<i32>} : memref<2x1280xf32, #tpu.memory_space<vmem>>, vector<1x144xf32>,
    %78 = vector.extract_strided_slice %69 {offsets = [4, 0], sizes = [1, 144], strides = [1, 1]} : vector<5x144xf32> to vector<1x144xf32>
    %c0_45 = arith.constant 0 : index
    %c1024 = arith.constant 1024 : index
    %79 = vector.load %arg4[%c0_45, %c1024] : memref<2x1280xf32, #tpu.memory_space<vmem>>, vector<1x144xf32>
    tpu.vector_store %arg4[%c0_45, %c1024], %78 {strides = array<i32>} : memref<2x1280xf32, #tpu.memory_space<vmem>>, vector<1x144xf32>,
    %c32 = arith.constant 32 : index
    %c0_46 = arith.constant 0 : index
    %80 = vector.load %arg0[%c32, %c0_46] : memref<64x96xf32, #tpu.memory_space<vmem>>, vector<28x96xf32>
    %c0_47 = arith.constant 0 : index
    %c0_48 = arith.constant 0 : index
    %81 = vector.load %arg1[%c0_47, %c0_48] : memref<832x336xf32, #tpu.memory_space<vmem>>, vector<96x336xf32>
    %cst_49 = arith.constant dense<0.000000e+00> : vector<28x336xf32>
    %82 = tpu.matmul %80, %81, %cst_49 {dimension_numbers = #tpu.dot_dimension_numbers<[1], [0], [0], [1], [0, 0, 1, 1], [], []>} : vector<28x96xf32>, vector<96x336xf32>, vector<28x336xf32> -> vector<28x336xf32>
    %c33 = arith.constant 33 : index
    %c0_50 = arith.constant 0 : index
    %83 = vector.load %arg0[%c33, %c0_50] : memref<64x96xf32, #tpu.memory_space<vmem>>, vector<28x96xf32>
    %c96_51 = arith.constant 96 : index
    %c0_52 = arith.constant 0 : index
    %84 = vector.load %arg1[%c96_51, %c0_52] : memref<832x336xf32, #tpu.memory_space<vmem>>, vector<96x336xf32>
    %cst_53 = arith.constant dense<0.000000e+00> : vector<28x336xf32>
    %85 = tpu.matmul %83, %84, %cst_53 {dimension_numbers = #tpu.dot_dimension_numbers<[1], [0], [0], [1], [0, 0, 1, 1], [], []>} : vector<28x96xf32>, vector<96x336xf32>, vector<28x336xf32> -> vector<28x336xf32>
    %86 = arith.addf %82, %85 : vector<28x336xf32>
    %c34 = arith.constant 34 : index
    %c0_54 = arith.constant 0 : index
    %87 = vector.load %arg0[%c34, %c0_54] : memref<64x96xf32, #tpu.memory_space<vmem>>, vector<28x96xf32>
    %c192_55 = arith.constant 192 : index
    %c0_56 = arith.constant 0 : index
    %88 = vector.load %arg1[%c192_55, %c0_56] : memref<832x336xf32, #tpu.memory_space<vmem>>, vector<96x336xf32>
    %cst_57 = arith.constant dense<0.000000e+00> : vector<28x336xf32>
    %89 = tpu.matmul %87, %88, %cst_57 {dimension_numbers = #tpu.dot_dimension_numbers<[1], [0], [0], [1], [0, 0, 1, 1], [], []>} : vector<28x96xf32>, vector<96x336xf32>, vector<28x336xf32> -> vector<28x336xf32>
    %90 = arith.addf %86, %89 : vector<28x336xf32>
    %c35 = arith.constant 35 : index
    %c0_58 = arith.constant 0 : index
    %91 = vector.load %arg0[%c35, %c0_58] : memref<64x96xf32, #tpu.memory_space<vmem>>, vector<28x96xf32>
    %c288_59 = arith.constant 288 : index
    %c0_60 = arith.constant 0 : index
    %92 = vector.load %arg1[%c288_59, %c0_60] : memref<832x336xf32, #tpu.memory_space<vmem>>, vector<96x336xf32>
    %cst_61 = arith.constant dense<0.000000e+00> : vector<28x336xf32>
    %93 = tpu.matmul %91, %92, %cst_61 {dimension_numbers = #tpu.dot_dimension_numbers<[1], [0], [0], [1], [0, 0, 1, 1], [], []>} : vector<28x96xf32>, vector<96x336xf32>, vector<28x336xf32> -> vector<28x336xf32>
    %94 = arith.addf %90, %93 : vector<28x336xf32>
    %c36 = arith.constant 36 : index
    %c0_62 = arith.constant 0 : index
    %95 = vector.load %arg0[%c36, %c0_62] : memref<64x96xf32, #tpu.memory_space<vmem>>, vector<28x96xf32>
    %c384_63 = arith.constant 384 : index
    %c0_64 = arith.constant 0 : index
    %96 = vector.load %arg1[%c384_63, %c0_64] : memref<832x336xf32, #tpu.memory_space<vmem>>, vector<96x336xf32>
    %cst_65 = arith.constant dense<0.000000e+00> : vector<28x336xf32>
    %97 = tpu.matmul %95, %96, %cst_65 {dimension_numbers = #tpu.dot_dimension_numbers<[1], [0], [0], [1], [0, 0, 1, 1], [], []>} : vector<28x96xf32>, vector<96x336xf32>, vector<28x336xf32> -> vector<28x336xf32>
    %98 = arith.addf %94, %97 : vector<28x336xf32>
    %99 = arith.addf %98, %4 : vector<28x336xf32>
    %cst_66 = arith.constant 0.000000e+00 : f32
    %100 = vector.broadcast %cst_66 : f32 to vector<28x336xf32>
    %101 = arith.maximumf %99, %100 : vector<28x336xf32>
    %102 = vector.extract_strided_slice %101 {offsets = [0, 0], sizes = [27, 336], strides = [1, 1]} : vector<28x336xf32> to vector<27x336xf32>
    %103 = vector.extract_strided_slice %101 {offsets = [1, 0], sizes = [27, 336], strides = [1, 1]} : vector<28x336xf32> to vector<27x336xf32>
    %104 = arith.maximumf %102, %103 : vector<27x336xf32>
    %cst_67 = arith.constant dense<0.000000e+00> : vector<14x336xf32>
    %105 = tpu.matmul %8, %104, %cst_67 {dimension_numbers = #tpu.dot_dimension_numbers<[1], [0], [0], [1], [0, 0, 1, 1], [], []>} : vector<14x27xf32>, vector<27x336xf32>, vector<14x336xf32> -> vector<14x336xf32>
    %106 = vector.extract_strided_slice %105 {offsets = [0, 0], sizes = [14, 324], strides = [1, 1]} : vector<14x336xf32> to vector<14x324xf32>
    %107 = vector.extract_strided_slice %105 {offsets = [0, 12], sizes = [14, 324], strides = [1, 1]} : vector<14x336xf32> to vector<14x324xf32>
    %108 = arith.maximumf %106, %107 : vector<14x324xf32>
    %cst_68 = arith.constant dense<0.000000e+00> : vector<14x168xf32>
    %109 = tpu.matmul %108, %9, %cst_68 {dimension_numbers = #tpu.dot_dimension_numbers<[1], [0], [0], [1], [0, 0, 1, 1], [], []>} : vector<14x324xf32>, vector<324x168xf32>, vector<14x168xf32> -> vector<14x168xf32>
    %110 = vector.extract_strided_slice %109 {offsets = [0, 0], sizes = [10, 168], strides = [1, 1]} : vector<14x168xf32> to vector<10x168xf32>
    %c0_69 = arith.constant 0 : index
    %c0_70 = arith.constant 0 : index
    %111 = vector.load %arg2[%c0_69, %c0_70] : memref<2368x160xf32, #tpu.memory_space<vmem>>, vector<168x160xf32>
    %cst_71 = arith.constant dense<0.000000e+00> : vector<10x160xf32>
    %112 = tpu.matmul %110, %111, %cst_71 {dimension_numbers = #tpu.dot_dimension_numbers<[1], [0], [0], [1], [0, 0, 1, 1], [], []>} : vector<10x168xf32>, vector<168x160xf32>, vector<10x160xf32> -> vector<10x160xf32>
    %113 = vector.extract_strided_slice %109 {offsets = [1, 0], sizes = [10, 168], strides = [1, 1]} : vector<14x168xf32> to vector<10x168xf32>
    %c168_72 = arith.constant 168 : index
    %c0_73 = arith.constant 0 : index
    %114 = vector.load %arg2[%c168_72, %c0_73] : memref<2368x160xf32, #tpu.memory_space<vmem>>, vector<168x160xf32>
    %cst_74 = arith.constant dense<0.000000e+00> : vector<10x160xf32>
    %115 = tpu.matmul %113, %114, %cst_74 {dimension_numbers = #tpu.dot_dimension_numbers<[1], [0], [0], [1], [0, 0, 1, 1], [], []>} : vector<10x168xf32>, vector<168x160xf32>, vector<10x160xf32> -> vector<10x160xf32>
    %116 = arith.addf %112, %115 : vector<10x160xf32>
    %117 = vector.extract_strided_slice %109 {offsets = [2, 0], sizes = [10, 168], strides = [1, 1]} : vector<14x168xf32> to vector<10x168xf32>
    %c336_75 = arith.constant 336 : index
    %c0_76 = arith.constant 0 : index
    %118 = vector.load %arg2[%c336_75, %c0_76] : memref<2368x160xf32, #tpu.memory_space<vmem>>, vector<168x160xf32>
    %cst_77 = arith.constant dense<0.000000e+00> : vector<10x160xf32>
    %119 = tpu.matmul %117, %118, %cst_77 {dimension_numbers = #tpu.dot_dimension_numbers<[1], [0], [0], [1], [0, 0, 1, 1], [], []>} : vector<10x168xf32>, vector<168x160xf32>, vector<10x160xf32> -> vector<10x160xf32>
    %120 = arith.addf %116, %119 : vector<10x160xf32>
    %121 = vector.extract_strided_slice %109 {offsets = [3, 0], sizes = [10, 168], strides = [1, 1]} : vector<14x168xf32> to vector<10x168xf32>
    %c504_78 = arith.constant 504 : index
    %c0_79 = arith.constant 0 : index
    %122 = vector.load %arg2[%c504_78, %c0_79] : memref<2368x160xf32, #tpu.memory_space<vmem>>, vector<168x160xf32>
    %cst_80 = arith.constant dense<0.000000e+00> : vector<10x160xf32>
    %123 = tpu.matmul %121, %122, %cst_80 {dimension_numbers = #tpu.dot_dimension_numbers<[1], [0], [0], [1], [0, 0, 1, 1], [], []>} : vector<10x168xf32>, vector<168x160xf32>, vector<10x160xf32> -> vector<10x160xf32>
    %124 = arith.addf %120, %123 : vector<10x160xf32>
    %125 = vector.extract_strided_slice %109 {offsets = [4, 0], sizes = [10, 168], strides = [1, 1]} : vector<14x168xf32> to vector<10x168xf32>
    %c672_81 = arith.constant 672 : index
    %c0_82 = arith.constant 0 : index
    %126 = vector.load %arg2[%c672_81, %c0_82] : memref<2368x160xf32, #tpu.memory_space<vmem>>, vector<168x160xf32>
    %cst_83 = arith.constant dense<0.000000e+00> : vector<10x160xf32>
    %127 = tpu.matmul %125, %126, %cst_83 {dimension_numbers = #tpu.dot_dimension_numbers<[1], [0], [0], [1], [0, 0, 1, 1], [], []>} : vector<10x168xf32>, vector<168x160xf32>, vector<10x160xf32> -> vector<10x160xf32>
    %128 = arith.addf %124, %127 : vector<10x160xf32>
    %129 = arith.addf %128, %7 : vector<10x160xf32>
    %cst_84 = arith.constant 0.000000e+00 : f32
    %130 = vector.broadcast %cst_84 : f32 to vector<10x160xf32>
    %131 = arith.maximumf %129, %130 : vector<10x160xf32>
    %132 = vector.extract_strided_slice %131 {offsets = [0, 0], sizes = [9, 160], strides = [1, 1]} : vector<10x160xf32> to vector<9x160xf32>
    %133 = vector.extract_strided_slice %131 {offsets = [1, 0], sizes = [9, 160], strides = [1, 1]} : vector<10x160xf32> to vector<9x160xf32>
    %134 = arith.maximumf %132, %133 : vector<9x160xf32>
    %cst_85 = arith.constant dense<0.000000e+00> : vector<5x160xf32>
    %135 = tpu.matmul %10, %134, %cst_85 {dimension_numbers = #tpu.dot_dimension_numbers<[1], [0], [0], [1], [0, 0, 1, 1], [], []>} : vector<5x9xf32>, vector<9x160xf32>, vector<5x160xf32> -> vector<5x160xf32>
    %136 = vector.extract_strided_slice %135 {offsets = [0, 0], sizes = [5, 144], strides = [1, 1]} : vector<5x160xf32> to vector<5x144xf32>
    %137 = vector.extract_strided_slice %135 {offsets = [0, 16], sizes = [5, 144], strides = [1, 1]} : vector<5x160xf32> to vector<5x144xf32>
    %138 = arith.maximumf %136, %137 : vector<5x144xf32>
    %139 = vector.extract_strided_slice %138 {offsets = [0, 0], sizes = [1, 144], strides = [1, 1]} : vector<5x144xf32> to vector<1x144xf32>
    %c1_86 = arith.constant 1 : index
    %c0_87 = arith.constant 0 : index
    %140 = vector.load %arg4[%c1_86, %c0_87] : memref<2x1280xf32, #tpu.memory_space<vmem>>, vector<1x144xf32>
    tpu.vector_store %arg4[%c1_86, %c0_87], %139 {strides = array<i32>} : memref<2x1280xf32, #tpu.memory_space<vmem>>, vector<1x144xf32>,
    %141 = vector.extract_strided_slice %138 {offsets = [1, 0], sizes = [1, 144], strides = [1, 1]} : vector<5x144xf32> to vector<1x144xf32>
    %c1_88 = arith.constant 1 : index
    %c256_89 = arith.constant 256 : index
    %142 = vector.load %arg4[%c1_88, %c256_89] : memref<2x1280xf32, #tpu.memory_space<vmem>>, vector<1x144xf32>
    tpu.vector_store %arg4[%c1_88, %c256_89], %141 {strides = array<i32>} : memref<2x1280xf32, #tpu.memory_space<vmem>>, vector<1x144xf32>,
    %143 = vector.extract_strided_slice %138 {offsets = [2, 0], sizes = [1, 144], strides = [1, 1]} : vector<5x144xf32> to vector<1x144xf32>
    %c1_90 = arith.constant 1 : index
    %c512_91 = arith.constant 512 : index
    %144 = vector.load %arg4[%c1_90, %c512_91] : memref<2x1280xf32, #tpu.memory_space<vmem>>, vector<1x144xf32>
    tpu.vector_store %arg4[%c1_90, %c512_91], %143 {strides = array<i32>} : memref<2x1280xf32, #tpu.memory_space<vmem>>, vector<1x144xf32>,
    %145 = vector.extract_strided_slice %138 {offsets = [3, 0], sizes = [1, 144], strides = [1, 1]} : vector<5x144xf32> to vector<1x144xf32>
    %c1_92 = arith.constant 1 : index
    %c768_93 = arith.constant 768 : index
    %146 = vector.load %arg4[%c1_92, %c768_93] : memref<2x1280xf32, #tpu.memory_space<vmem>>, vector<1x144xf32>
    tpu.vector_store %arg4[%c1_92, %c768_93], %145 {strides = array<i32>} : memref<2x1280xf32, #tpu.memory_space<vmem>>, vector<1x144xf32>,
    %147 = vector.extract_strided_slice %138 {offsets = [4, 0], sizes = [1, 144], strides = [1, 1]} : vector<5x144xf32> to vector<1x144xf32>
    %c1_94 = arith.constant 1 : index
    %c1024_95 = arith.constant 1024 : index
    %148 = vector.load %arg4[%c1_94, %c1024_95] : memref<2x1280xf32, #tpu.memory_space<vmem>>, vector<1x144xf32>
    tpu.vector_store %arg4[%c1_94, %c1024_95], %147 {strides = array<i32>} : memref<2x1280xf32, #tpu.memory_space<vmem>>, vector<1x144xf32>,
    %c0_96 = arith.constant 0 : index
    %c0_97 = arith.constant 0 : index
    %149 = vector.load %arg4[%c0_96, %c0_97] : memref<2x1280xf32, #tpu.memory_space<vmem>>, vector<2x1280xf32>
    %c856 = arith.constant 856 : index
    %c0_98 = arith.constant 0 : index
    %150 = vector.load %arg2[%c856, %c0_98] : memref<2368x160xf32, #tpu.memory_space<vmem>>, vector<1280x120xf32>
    %cst_99 = arith.constant dense<0.000000e+00> : vector<2x120xf32>
    %151 = tpu.matmul %149, %150, %cst_99 {dimension_numbers = #tpu.dot_dimension_numbers<[1], [0], [0], [1], [0, 0, 1, 1], [], []>} : vector<2x1280xf32>, vector<1280x120xf32>, vector<2x120xf32> -> vector<2x120xf32>
    %c2136 = arith.constant 2136 : index
    %c0_100 = arith.constant 0 : index
    %152 = vector.load %arg2[%c2136, %c0_100] : memref<2368x160xf32, #tpu.memory_space<vmem>>, vector<1x120xf32>
    %153 = vector.broadcast %152 : vector<1x120xf32> to vector<2x120xf32>
    %154 = arith.addf %151, %153 : vector<2x120xf32>
    %cst_101 = arith.constant 0.000000e+00 : f32
    %155 = vector.broadcast %cst_101 : f32 to vector<2x120xf32>
    %156 = arith.maximumf %154, %155 : vector<2x120xf32>
    %c2144 = arith.constant 2144 : index
    %c0_102 = arith.constant 0 : index
    %157 = vector.load %arg2[%c2144, %c0_102] : memref<2368x160xf32, #tpu.memory_space<vmem>>, vector<120x84xf32>
    %cst_103 = arith.constant dense<0.000000e+00> : vector<2x84xf32>
    %158 = tpu.matmul %156, %157, %cst_103 {dimension_numbers = #tpu.dot_dimension_numbers<[1], [0], [0], [1], [0, 0, 1, 1], [], []>} : vector<2x120xf32>, vector<120x84xf32>, vector<2x84xf32> -> vector<2x84xf32>
    %c2264 = arith.constant 2264 : index
    %c0_104 = arith.constant 0 : index
    %159 = vector.load %arg2[%c2264, %c0_104] : memref<2368x160xf32, #tpu.memory_space<vmem>>, vector<1x84xf32>
    %160 = vector.broadcast %159 : vector<1x84xf32> to vector<2x84xf32>
    %161 = arith.addf %158, %160 : vector<2x84xf32>
    %cst_105 = arith.constant 0.000000e+00 : f32
    %162 = vector.broadcast %cst_105 : f32 to vector<2x84xf32>
    %163 = arith.maximumf %161, %162 : vector<2x84xf32>
    %c2272 = arith.constant 2272 : index
    %c0_106 = arith.constant 0 : index
    %164 = vector.load %arg2[%c2272, %c0_106] : memref<2368x160xf32, #tpu.memory_space<vmem>>, vector<84x10xf32>
    %cst_107 = arith.constant dense<0.000000e+00> : vector<2x10xf32>
    %165 = tpu.matmul %163, %164, %cst_107 {dimension_numbers = #tpu.dot_dimension_numbers<[1], [0], [0], [1], [0, 0, 1, 1], [], []>} : vector<2x84xf32>, vector<84x10xf32>, vector<2x10xf32> -> vector<2x10xf32>
    %c2360 = arith.constant 2360 : index
    %c0_108 = arith.constant 0 : index
    %166 = vector.load %arg2[%c2360, %c0_108] : memref<2368x160xf32, #tpu.memory_space<vmem>>, vector<1x10xf32>
    %167 = vector.broadcast %166 : vector<1x10xf32> to vector<2x10xf32>
    %168 = arith.addf %165, %167 : vector<2x10xf32>
    %c0_109 = arith.constant 0 : index
    %c0_110 = arith.constant 0 : index
    %169 = vector.load %arg3[%c0_109, %c0_110] : memref<2x10xf32, #tpu.memory_space<vmem>>, vector<2x10xf32>
    tpu.vector_store %arg3[%c0_109, %c0_110], %168 {strides = array<i32>} : memref<2x10xf32, #tpu.memory_space<vmem>>, vector<2x10xf32>,
    return
  }
}

</mosaic_0001>

<llo_original>
// kernel: fwd.1
$region0: #{fwd.1}
  #allocation0 [shape = 'u32[]', space=smem, size = 0x4, offset = 0x4, fixed_abs, tag = 'smem constant byte address 0x4 - core index']
  #allocation1 [shape = 'u32[144,128]{1,0:T(1,128)}', space=vmem, size = 0x12000, scoped, tag = 'internal scratch']
  #allocation2 [shape = 'f32[2,1280]{1,0:T(2,128)}', space=vmem, size = 0x2800, scoped, tag = 'scratch operand']
  %s0 = inlined_call_operand.vmem [shape: f32[64,96], index: 0, kind: input, shape index: {}]
  %s1 = inlined_call_operand.vmem [shape: f32[832,336], index: 1, kind: input, shape index: {}]
  %s2 = inlined_call_operand.vmem [shape: f32[2368,160], index: 2, kind: input, shape index: {}]
  %s3 = inlined_call_operand.hbm [shape: f32[2,10], index: 3, kind: output, shape index: {}]
  %s4 = sld [smem:[#allocation0]]
  $region22: #{fwd.1} parent=0
    _
  %s6 = ssub.s32 1, %s4
  %s7 = scalar_select 0, %s6, %s4
  $region1: #{fwd.1} parent=0
    #allocation3 [shape = 'u8[1024]{0}', space=vmem, size = 0x400, scoped, tag = 'output window, operand 0, single buffered']
    #allocation4 [shape = 's32[1]{0}', space=sflag, size = 0x4, scoped, tag = 'scoped memory for fwd.1']
    %8 = vsyncpa [#allocation4], 0
    // Predicated region
    $region2: #{fwd.1} parent=1 // pred_check
      _
    $region3: #{fwd.1} parent=1 // pred_check_branch
      %10 = sbr.rel (0) target = $region5
    $region4: #{fwd.1} parent=1 // pred_region
      _
    $region5: #{fwd.1} parent=1 // pred_fallthru
      _
    // Predicated region
    $region6: #{fwd.1} parent=1 // pred_check
      _
    $region7: #{fwd.1} parent=1 // pred_check_branch
      %12 = sbr.rel (0) target = $region9
    $region8: #{fwd.1} parent=1 // pred_region
      _
    $region9: #{fwd.1} parent=1 // pred_fallthru
      _
    // Predicated region
    $region10: #{fwd.1} parent=1 // pred_check
      _
    $region11: #{fwd.1} parent=1 // pred_check_branch
      %14 = sbr.rel (0) target = $region13
    $region12: #{fwd.1} parent=1 // pred_region
      _
    $region13: #{fwd.1} parent=1 // pred_fallthru
      _
    %15 = vst [vmem:[#allocation2] sm:$0xff] 0.0
    %16 = vst [vmem:[#allocation2 + $0x8] sm:$0xff] 0.0
    %17 = vst [vmem:[#allocation2 + $0x10] sm:$0xf] 0.0
    %s18 = scalar_lea.vmem %s1, 1440
    %v19 = vld [vmem:[%s18] ss:$8 sm:$0x7]
    %v21 = vlaneseq
    %v22 = vshrl.u32 %v21, 7
    %v23 = vsub.s32 0, %v22
    %v24 = vrot.slane %v19, %v23
    %v25 = vlaneseq
    %v26 = vshrl.u32 %v25, 7
    %v27 = vsub.s32 1, %v26
    %v28 = vrot.slane %v19, %v27
    %v29 = vlaneseq
    %v30 = vshrl.u32 %v29, 7
    %v31 = vsub.s32 2, %v30
    %v32 = vrot.slane %v19, %v31
    %s36 = scalar_lea.vmem %s2, 1680
    %v37 = vld [vmem:[%s36] ss:$8 sm:$0x3]
    %v39 = vlaneseq
    %v40 = vshrl.u32 %v39, 7
    %v41 = vsub.s32 0, %v40
    %v42 = vrot.slane %v37, %v41
    %v43 = vlaneseq
    %v44 = vshrl.u32 %v43, 7
    %v45 = vsub.s32 1, %v44
    %v46 = vrot.slane %v37, %v45
    %v49 = vld [vmem:[%s1 + $0x5b8] sm:$0xff]
    %v50 = vld [vmem:[%s1 + $0x5d0] sm:$0x3f]
    %v51 = vld [vmem:[%s1 + $0x5e8] sm:$0xff]
    %v52 = vld [vmem:[%s1 + $0x5f0] sm:$0xff]
    %v53 = vld [vmem:[%s1 + $0x600] sm:$0xff]
    %v54 = vld [vmem:[%s1 + $0x608] sm:$0xff]
    %v55 = vld [vmem:[%s1 + $0x618] sm:$0xff]
    %v56 = vld [vmem:[%s1 + $0x620] sm:$0xff]
    %v57 = vld [vmem:[%s1 + $0x630] sm:$0xff]
    %v58 = vld [vmem:[%s1 + $0x638] sm:$0xff]
    %v59 = vld [vmem:[%s1 + $0x648] sm:$0xff]
    %v60 = vld [vmem:[%s1 + $0x650] sm:$0xff]
    %v61 = vld [vmem:[%s1 + $0x660] sm:$0xff]
    %v62 = vld [vmem:[%s1 + $0x668] sm:$0xff]
    %v63 = vld [vmem:[%s1 + $0x678] sm:$0xff]
    %v64 = vld [vmem:[%s1 + $0x680] sm:$0xff]
    %v65 = vld [vmem:[%s1 + $0x690] sm:$0xff]
    %v66 = vld [vmem:[%s1 + $0x698] sm:$0xff]
    %v67 = vld [vmem:[%s1 + $0x6a8] sm:$0xff]
    %v68 = vld [vmem:[%s1 + $0x6b0] sm:$0xff]
    %v69 = vld [vmem:[%s1 + $0x6c0] sm:$0xff]
    %v70 = vld [vmem:[%s1 + $0x6c8] sm:$0xff]
    %v71 = vld [vmem:[%s1 + $0x6d8] sm:$0xff]
    %v72 = vld [vmem:[%s1 + $0x6e0] sm:$0xff]
    %v73 = vld [vmem:[%s1 + $0x6f0] sm:$0xff]
    %v74 = vld [vmem:[%s1 + $0x6f8] sm:$0xff]
    %v75 = vld [vmem:[%s1 + $0x708] sm:$0xff]
    %v76 = vld [vmem:[%s1 + $0x710] sm:$0xff]
    %v77 = vld [vmem:[%s1 + $0x720] sm:$0xff]
    %v78 = vld [vmem:[%s1 + $0x728] sm:$0xff]
    %v79 = vld [vmem:[%s1 + $0x738] sm:$0xff]
    %v80 = vld [vmem:[%s1 + $0x740] sm:$0xff]
    %v81 = vld [vmem:[%s1 + $0x750] sm:$0xff]
    %v82 = vld [vmem:[%s1 + $0x758] sm:$0xff]
    %v83 = vld [vmem:[%s1 + $0x768] sm:$0xff]
    %v84 = vld [vmem:[%s1 + $0x770] sm:$0xff]
    %v85 = vld [vmem:[%s1 + $0x780] sm:$0xff]
    %v86 = vld [vmem:[%s1 + $0x788] sm:$0xff]
    %v87 = vld [vmem:[%s1 + $0x798] sm:$0xff]
    %v88 = vld [vmem:[%s1 + $0x7a0] sm:$0xff]
    %v89 = vld [vmem:[%s1 + $0x7b0] sm:$0xff]
    %v90 = vld [vmem:[%s1 + $0x7b8] sm:$0xff]
    %v91 = vld [vmem:[%s1 + $0x7c8] sm:$0xff]
    %v92 = vld [vmem:[%s1 + $0x7d0] sm:$0xff]
    %v93 = vld [vmem:[%s1 + $0x7e0] sm:$0xff]
    %v94 = vld [vmem:[%s1 + $0x7e8] sm:$0xff]
    %v95 = vld [vmem:[%s1 + $0x7f8] sm:$0xff]
    %v96 = vld [vmem:[%s1 + $0x800] sm:$0xff]
    %v97 = vld [vmem:[%s1 + $0x810] sm:$0xff]
    %v98 = vld [vmem:[%s1 + $0x818] sm:$0xff]
    %v99 = vld [vmem:[%s1 + $0x828] sm:$0xff]
    %v100 = vld [vmem:[%s1 + $0x830] sm:$0xff]
    %v101 = vld [vmem:[%s1 + $0x840] sm:$0xff]
    %v102 = vld [vmem:[%s1 + $0x848] sm:$0xff]
    %v103 = vld [vmem:[%s1 + $0x858] sm:$0xff]
    %v104 = vld [vmem:[%s1 + $0x860] sm:$0xff]
    %v105 = vld [vmem:[%s1 + $0x870] sm:$0xff]
    %v106 = vld [vmem:[%s1 + $0x878] sm:$0xff]
    %v107 = vld [vmem:[%s1 + $0x888] sm:$0xff]
    %v108 = vld [vmem:[%s1 + $0x890] sm:$0xff]
    %v109 = vld [vmem:[%s1 + $0x8a0] sm:$0xff]
    %v110 = vld [vmem:[%s1 + $0x8a8] sm:$0xff]
    %v111 = vld [vmem:[%s1 + $0x8b8] sm:$0xff]
    %v112 = vld [vmem:[%s1 + $0x8c0] sm:$0xff]
    %v113 = vld [vmem:[%s1 + $0x8d0] sm:$0xff]
    %v114 = vld [vmem:[%s1 + $0x8d8] sm:$0xff]
    %v115 = vld [vmem:[%s1 + $0x8e8] sm:$0xff]
    %v116 = vld [vmem:[%s1 + $0x8f0] sm:$0xff]
    %v117 = vld [vmem:[%s1 + $0x900] sm:$0xff]
    %v118 = vld [vmem:[%s1 + $0x908] sm:$0xff]
    %v119 = vld [vmem:[%s1 + $0x918] sm:$0xff]
    %v120 = vld [vmem:[%s1 + $0x920] sm:$0xff]
    %v121 = vld [vmem:[%s1 + $0x930] sm:$0xff]
    %v122 = vld [vmem:[%s1 + $0x938] sm:$0xff]
    %v123 = vld [vmem:[%s1 + $0x948] sm:$0xff]
    %v124 = vld [vmem:[%s1 + $0x950] sm:$0xff]
    %v125 = vld [vmem:[%s1 + $0x960] sm:$0xff]
    %v126 = vld [vmem:[%s1 + $0x968] sm:$0xff]
    %v127 = vld [vmem:[%s1 + $0x978] sm:$0xff]
    %v128 = vld [vmem:[%s1 + $0x980] sm:$0xff]
    %v129 = vld [vmem:[%s1 + $0x990] sm:$0xff]
    %v130 = vld [vmem:[%s1 + $0x998] sm:$0xff]
    %v131 = vld [vmem:[%s1 + $0x9a8] sm:$0xf]
    %v132 = vld [vmem:[%s1 + $0x9b0] sm:$0xf]
    %v133 = vld [vmem:[%s2 + $0x6a0] sm:$0x1f]
    %v134 = vld [vmem:[%s0] sm:$0xff]
    %v135 = vld [vmem:[%s0 + $0x8] sm:$0xff]
    %v136 = vld [vmem:[%s0 + $0x10] sm:$0xff]
    %v137 = vld [vmem:[%s0 + $0x18] sm:$0xf]
    %v138 = vld [vmem:[%s1] sm:$0xff]
    %v139 = vld [vmem:[%s1 + $0x8] sm:$0xff]
    %v140 = vld [vmem:[%s1 + $0x10] sm:$0xff]
    %v141 = vld [vmem:[%s1 + $0x18] sm:$0xff]
    %v142 = vld [vmem:[%s1 + $0x20] sm:$0xff]
    %v143 = vld [vmem:[%s1 + $0x28] sm:$0xff]
    %v144 = vld [vmem:[%s1 + $0x30] sm:$0xff]
    %v145 = vld [vmem:[%s1 + $0x38] sm:$0xff]
    %v146 = vld [vmem:[%s1 + $0x40] sm:$0xff]
    %v147 = vld [vmem:[%s1 + $0x48] sm:$0xff]
    %v148 = vld [vmem:[%s1 + $0x50] sm:$0xff]
    %v149 = vld [vmem:[%s1 + $0x58] sm:$0xff]
    %v150 = vld [vmem:[%s1 + $0x60] sm:$0xff]
    %v151 = vld [vmem:[%s1 + $0x68] sm:$0xff]
    %v152 = vld [vmem:[%s1 + $0x70] sm:$0xff]
    %v153 = vld [vmem:[%s1 + $0x78] sm:$0xff]
    %v154 = vld [vmem:[%s1 + $0x80] sm:$0xff]
    %v155 = vld [vmem:[%s1 + $0x88] sm:$0xff]
    %v156 = vld [vmem:[%s1 + $0x90] sm:$0xff]
    %v157 = vld [vmem:[%s1 + $0x98] sm:$0xff]
    %v158 = vld [vmem:[%s1 + $0xa0] sm:$0xff]
    %v159 = vld [vmem:[%s1 + $0xa8] sm:$0xff]
    %v160 = vld [vmem:[%s1 + $0xb0] sm:$0xff]
    %v161 = vld [vmem:[%s1 + $0xb8] sm:$0xff]
    %v162 = vld [vmem:[%s1 + $0xc0] sm:$0xff]
    %v163 = vld [vmem:[%s1 + $0xc8] sm:$0xff]
    %v164 = vld [vmem:[%s1 + $0xd0] sm:$0xff]
    %v165 = vld [vmem:[%s1 + $0xd8] sm:$0xff]
    %v166 = vld [vmem:[%s1 + $0xe0] sm:$0xff]
    %v167 = vld [vmem:[%s1 + $0xe8] sm:$0xff]
    %v168 = vld [vmem:[%s1 + $0xf0] sm:$0xff]
    %v169 = vld [vmem:[%s1 + $0xf8] sm:$0xff]
    %v170 = vld [vmem:[%s1 + $0x100] sm:$0xff]
    %v171 = vld [vmem:[%s1 + $0x108] sm:$0xff]
    %v172 = vld [vmem:[%s1 + $0x110] sm:$0xff]
    %v173 = vld [vmem:[%s1 + $0x118] sm:$0xff]
    %v174 = vld [vmem:[%s0 + $0x1] sm:$0xff]
    %v175 = vld [vmem:[%s0 + $0x9] sm:$0xff]
    %v176 = vld [vmem:[%s0 + $0x11] sm:$0xff]
    %v177 = vld [vmem:[%s0 + $0x19] sm:$0xf]
    %v178 = vld [vmem:[%s1 + $0x120] sm:$0xff]
    %v179 = vld [vmem:[%s1 + $0x128] sm:$0xff]
    %v180 = vld [vmem:[%s1 + $0x130] sm:$0xff]
    %v181 = vld [vmem:[%s1 + $0x138] sm:$0xff]
    %v182 = vld [vmem:[%s1 + $0x140] sm:$0xff]
    %v183 = vld [vmem:[%s1 + $0x148] sm:$0xff]
    %v184 = vld [vmem:[%s1 + $0x150] sm:$0xff]
    %v185 = vld [vmem:[%s1 + $0x158] sm:$0xff]
    %v186 = vld [vmem:[%s1 + $0x160] sm:$0xff]
    %v187 = vld [vmem:[%s1 + $0x168] sm:$0xff]
    %v188 = vld [vmem:[%s1 + $0x170] sm:$0xff]
    %v189 = vld [vmem:[%s1 + $0x178] sm:$0xff]
    %v190 = vld [vmem:[%s1 + $0x180] sm:$0xff]
    %v191 = vld [vmem:[%s1 + $0x188] sm:$0xff]
    %v192 = vld [vmem:[%s1 + $0x190] sm:$0xff]
    %v193 = vld [vmem:[%s1 + $0x198] sm:$0xff]
    %v194 = vld [vmem:[%s1 + $0x1a0] sm:$0xff]
    %v195 = vld [vmem:[%s1 + $0x1a8] sm:$0xff]
    %v196 = vld [vmem:[%s1 + $0x1b0] sm:$0xff]
    %v197 = vld [vmem:[%s1 + $0x1b8] sm:$0xff]
    %v198 = vld [vmem:[%s1 + $0x1c0] sm:$0xff]
    %v199 = vld [vmem:[%s1 + $0x1c8] sm:$0xff]
    %v200 = vld [vmem:[%s1 + $0x1d0] sm:$0xff]
    %v201 = vld [vmem:[%s1 + $0x1d8] sm:$0xff]
    %v202 = vld [vmem:[%s1 + $0x1e0] sm:$0xff]
    %v203 = vld [vmem:[%s1 + $0x1e8] sm:$0xff]
    %v204 = vld [vmem:[%s1 + $0x1f0] sm:$0xff]
    %v205 = vld [vmem:[%s1 + $0x1f8] sm:$0xff]
    %v206 = vld [vmem:[%s1 + $0x200] sm:$0xff]
    %v207 = vld [vmem:[%s1 + $0x208] sm:$0xff]
    %v208 = vld [vmem:[%s1 + $0x210] sm:$0xff]
    %v209 = vld [vmem:[%s1 + $0x218] sm:$0xff]
    %v210 = vld [vmem:[%s1 + $0x220] sm:$0xff]
    %v211 = vld [vmem:[%s1 + $0x228] sm:$0xff]
    %v212 = vld [vmem:[%s1 + $0x230] sm:$0xff]
    %v213 = vld [vmem:[%s1 + $0x238] sm:$0xff]
    %vm214 = vcmask 785408
    %v216 = vsel %vm214, %v174, 0
    %v219 = vsel %vm214, %v175, 0
    %v222 = vsel %vm214, %v176, 0
    %v225 = vsel %vm214, %v177, 0
    %227 = vmatprep.subr.mxu0 0.0
    %228 = vmatpush1.msra.mxu0 0.0
    %229 = vmatprep.subr.mxu0 0.0
    %230 = vmatpush1.msra.mxu0 0.0
    %231 = vmatprep.subr.mxu0 0.0
    %232 = vmatpush1.msra.mxu0 0.0
    %233 = vmatprep.subr.mxu0 0.0
    %234 = vmatpush1.msra.mxu0 0.0
    %235 = vmatprep.subr.mxu0 %v212
    %236 = vmatpush1.msra.mxu0 %v211
    %237 = vmatprep.subr.mxu0 %v209
    %238 = vmatpush1.msra.mxu0 %v208
    %239 = vmatprep.subr.mxu0 %v206
    %240 = vmatpush1.msra.mxu0 %v205
    %241 = vmatprep.subr.mxu0 %v203
    %242 = vmatpush1.msra.mxu0 %v202
    %243 = vmatprep.subr.mxu0 %v200
    %244 = vmatpush1.msra.mxu0 %v199
    %245 = vmatprep.subr.mxu0 %v197
    %246 = vmatpush1.msra.mxu0 %v196
    %247 = vmatprep.subr.mxu0 %v194
    %248 = vmatpush1.msra.mxu0 %v193
    %249 = vmatprep.subr.mxu0 %v191
    %250 = vmatpush1.msra.mxu0 %v190
    %251 = vmatprep.subr.mxu0 %v188
    %252 = vmatpush1.msra.mxu0 %v187
    %253 = vmatprep.subr.mxu0 %v185
    %254 = vmatpush1.msra.mxu0 %v184
    %255 = vmatprep.subr.mxu0 %v182
    %256 = vmatpush1.msra.mxu0 %v181
    %257 = vmatprep.subr.mxu0 %v179
    %258 = vmatpush1.msra.mxu0 %v178
    %259 = vmatprep.subr.mxu0 0.0
    %260 = vmatpush2.msra.mxu0 0.0
    %261 = vmatprep.subr.mxu0 0.0
    %262 = vmatpush2.msra.mxu0 0.0
    %263 = vmatprep.subr.mxu0 0.0
    %264 = vmatpush2.msra.mxu0 0.0
    %265 = vmatprep.subr.mxu0 0.0
    %266 = vmatpush2.msra.mxu0 0.0
    %267 = vmatprep.subr.mxu0 0.0
    %268 = vmatpush2.msra.mxu0 0.0
    %269 = vmatprep.subr.mxu0 0.0
    %270 = vmatpush2.msra.mxu0 0.0
    %271 = vmatprep.subr.mxu0 0.0
    %272 = vmatpush2.msra.mxu0 0.0
    %273 = vmatprep.subr.mxu0 0.0
    %274 = vmatpush2.msra.mxu0 0.0
    %275 = vmatprep.subr.mxu0 0.0
    %276 = vmatpush2.msra.mxu0 0.0
    %277 = vmatprep.subr.mxu0 0.0
    %278 = vmatpush2.msra.mxu0 0.0
    %279 = vmatprep.subr.mxu0 0.0
    %280 = vmatpush2.msra.mxu0 0.0
    %281 = vmatprep.subr.mxu0 0.0
    %282 = vmatpush2.msra.mxu0 0.0
    %283 = vmatprep.subr.mxu0 0.0
    %284 = vmatpush2.msra.mxu0 0.0
    %285 = vmatprep.subr.mxu0 0.0
    %286 = vmatpush2.msra.mxu0 0.0
    %287 = vmatprep.subr.mxu0 0.0
    %288 = vmatpush2.msra.mxu0 0.0
    %289 = vmatprep.subr.mxu0 0.0
    %290 = vmatpush2.msra.mxu0 0.0
    %291 = vmatprep.mubr.f32.mxu0 0.0
    %292 = vmatmul.mubr.f32.gmra.mxu0 %v216
    %v293 = vpop.f32.mrf.mxu0
    %v294 = vadd.f32 0.0, %v293
    %v295 = vpop.f32.mrf.mxu0
    %v296 = vadd.f32 0.0, %v295
    %297 = vmatprep.mubr.f32.mxu0 0.0
    %298 = vmatmul.mubr.f32.gmra.mxu0 %v219
    %v299 = vpop.f32.mrf.mxu0
    %v300 = vadd.f32 0.0, %v299
    %v301 = vpop.f32.mrf.mxu0
    %v302 = vadd.f32 0.0, %v301
    %303 = vmatprep.mubr.f32.mxu0 0.0
    %304 = vmatmul.mubr.f32.gmra.mxu0 %v222
    %v305 = vpop.f32.mrf.mxu0
    %v306 = vadd.f32 0.0, %v305
    %v307 = vpop.f32.mrf.mxu0
    %v308 = vadd.f32 0.0, %v307
    %309 = vmatprep.mubr.f32.mxu0 0.0
    %310 = vmatmul.mubr.f32.gmra.mxu0 %v225
    %v311 = vpop.f32.mrf.mxu0
    %v312 = vadd.f32 0.0, %v311
    %v313 = vpop.f32.mrf.mxu0
    %v314 = vadd.f32 0.0, %v313
    %315 = vdwg.mxu0
    %316 = vmatprep.subr.mxu0 0.0
    %317 = vmatpush1.msra.mxu0 0.0
    %318 = vmatprep.subr.mxu0 0.0
    %319 = vmatpush1.msra.mxu0 0.0
    %320 = vmatprep.subr.mxu0 0.0
    %321 = vmatpush1.msra.mxu0 0.0
    %322 = vmatprep.subr.mxu0 0.0
    %323 = vmatpush1.msra.mxu0 0.0
    %324 = vmatprep.subr.mxu0 0.0
    %325 = vmatpush1.msra.mxu0 %v213
    %326 = vmatprep.subr.mxu0 0.0
    %327 = vmatpush1.msra.mxu0 %v210
    %328 = vmatprep.subr.mxu0 0.0
    %329 = vmatpush1.msra.mxu0 %v207
    %330 = vmatprep.subr.mxu0 0.0
    %331 = vmatpush1.msra.mxu0 %v204
    %332 = vmatprep.subr.mxu0 0.0
    %333 = vmatpush1.msra.mxu0 %v201
    %334 = vmatprep.subr.mxu0 0.0
    %335 = vmatpush1.msra.mxu0 %v198
    %336 = vmatprep.subr.mxu0 0.0
    %337 = vmatpush1.msra.mxu0 %v195
    %338 = vmatprep.subr.mxu0 0.0
    %339 = vmatpush1.msra.mxu0 %v192
    %340 = vmatprep.subr.mxu0 0.0
    %341 = vmatpush1.msra.mxu0 %v189
    %342 = vmatprep.subr.mxu0 0.0
    %343 = vmatpush1.msra.mxu0 %v186
    %344 = vmatprep.subr.mxu0 0.0
    %345 = vmatpush1.msra.mxu0 %v183
    %346 = vmatprep.subr.mxu0 0.0
    %347 = vmatpush1.msra.mxu0 %v180
    %348 = vmatprep.subr.mxu0 0.0
    %349 = vmatpush2.msra.mxu0 0.0
    %350 = vmatprep.subr.mxu0 0.0
    %351 = vmatpush2.msra.mxu0 0.0
    %352 = vmatprep.subr.mxu0 0.0
    %353 = vmatpush2.msra.mxu0 0.0
    %354 = vmatprep.subr.mxu0 0.0
    %355 = vmatpush2.msra.mxu0 0.0
    %356 = vmatprep.subr.mxu0 0.0
    %357 = vmatpush2.msra.mxu0 0.0
    %358 = vmatprep.subr.mxu0 0.0
    %359 = vmatpush2.msra.mxu0 0.0
    %360 = vmatprep.subr.mxu0 0.0
    %361 = vmatpush2.msra.mxu0 0.0
    %362 = vmatprep.subr.mxu0 0.0
    %363 = vmatpush2.msra.mxu0 0.0
    %364 = vmatprep.subr.mxu0 0.0
    %365 = vmatpush2.msra.mxu0 0.0
    %366 = vmatprep.subr.mxu0 0.0
    %367 = vmatpush2.msra.mxu0 0.0
    %368 = vmatprep.subr.mxu0 0.0
    %369 = vmatpush2.msra.mxu0 0.0
    %370 = vmatprep.subr.mxu0 0.0
    %371 = vmatpush2.msra.mxu0 0.0
    %372 = vmatprep.subr.mxu0 0.0
    %373 = vmatpush2.msra.mxu0 0.0
    %374 = vmatprep.subr.mxu0 0.0
    %375 = vmatpush2.msra.mxu0 0.0
    %376 = vmatprep.subr.mxu0 0.0
    %377 = vmatpush2.msra.mxu0 0.0
    %378 = vmatprep.subr.mxu0 0.0
    %379 = vmatpush2.msra.mxu0 0.0
    %380 = vmatprep.mubr.f32.mxu0 0.0
    %381 = vmatmul.mubr.f32.gmra.mxu0 %v216
    %v382 = vpop.f32.mrf.mxu0
    %v383 = vadd.f32 0.0, %v382
    %v384 = vpop.f32.mrf.mxu0
    %385 = vmatprep.mubr.f32.mxu0 0.0
    %386 = vmatmul.mubr.f32.gmra.mxu0 %v219
    %v387 = vpop.f32.mrf.mxu0
    %v388 = vadd.f32 0.0, %v387
    %v389 = vpop.f32.mrf.mxu0
    %390 = vmatprep.mubr.f32.mxu0 0.0
    %391 = vmatmul.mubr.f32.gmra.mxu0 %v222
    %v392 = vpop.f32.mrf.mxu0
    %v393 = vadd.f32 0.0, %v392
    %v394 = vpop.f32.mrf.mxu0
    %395 = vmatprep.mubr.f32.mxu0 0.0
    %396 = vmatmul.mubr.f32.gmra.mxu0 %v225
    %v397 = vpop.f32.mrf.mxu0
    %v398 = vadd.f32 0.0, %v397
    %v399 = vpop.f32.mrf.mxu0
    %400 = vdwg.mxu0
    %v402 = vsel %vm214, %v134, 0
    %v405 = vsel %vm214, %v135, 0
    %v408 = vsel %vm214, %v136, 0
    %v411 = vsel %vm214, %v137, 0
    %413 = vmatprep.subr.mxu0 0.0
    %414 = vmatpush1.msra.mxu0 0.0
    %415 = vmatprep.subr.mxu0 0.0
    %416 = vmatpush1.msra.mxu0 0.0
    %417 = vmatprep.subr.mxu0 0.0
    %418 = vmatpush1.msra.mxu0 0.0
    %419 = vmatprep.subr.mxu0 0.0
    %420 = vmatpush1.msra.mxu0 0.0
    %421 = vmatprep.subr.mxu0 %v172
    %422 = vmatpush1.msra.mxu0 %v171
    %423 = vmatprep.subr.mxu0 %v169
    %424 = vmatpush1.msra.mxu0 %v168
    %425 = vmatprep.subr.mxu0 %v166
    %426 = vmatpush1.msra.mxu0 %v165
    %427 = vmatprep.subr.mxu0 %v163
    %428 = vmatpush1.msra.mxu0 %v162
    %429 = vmatprep.subr.mxu0 %v160
    %430 = vmatpush1.msra.mxu0 %v159
    %431 = vmatprep.subr.mxu0 %v157
    %432 = vmatpush1.msra.mxu0 %v156
    %433 = vmatprep.subr.mxu0 %v154
    %434 = vmatpush1.msra.mxu0 %v153
    %435 = vmatprep.subr.mxu0 %v151
    %436 = vmatpush1.msra.mxu0 %v150
    %437 = vmatprep.subr.mxu0 %v148
    %438 = vmatpush1.msra.mxu0 %v147
    %439 = vmatprep.subr.mxu0 %v145
    %440 = vmatpush1.msra.mxu0 %v144
    %441 = vmatprep.subr.mxu0 %v142
    %442 = vmatpush1.msra.mxu0 %v141
    %443 = vmatprep.subr.mxu0 %v139
    %444 = vmatpush1.msra.mxu0 %v138
    %445 = vmatprep.subr.mxu0 0.0
    %446 = vmatpush2.msra.mxu0 0.0
    %447 = vmatprep.subr.mxu0 0.0
    %448 = vmatpush2.msra.mxu0 0.0
    %449 = vmatprep.subr.mxu0 0.0
    %450 = vmatpush2.msra.mxu0 0.0
    %451 = vmatprep.subr.mxu0 0.0
    %452 = vmatpush2.msra.mxu0 0.0
    %453 = vmatprep.subr.mxu0 0.0
    %454 = vmatpush2.msra.mxu0 0.0
    %455 = vmatprep.subr.mxu0 0.0
    %456 = vmatpush2.msra.mxu0 0.0
    %457 = vmatprep.subr.mxu0 0.0
    %458 = vmatpush2.msra.mxu0 0.0
    %459 = vmatprep.subr.mxu0 0.0
    %460 = vmatpush2.msra.mxu0 0.0
    %461 = vmatprep.subr.mxu0 0.0
    %462 = vmatpush2.msra.mxu0 0.0
    %463 = vmatprep.subr.mxu0 0.0
    %464 = vmatpush2.msra.mxu0 0.0
    %465 = vmatprep.subr.mxu0 0.0
    %466 = vmatpush2.msra.mxu0 0.0
    %467 = vmatprep.subr.mxu0 0.0
    %468 = vmatpush2.msra.mxu0 0.0
    %469 = vmatprep.subr.mxu0 0.0
    %470 = vmatpush2.msra.mxu0 0.0
    %471 = vmatprep.subr.mxu0 0.0
    %472 = vmatpush2.msra.mxu0 0.0
    %473 = vmatprep.subr.mxu0 0.0
    %474 = vmatpush2.msra.mxu0 0.0
    %475 = vmatprep.subr.mxu0 0.0
    %476 = vmatpush2.msra.mxu0 0.0
    %477 = vmatprep.mubr.f32.mxu0 0.0
    %478 = vmatmul.mubr.f32.gmra.mxu0 %v402
    %v479 = vpop.f32.mrf.mxu0
    %v480 = vadd.f32 %v294, %v479
    %v481 = vpop.f32.mrf.mxu0
    %v482 = vadd.f32 %v296, %v481
    %483 = vmatprep.mubr.f32.mxu0 0.0
    %484 = vmatmul.mubr.f32.gmra.mxu0 %v405
    %v485 = vpop.f32.mrf.mxu0
    %v486 = vadd.f32 %v300, %v485
    %v487 = vpop.f32.mrf.mxu0
    %v488 = vadd.f32 %v302, %v487
    %489 = vmatprep.mubr.f32.mxu0 0.0
    %490 = vmatmul.mubr.f32.gmra.mxu0 %v408
    %v491 = vpop.f32.mrf.mxu0
    %v492 = vadd.f32 %v306, %v491
    %v493 = vpop.f32.mrf.mxu0
    %v494 = vadd.f32 %v308, %v493
    %495 = vmatprep.mubr.f32.mxu0 0.0
    %496 = vmatmul.mubr.f32.gmra.mxu0 %v411
    %v497 = vpop.f32.mrf.mxu0
    %v498 = vadd.f32 %v312, %v497
    %v499 = vpop.f32.mrf.mxu0
    %v500 = vadd.f32 %v314, %v499
    %501 = vdwg.mxu0
    %502 = vmatprep.subr.mxu0 0.0
    %503 = vmatpush1.msra.mxu0 0.0
    %504 = vmatprep.subr.mxu0 0.0
    %505 = vmatpush1.msra.mxu0 0.0
    %506 = vmatprep.subr.mxu0 0.0
    %507 = vmatpush1.msra.mxu0 0.0
    %508 = vmatprep.subr.mxu0 0.0
    %509 = vmatpush1.msra.mxu0 0.0
    %510 = vmatprep.subr.mxu0 0.0
    %511 = vmatpush1.msra.mxu0 %v173
    %512 = vmatprep.subr.mxu0 0.0
    %513 = vmatpush1.msra.mxu0 %v170
    %514 = vmatprep.subr.mxu0 0.0
    %515 = vmatpush1.msra.mxu0 %v167
    %516 = vmatprep.subr.mxu0 0.0
    %517 = vmatpush1.msra.mxu0 %v164
    %518 = vmatprep.subr.mxu0 0.0
    %519 = vmatpush1.msra.mxu0 %v161
    %520 = vmatprep.subr.mxu0 0.0
    %521 = vmatpush1.msra.mxu0 %v158
    %522 = vmatprep.subr.mxu0 0.0
    %523 = vmatpush1.msra.mxu0 %v155
    %524 = vmatprep.subr.mxu0 0.0
    %525 = vmatpush1.msra.mxu0 %v152
    %526 = vmatprep.subr.mxu0 0.0
    %527 = vmatpush1.msra.mxu0 %v149
    %528 = vmatprep.subr.mxu0 0.0
    %529 = vmatpush1.msra.mxu0 %v146
    %530 = vmatprep.subr.mxu0 0.0
    %531 = vmatpush1.msra.mxu0 %v143
    %532 = vmatprep.subr.mxu0 0.0
    %533 = vmatpush1.msra.mxu0 %v140
    %534 = vmatprep.subr.mxu0 0.0
    %535 = vmatpush2.msra.mxu0 0.0
    %536 = vmatprep.subr.mxu0 0.0
    %537 = vmatpush2.msra.mxu0 0.0
    %538 = vmatprep.subr.mxu0 0.0
    %539 = vmatpush2.msra.mxu0 0.0
    %540 = vmatprep.subr.mxu0 0.0
    %541 = vmatpush2.msra.mxu0 0.0
    %542 = vmatprep.subr.mxu0 0.0
    %543 = vmatpush2.msra.mxu0 0.0
    %544 = vmatprep.subr.mxu0 0.0
    %545 = vmatpush2.msra.mxu0 0.0
    %546 = vmatprep.subr.mxu0 0.0
    %547 = vmatpush2.msra.mxu0 0.0
    %548 = vmatprep.subr.mxu0 0.0
    %549 = vmatpush2.msra.mxu0 0.0
    %550 = vmatprep.subr.mxu0 0.0
    %551 = vmatpush2.msra.mxu0 0.0
    %552 = vmatprep.subr.mxu0 0.0
    %553 = vmatpush2.msra.mxu0 0.0
    %554 = vmatprep.subr.mxu0 0.0
    %555 = vmatpush2.msra.mxu0 0.0
    %556 = vmatprep.subr.mxu0 0.0
    %557 = vmatpush2.msra.mxu0 0.0
    %558 = vmatprep.subr.mxu0 0.0
    %559 = vmatpush2.msra.mxu0 0.0
    %560 = vmatprep.subr.mxu0 0.0
    %561 = vmatpush2.msra.mxu0 0.0
    %562 = vmatprep.subr.mxu0 0.0
    %563 = vmatpush2.msra.mxu0 0.0
    %564 = vmatprep.subr.mxu0 0.0
    %565 = vmatpush2.msra.mxu0 0.0
    %566 = vmatprep.mubr.f32.mxu0 0.0
    %567 = vmatmul.mubr.f32.gmra.mxu0 %v402
    %v568 = vpop.f32.mrf.mxu0
    %v569 = vadd.f32 %v383, %v568
    %v570 = vpop.f32.mrf.mxu0
    %571 = vmatprep.mubr.f32.mxu0 0.0
    %572 = vmatmul.mubr.f32.gmra.mxu0 %v405
    %v573 = vpop.f32.mrf.mxu0
    %v574 = vadd.f32 %v388, %v573
    %v575 = vpop.f32.mrf.mxu0
    %576 = vmatprep.mubr.f32.mxu0 0.0
    %577 = vmatmul.mubr.f32.gmra.mxu0 %v408
    %v578 = vpop.f32.mrf.mxu0
    %v579 = vadd.f32 %v393, %v578
    %v580 = vpop.f32.mrf.mxu0
    %581 = vmatprep.mubr.f32.mxu0 0.0
    %582 = vmatmul.mubr.f32.gmra.mxu0 %v411
    %v583 = vpop.f32.mrf.mxu0
    %v584 = vadd.f32 %v398, %v583
    %v585 = vpop.f32.mrf.mxu0
    %586 = vdwg.mxu0
    %v587 = vld [vmem:[%s0 + $0x2] sm:$0xff]
    %v588 = vld [vmem:[%s0 + $0xa] sm:$0xff]
    %v589 = vld [vmem:[%s0 + $0x12] sm:$0xff]
    %v590 = vld [vmem:[%s0 + $0x1a] sm:$0xf]
    %v591 = vld [vmem:[%s1 + $0x240] sm:$0xff]
    %v592 = vld [vmem:[%s1 + $0x248] sm:$0xff]
    %v593 = vld [vmem:[%s1 + $0x250] sm:$0xff]
    %v594 = vld [vmem:[%s1 + $0x258] sm:$0xff]
    %v595 = vld [vmem:[%s1 + $0x260] sm:$0xff]
    %v596 = vld [vmem:[%s1 + $0x268] sm:$0xff]
    %v597 = vld [vmem:[%s1 + $0x270] sm:$0xff]
    %v598 = vld [vmem:[%s1 + $0x278] sm:$0xff]
    %v599 = vld [vmem:[%s1 + $0x280] sm:$0xff]
    %v600 = vld [vmem:[%s1 + $0x288] sm:$0xff]
    %v601 = vld [vmem:[%s1 + $0x290] sm:$0xff]
    %v602 = vld [vmem:[%s1 + $0x298] sm:$0xff]
    %v603 = vld [vmem:[%s1 + $0x2a0] sm:$0xff]
    %v604 = vld [vmem:[%s1 + $0x2a8] sm:$0xff]
    %v605 = vld [vmem:[%s1 + $0x2b0] sm:$0xff]
    %v606 = vld [vmem:[%s1 + $0x2b8] sm:$0xff]
    %v607 = vld [vmem:[%s1 + $0x2c0] sm:$0xff]
    %v608 = vld [vmem:[%s1 + $0x2c8] sm:$0xff]
    %v609 = vld [vmem:[%s1 + $0x2d0] sm:$0xff]
    %v610 = vld [vmem:[%s1 + $0x2d8] sm:$0xff]
    %v611 = vld [vmem:[%s1 + $0x2e0] sm:$0xff]
    %v612 = vld [vmem:[%s1 + $0x2e8] sm:$0xff]
    %v613 = vld [vmem:[%s1 + $0x2f0] sm:$0xff]
    %v614 = vld [vmem:[%s1 + $0x2f8] sm:$0xff]
    %v615 = vld [vmem:[%s1 + $0x300] sm:$0xff]
    %v616 = vld [vmem:[%s1 + $0x308] sm:$0xff]
    %v617 = vld [vmem:[%s1 + $0x310] sm:$0xff]
    %v618 = vld [vmem:[%s1 + $0x318] sm:$0xff]
    %v619 = vld [vmem:[%s1 + $0x320] sm:$0xff]
    %v620 = vld [vmem:[%s1 + $0x328] sm:$0xff]
    %v621 = vld [vmem:[%s1 + $0x330] sm:$0xff]
    %v622 = vld [vmem:[%s1 + $0x338] sm:$0xff]
    %v623 = vld [vmem:[%s1 + $0x340] sm:$0xff]
    %v624 = vld [vmem:[%s1 + $0x348] sm:$0xff]
    %v625 = vld [vmem:[%s1 + $0x350] sm:$0xff]
    %v626 = vld [vmem:[%s1 + $0x358] sm:$0xff]
    %v628 = vsel %vm214, %v587, 0
    %v631 = vsel %vm214, %v588, 0
    %v634 = vsel %vm214, %v589, 0
    %v637 = vsel %vm214, %v590, 0
    %639 = vmatprep.subr.mxu0 0.0
    %640 = vmatpush1.msra.mxu0 0.0
    %641 = vmatprep.subr.mxu0 0.0
    %642 = vmatpush1.msra.mxu0 0.0
    %643 = vmatprep.subr.mxu0 0.0
    %644 = vmatpush1.msra.mxu0 0.0
    %645 = vmatprep.subr.mxu0 0.0
    %646 = vmatpush1.msra.mxu0 0.0
    %647 = vmatprep.subr.mxu0 %v625
    %648 = vmatpush1.msra.mxu0 %v624
    %649 = vmatprep.subr.mxu0 %v622
    %650 = vmatpush1.msra.mxu0 %v621
    %651 = vmatprep.subr.mxu0 %v619
    %652 = vmatpush1.msra.mxu0 %v618
    %653 = vmatprep.subr.mxu0 %v616
    %654 = vmatpush1.msra.mxu0 %v615
    %655 = vmatprep.subr.mxu0 %v613
    %656 = vmatpush1.msra.mxu0 %v612
    %657 = vmatprep.subr.mxu0 %v610
    %658 = vmatpush1.msra.mxu0 %v609
    %659 = vmatprep.subr.mxu0 %v607
    %660 = vmatpush1.msra.mxu0 %v606
    %661 = vmatprep.subr.mxu0 %v604
    %662 = vmatpush1.msra.mxu0 %v603
    %663 = vmatprep.subr.mxu0 %v601
    %664 = vmatpush1.msra.mxu0 %v600
    %665 = vmatprep.subr.mxu0 %v598
    %666 = vmatpush1.msra.mxu0 %v597
    %667 = vmatprep.subr.mxu0 %v595
    %668 = vmatpush1.msra.mxu0 %v594
    %669 = vmatprep.subr.mxu0 %v592
    %670 = vmatpush1.msra.mxu0 %v591
    %671 = vmatprep.subr.mxu0 0.0
    %672 = vmatpush2.msra.mxu0 0.0
    %673 = vmatprep.subr.mxu0 0.0
    %674 = vmatpush2.msra.mxu0 0.0
    %675 = vmatprep.subr.mxu0 0.0
    %676 = vmatpush2.msra.mxu0 0.0
    %677 = vmatprep.subr.mxu0 0.0
    %678 = vmatpush2.msra.mxu0 0.0
    %679 = vmatprep.subr.mxu0 0.0
    %680 = vmatpush2.msra.mxu0 0.0
    %681 = vmatprep.subr.mxu0 0.0
    %682 = vmatpush2.msra.mxu0 0.0
    %683 = vmatprep.subr.mxu0 0.0
    %684 = vmatpush2.msra.mxu0 0.0
    %685 = vmatprep.subr.mxu0 0.0
    %686 = vmatpush2.msra.mxu0 0.0
    %687 = vmatprep.subr.mxu0 0.0
    %688 = vmatpush2.msra.mxu0 0.0
    %689 = vmatprep.subr.mxu0 0.0
    %690 = vmatpush2.msra.mxu0 0.0
    %691 = vmatprep.subr.mxu0 0.0
    %692 = vmatpush2.msra.mxu0 0.0
    %693 = vmatprep.subr.mxu0 0.0
    %694 = vmatpush2.msra.mxu0 0.0
    %695 = vmatprep.subr.mxu0 0.0
    %696 = vmatpush2.msra.mxu0 0.0
    %697 = vmatprep.subr.mxu0 0.0
    %698 = vmatpush2.msra.mxu0 0.0
    %699 = vmatprep.subr.mxu0 0.0
    %700 = vmatpush2.msra.mxu0 0.0
    %701 = vmatprep.subr.mxu0 0.0
    %702 = vmatpush2.msra.mxu0 0.0
    %703 = vmatprep.mubr.f32.mxu0 0.0
    %704 = vmatmul.mubr.f32.gmra.mxu0 %v628
    %v705 = vpop.f32.mrf.mxu0
    %v706 = vadd.f32 0.0, %v705
    %v707 = vpop.f32.mrf.mxu0
    %v708 = vadd.f32 0.0, %v707
    %709 = vmatprep.mubr.f32.mxu0 0.0
    %710 = vmatmul.mubr.f32.gmra.mxu0 %v631
    %v711 = vpop.f32.mrf.mxu0
    %v712 = vadd.f32 0.0, %v711
    %v713 = vpop.f32.mrf.mxu0
    %v714 = vadd.f32 0.0, %v713
    %715 = vmatprep.mubr.f32.mxu0 0.0
    %716 = vmatmul.mubr.f32.gmra.mxu0 %v634
    %v717 = vpop.f32.mrf.mxu0
    %v718 = vadd.f32 0.0, %v717
    %v719 = vpop.f32.mrf.mxu0
    %v720 = vadd.f32 0.0, %v719
    %721 = vmatprep.mubr.f32.mxu0 0.0
    %722 = vmatmul.mubr.f32.gmra.mxu0 %v637
    %v723 = vpop.f32.mrf.mxu0
    %v724 = vadd.f32 0.0, %v723
    %v725 = vpop.f32.mrf.mxu0
    %v726 = vadd.f32 0.0, %v725
    %727 = vdwg.mxu0
    %728 = vmatprep.subr.mxu0 0.0
    %729 = vmatpush1.msra.mxu0 0.0
    %730 = vmatprep.subr.mxu0 0.0
    %731 = vmatpush1.msra.mxu0 0.0
    %732 = vmatprep.subr.mxu0 0.0
    %733 = vmatpush1.msra.mxu0 0.0
    %734 = vmatprep.subr.mxu0 0.0
    %735 = vmatpush1.msra.mxu0 0.0
    %736 = vmatprep.subr.mxu0 0.0
    %737 = vmatpush1.msra.mxu0 %v626
    %738 = vmatprep.subr.mxu0 0.0
    %739 = vmatpush1.msra.mxu0 %v623
    %740 = vmatprep.subr.mxu0 0.0
    %741 = vmatpush1.msra.mxu0 %v620
    %742 = vmatprep.subr.mxu0 0.0
    %743 = vmatpush1.msra.mxu0 %v617
    %744 = vmatprep.subr.mxu0 0.0
    %745 = vmatpush1.msra.mxu0 %v614
    %746 = vmatprep.subr.mxu0 0.0
    %747 = vmatpush1.msra.mxu0 %v611
    %748 = vmatprep.subr.mxu0 0.0
    %749 = vmatpush1.msra.mxu0 %v608
    %750 = vmatprep.subr.mxu0 0.0
    %751 = vmatpush1.msra.mxu0 %v605
    %752 = vmatprep.subr.mxu0 0.0
    %753 = vmatpush1.msra.mxu0 %v602
    %754 = vmatprep.subr.mxu0 0.0
    %755 = vmatpush1.msra.mxu0 %v599
    %756 = vmatprep.subr.mxu0 0.0
    %757 = vmatpush1.msra.mxu0 %v596
    %758 = vmatprep.subr.mxu0 0.0
    %759 = vmatpush1.msra.mxu0 %v593
    %760 = vmatprep.subr.mxu0 0.0
    %761 = vmatpush2.msra.mxu0 0.0
    %762 = vmatprep.subr.mxu0 0.0
    %763 = vmatpush2.msra.mxu0 0.0
    %764 = vmatprep.subr.mxu0 0.0
    %765 = vmatpush2.msra.mxu0 0.0
    %766 = vmatprep.subr.mxu0 0.0
    %767 = vmatpush2.msra.mxu0 0.0
    %768 = vmatprep.subr.mxu0 0.0
    %769 = vmatpush2.msra.mxu0 0.0
    %770 = vmatprep.subr.mxu0 0.0
    %771 = vmatpush2.msra.mxu0 0.0
    %772 = vmatprep.subr.mxu0 0.0
    %773 = vmatpush2.msra.mxu0 0.0
    %774 = vmatprep.subr.mxu0 0.0
    %775 = vmatpush2.msra.mxu0 0.0
    %776 = vmatprep.subr.mxu0 0.0
    %777 = vmatpush2.msra.mxu0 0.0
    %778 = vmatprep.subr.mxu0 0.0
    %779 = vmatpush2.msra.mxu0 0.0
    %780 = vmatprep.subr.mxu0 0.0
    %781 = vmatpush2.msra.mxu0 0.0
    %782 = vmatprep.subr.mxu0 0.0
    %783 = vmatpush2.msra.mxu0 0.0
    %784 = vmatprep.subr.mxu0 0.0
    %785 = vmatpush2.msra.mxu0 0.0
    %786 = vmatprep.subr.mxu0 0.0
    %787 = vmatpush2.msra.mxu0 0.0
    %788 = vmatprep.subr.mxu0 0.0
    %789 = vmatpush2.msra.mxu0 0.0
    %790 = vmatprep.subr.mxu0 0.0
    %791 = vmatpush2.msra.mxu0 0.0
    %792 = vmatprep.mubr.f32.mxu0 0.0
    %793 = vmatmul.mubr.f32.gmra.mxu0 %v628
    %v794 = vpop.f32.mrf.mxu0
    %v795 = vadd.f32 0.0, %v794
    %v796 = vpop.f32.mrf.mxu0
    %797 = vmatprep.mubr.f32.mxu0 0.0
    %798 = vmatmul.mubr.f32.gmra.mxu0 %v631
    %v799 = vpop.f32.mrf.mxu0
    %v800 = vadd.f32 0.0, %v799
    %v801 = vpop.f32.mrf.mxu0
    %802 = vmatprep.mubr.f32.mxu0 0.0
    %803 = vmatmul.mubr.f32.gmra.mxu0 %v634
    %v804 = vpop.f32.mrf.mxu0
    %v805 = vadd.f32 0.0, %v804
    %v806 = vpop.f32.mrf.mxu0
    %807 = vmatprep.mubr.f32.mxu0 0.0
    %808 = vmatmul.mubr.f32.gmra.mxu0 %v637
    %v809 = vpop.f32.mrf.mxu0
    %v810 = vadd.f32 0.0, %v809
    %v811 = vpop.f32.mrf.mxu0
    %812 = vdwg.mxu0
    %v813 = vadd.f32 %v480, %v706
    %v814 = vadd.f32 %v482, %v708
    %v815 = vadd.f32 %v569, %v795
    %v816 = vadd.f32 %v486, %v712
    %v817 = vadd.f32 %v488, %v714
    %v818 = vadd.f32 %v574, %v800
    %v819 = vadd.f32 %v492, %v718
    %v820 = vadd.f32 %v494, %v720
    %v821 = vadd.f32 %v579, %v805
    %v822 = vadd.f32 %v498, %v724
    %v823 = vadd.f32 %v500, %v726
    %v824 = vadd.f32 %v584, %v810
    %v825 = vld [vmem:[%s0 + $0x3] sm:$0xff]
    %v826 = vld [vmem:[%s0 + $0xb] sm:$0xff]
    %v827 = vld [vmem:[%s0 + $0x13] sm:$0xff]
    %v828 = vld [vmem:[%s0 + $0x1b] sm:$0xf]
    %v829 = vld [vmem:[%s1 + $0x360] sm:$0xff]
    %v830 = vld [vmem:[%s1 + $0x368] sm:$0xff]
    %v831 = vld [vmem:[%s1 + $0x370] sm:$0xff]
    %v832 = vld [vmem:[%s1 + $0x378] sm:$0xff]
    %v833 = vld [vmem:[%s1 + $0x380] sm:$0xff]
    %v834 = vld [vmem:[%s1 + $0x388] sm:$0xff]
    %v835 = vld [vmem:[%s1 + $0x390] sm:$0xff]
    %v836 = vld [vmem:[%s1 + $0x398] sm:$0xff]
    %v837 = vld [vmem:[%s1 + $0x3a0] sm:$0xff]
    %v838 = vld [vmem:[%s1 + $0x3a8] sm:$0xff]
    %v839 = vld [vmem:[%s1 + $0x3b0] sm:$0xff]
    %v840 = vld [vmem:[%s1 + $0x3b8] sm:$0xff]
    %v841 = vld [vmem:[%s1 + $0x3c0] sm:$0xff]
    %v842 = vld [vmem:[%s1 + $0x3c8] sm:$0xff]
    %v843 = vld [vmem:[%s1 + $0x3d0] sm:$0xff]
    %v844 = vld [vmem:[%s1 + $0x3d8] sm:$0xff]
    %v845 = vld [vmem:[%s1 + $0x3e0] sm:$0xff]
    %v846 = vld [vmem:[%s1 + $0x3e8] sm:$0xff]
    %v847 = vld [vmem:[%s1 + $0x3f0] sm:$0xff]
    %v848 = vld [vmem:[%s1 + $0x3f8] sm:$0xff]
    %v849 = vld [vmem:[%s1 + $0x400] sm:$0xff]
    %v850 = vld [vmem:[%s1 + $0x408] sm:$0xff]
    %v851 = vld [vmem:[%s1 + $0x410] sm:$0xff]
    %v852 = vld [vmem:[%s1 + $0x418] sm:$0xff]
    %v853 = vld [vmem:[%s1 + $0x420] sm:$0xff]
    %v854 = vld [vmem:[%s1 + $0x428] sm:$0xff]
    %v855 = vld [vmem:[%s1 + $0x430] sm:$0xff]
    %v856 = vld [vmem:[%s1 + $0x438] sm:$0xff]
    %v857 = vld [vmem:[%s1 + $0x440] sm:$0xff]
    %v858 = vld [vmem:[%s1 + $0x448] sm:$0xff]
    %v859 = vld [vmem:[%s1 + $0x450] sm:$0xff]
    %v860 = vld [vmem:[%s1 + $0x458] sm:$0xff]
    %v861 = vld [vmem:[%s1 + $0x460] sm:$0xff]
    %v862 = vld [vmem:[%s1 + $0x468] sm:$0xff]
    %v863 = vld [vmem:[%s1 + $0x470] sm:$0xff]
    %v864 = vld [vmem:[%s1 + $0x478] sm:$0xff]
    %v866 = vsel %vm214, %v825, 0
    %v869 = vsel %vm214, %v826, 0
    %v872 = vsel %vm214, %v827, 0
    %v875 = vsel %vm214, %v828, 0
    %877 = vmatprep.subr.mxu0 0.0
    %878 = vmatpush1.msra.mxu0 0.0
    %879 = vmatprep.subr.mxu0 0.0
    %880 = vmatpush1.msra.mxu0 0.0
    %881 = vmatprep.subr.mxu0 0.0
    %882 = vmatpush1.msra.mxu0 0.0
    %883 = vmatprep.subr.mxu0 0.0
    %884 = vmatpush1.msra.mxu0 0.0
    %885 = vmatprep.subr.mxu0 %v863
    %886 = vmatpush1.msra.mxu0 %v862
    %887 = vmatprep.subr.mxu0 %v860
    %888 = vmatpush1.msra.mxu0 %v859
    %889 = vmatprep.subr.mxu0 %v857
    %890 = vmatpush1.msra.mxu0 %v856
    %891 = vmatprep.subr.mxu0 %v854
    %892 = vmatpush1.msra.mxu0 %v853
    %893 = vmatprep.subr.mxu0 %v851
    %894 = vmatpush1.msra.mxu0 %v850
    %895 = vmatprep.subr.mxu0 %v848
    %896 = vmatpush1.msra.mxu0 %v847
    %897 = vmatprep.subr.mxu0 %v845
    %898 = vmatpush1.msra.mxu0 %v844
    %899 = vmatprep.subr.mxu0 %v842
    %900 = vmatpush1.msra.mxu0 %v841
    %901 = vmatprep.subr.mxu0 %v839
    %902 = vmatpush1.msra.mxu0 %v838
    %903 = vmatprep.subr.mxu0 %v836
    %904 = vmatpush1.msra.mxu0 %v835
    %905 = vmatprep.subr.mxu0 %v833
    %906 = vmatpush1.msra.mxu0 %v832
    %907 = vmatprep.subr.mxu0 %v830
    %908 = vmatpush1.msra.mxu0 %v829
    %909 = vmatprep.subr.mxu0 0.0
    %910 = vmatpush2.msra.mxu0 0.0
    %911 = vmatprep.subr.mxu0 0.0
    %912 = vmatpush2.msra.mxu0 0.0
    %913 = vmatprep.subr.mxu0 0.0
    %914 = vmatpush2.msra.mxu0 0.0
    %915 = vmatprep.subr.mxu0 0.0
    %916 = vmatpush2.msra.mxu0 0.0
    %917 = vmatprep.subr.mxu0 0.0
    %918 = vmatpush2.msra.mxu0 0.0
    %919 = vmatprep.subr.mxu0 0.0
    %920 = vmatpush2.msra.mxu0 0.0
    %921 = vmatprep.subr.mxu0 0.0
    %922 = vmatpush2.msra.mxu0 0.0
    %923 = vmatprep.subr.mxu0 0.0
    %924 = vmatpush2.msra.mxu0 0.0
    %925 = vmatprep.subr.mxu0 0.0
    %926 = vmatpush2.msra.mxu0 0.0
    %927 = vmatprep.subr.mxu0 0.0
    %928 = vmatpush2.msra.mxu0 0.0
    %929 = vmatprep.subr.mxu0 0.0
    %930 = vmatpush2.msra.mxu0 0.0
    %931 = vmatprep.subr.mxu0 0.0
    %932 = vmatpush2.msra.mxu0 0.0
    %933 = vmatprep.subr.mxu0 0.0
    %934 = vmatpush2.msra.mxu0 0.0
    %935 = vmatprep.subr.mxu0 0.0
    %936 = vmatpush2.msra.mxu0 0.0
    %937 = vmatprep.subr.mxu0 0.0
    %938 = vmatpush2.msra.mxu0 0.0
    %939 = vmatprep.subr.mxu0 0.0
    %940 = vmatpush2.msra.mxu0 0.0
    %941 = vmatprep.mubr.f32.mxu0 0.0
    %942 = vmatmul.mubr.f32.gmra.mxu0 %v866
    %v943 = vpop.f32.mrf.mxu0
    %v944 = vadd.f32 0.0, %v943
    %v945 = vpop.f32.mrf.mxu0
    %v946 = vadd.f32 0.0, %v945
    %947 = vmatprep.mubr.f32.mxu0 0.0
    %948 = vmatmul.mubr.f32.gmra.mxu0 %v869
    %v949 = vpop.f32.mrf.mxu0
    %v950 = vadd.f32 0.0, %v949
    %v951 = vpop.f32.mrf.mxu0
    %v952 = vadd.f32 0.0, %v951
    %953 = vmatprep.mubr.f32.mxu0 0.0
    %954 = vmatmul.mubr.f32.gmra.mxu0 %v872
    %v955 = vpop.f32.mrf.mxu0
    %v956 = vadd.f32 0.0, %v955
    %v957 = vpop.f32.mrf.mxu0
    %v958 = vadd.f32 0.0, %v957
    %959 = vmatprep.mubr.f32.mxu0 0.0
    %960 = vmatmul.mubr.f32.gmra.mxu0 %v875
    %v961 = vpop.f32.mrf.mxu0
    %v962 = vadd.f32 0.0, %v961
    %v963 = vpop.f32.mrf.mxu0
    %v964 = vadd.f32 0.0, %v963
    %965 = vdwg.mxu0
    %966 = vmatprep.subr.mxu0 0.0
    %967 = vmatpush1.msra.mxu0 0.0
    %968 = vmatprep.subr.mxu0 0.0
    %969 = vmatpush1.msra.mxu0 0.0
    %970 = vmatprep.subr.mxu0 0.0
    %971 = vmatpush1.msra.mxu0 0.0
    %972 = vmatprep.subr.mxu0 0.0
    %973 = vmatpush1.msra.mxu0 0.0
    %974 = vmatprep.subr.mxu0 0.0
    %975 = vmatpush1.msra.mxu0 %v864
    %976 = vmatprep.subr.mxu0 0.0
    %977 = vmatpush1.msra.mxu0 %v861
    %978 = vmatprep.subr.mxu0 0.0
    %979 = vmatpush1.msra.mxu0 %v858
    %980 = vmatprep.subr.mxu0 0.0
    %981 = vmatpush1.msra.mxu0 %v855
    %982 = vmatprep.subr.mxu0 0.0
    %983 = vmatpush1.msra.mxu0 %v852
    %984 = vmatprep.subr.mxu0 0.0
    %985 = vmatpush1.msra.mxu0 %v849
    %986 = vmatprep.subr.mxu0 0.0
    %987 = vmatpush1.msra.mxu0 %v846
    %988 = vmatprep.subr.mxu0 0.0
    %989 = vmatpush1.msra.mxu0 %v843
    %990 = vmatprep.subr.mxu0 0.0
    %991 = vmatpush1.msra.mxu0 %v840
    %992 = vmatprep.subr.mxu0 0.0
    %993 = vmatpush1.msra.mxu0 %v837
    %994 = vmatprep.subr.mxu0 0.0
    %995 = vmatpush1.msra.mxu0 %v834
    %996 = vmatprep.subr.mxu0 0.0
    %997 = vmatpush1.msra.mxu0 %v831
    %998 = vmatprep.subr.mxu0 0.0
    %999 = vmatpush2.msra.mxu0 0.0
    %1000 = vmatprep.subr.mxu0 0.0
    %1001 = vmatpush2.msra.mxu0 0.0
    %1002 = vmatprep.subr.mxu0 0.0
    %1003 = vmatpush2.msra.mxu0 0.0
    %1004 = vmatprep.subr.mxu0 0.0
    %1005 = vmatpush2.msra.mxu0 0.0
    %1006 = vmatprep.subr.mxu0 0.0
    %1007 = vmatpush2.msra.mxu0 0.0
    %1008 = vmatprep.subr.mxu0 0.0
    %1009 = vmatpush2.msra.mxu0 0.0
    %1010 = vmatprep.subr.mxu0 0.0
    %1011 = vmatpush2.msra.mxu0 0.0
    %1012 = vmatprep.subr.mxu0 0.0
    %1013 = vmatpush2.msra.mxu0 0.0
    %1014 = vmatprep.subr.mxu0 0.0
    %1015 = vmatpush2.msra.mxu0 0.0
    %1016 = vmatprep.subr.mxu0 0.0
    %1017 = vmatpush2.msra.mxu0 0.0
    %1018 = vmatprep.subr.mxu0 0.0
    %1019 = vmatpush2.msra.mxu0 0.0
    %1020 = vmatprep.subr.mxu0 0.0
    %1021 = vmatpush2.msra.mxu0 0.0
    %1022 = vmatprep.subr.mxu0 0.0
    %1023 = vmatpush2.msra.mxu0 0.0
    %1024 = vmatprep.subr.mxu0 0.0
    %1025 = vmatpush2.msra.mxu0 0.0
    %1026 = vmatprep.subr.mxu0 0.0
    %1027 = vmatpush2.msra.mxu0 0.0
    %1028 = vmatprep.subr.mxu0 0.0
    %1029 = vmatpush2.msra.mxu0 0.0
    %1030 = vmatprep.mubr.f32.mxu0 0.0
    %1031 = vmatmul.mubr.f32.gmra.mxu0 %v866
    %v1032 = vpop.f32.mrf.mxu0
    %v1033 = vadd.f32 0.0, %v1032
    %v1034 = vpop.f32.mrf.mxu0
    %1035 = vmatprep.mubr.f32.mxu0 0.0
    %1036 = vmatmul.mubr.f32.gmra.mxu0 %v869
    %v1037 = vpop.f32.mrf.mxu0
    %v1038 = vadd.f32 0.0, %v1037
    %v1039 = vpop.f32.mrf.mxu0
    %1040 = vmatprep.mubr.f32.mxu0 0.0
    %1041 = vmatmul.mubr.f32.gmra.mxu0 %v872
    %v1042 = vpop.f32.mrf.mxu0
    %v1043 = vadd.f32 0.0, %v1042
    %v1044 = vpop.f32.mrf.mxu0
    %1045 = vmatprep.mubr.f32.mxu0 0.0
    %1046 = vmatmul.mubr.f32.gmra.mxu0 %v875
    %v1047 = vpop.f32.mrf.mxu0
    %v1048 = vadd.f32 0.0, %v1047
    %v1049 = vpop.f32.mrf.mxu0
    %1050 = vdwg.mxu0
    %v1051 = vadd.f32 %v813, %v944
    %v1052 = vadd.f32 %v814, %v946
    %v1053 = vadd.f32 %v815, %v1033
    %v1054 = vadd.f32 %v816, %v950
    %v1055 = vadd.f32 %v817, %v952
    %v1056 = vadd.f32 %v818, %v1038
    %v1057 = vadd.f32 %v819, %v956
    %v1058 = vadd.f32 %v820, %v958
    %v1059 = vadd.f32 %v821, %v1043
    %v1060 = vadd.f32 %v822, %v962
    %v1061 = vadd.f32 %v823, %v964
    %v1062 = vadd.f32 %v824, %v1048
    %v1063 = vld [vmem:[%s0 + $0x4] sm:$0xff]
    %v1064 = vld [vmem:[%s0 + $0xc] sm:$0xff]
    %v1065 = vld [vmem:[%s0 + $0x14] sm:$0xff]
    %v1066 = vld [vmem:[%s0 + $0x1c] sm:$0xf]
    %v1067 = vld [vmem:[%s1 + $0x480] sm:$0xff]
    %v1068 = vld [vmem:[%s1 + $0x488] sm:$0xff]
    %v1069 = vld [vmem:[%s1 + $0x490] sm:$0xff]
    %v1070 = vld [vmem:[%s1 + $0x498] sm:$0xff]
    %v1071 = vld [vmem:[%s1 + $0x4a0] sm:$0xff]
    %v1072 = vld [vmem:[%s1 + $0x4a8] sm:$0xff]
    %v1073 = vld [vmem:[%s1 + $0x4b0] sm:$0xff]
    %v1074 = vld [vmem:[%s1 + $0x4b8] sm:$0xff]
    %v1075 = vld [vmem:[%s1 + $0x4c0] sm:$0xff]
    %v1076 = vld [vmem:[%s1 + $0x4c8] sm:$0xff]
    %v1077 = vld [vmem:[%s1 + $0x4d0] sm:$0xff]
    %v1078 = vld [vmem:[%s1 + $0x4d8] sm:$0xff]
    %v1079 = vld [vmem:[%s1 + $0x4e0] sm:$0xff]
    %v1080 = vld [vmem:[%s1 + $0x4e8] sm:$0xff]
    %v1081 = vld [vmem:[%s1 + $0x4f0] sm:$0xff]
    %v1082 = vld [vmem:[%s1 + $0x4f8] sm:$0xff]
    %v1083 = vld [vmem:[%s1 + $0x500] sm:$0xff]
    %v1084 = vld [vmem:[%s1 + $0x508] sm:$0xff]
    %v1085 = vld [vmem:[%s1 + $0x510] sm:$0xff]
    %v1086 = vld [vmem:[%s1 + $0x518] sm:$0xff]
    %v1087 = vld [vmem:[%s1 + $0x520] sm:$0xff]
    %v1088 = vld [vmem:[%s1 + $0x528] sm:$0xff]
    %v1089 = vld [vmem:[%s1 + $0x530] sm:$0xff]
    %v1090 = vld [vmem:[%s1 + $0x538] sm:$0xff]
    %v1091 = vld [vmem:[%s1 + $0x540] sm:$0xff]
    %v1092 = vld [vmem:[%s1 + $0x548] sm:$0xff]
    %v1093 = vld [vmem:[%s1 + $0x550] sm:$0xff]
    %v1094 = vld [vmem:[%s1 + $0x558] sm:$0xff]
    %v1095 = vld [vmem:[%s1 + $0x560] sm:$0xff]
    %v1096 = vld [vmem:[%s1 + $0x568] sm:$0xff]
    %v1097 = vld [vmem:[%s1 + $0x570] sm:$0xff]
    %v1098 = vld [vmem:[%s1 + $0x578] sm:$0xff]
    %v1099 = vld [vmem:[%s1 + $0x580] sm:$0xff]
    %v1100 = vld [vmem:[%s1 + $0x588] sm:$0xff]
    %v1101 = vld [vmem:[%s1 + $0x590] sm:$0xff]
    %v1102 = vld [vmem:[%s1 + $0x598] sm:$0xff]
    %v1104 = vsel %vm214, %v1063, 0
    %v1107 = vsel %vm214, %v1064, 0
    %v1110 = vsel %vm214, %v1065, 0
    %v1113 = vsel %vm214, %v1066, 0
    %1115 = vmatprep.subr.mxu0 0.0
    %1116 = vmatpush1.msra.mxu0 0.0
    %1117 = vmatprep.subr.mxu0 0.0
    %1118 = vmatpush1.msra.mxu0 0.0
    %1119 = vmatprep.subr.mxu0 0.0
    %1120 = vmatpush1.msra.mxu0 0.0
    %1121 = vmatprep.subr.mxu0 0.0
    %1122 = vmatpush1.msra.mxu0 0.0
    %1123 = vmatprep.subr.mxu0 %v1101
    %1124 = vmatpush1.msra.mxu0 %v1100
    %1125 = vmatprep.subr.mxu0 %v1098
    %1126 = vmatpush1.msra.mxu0 %v1097
    %1127 = vmatprep.subr.mxu0 %v1095
    %1128 = vmatpush1.msra.mxu0 %v1094
    %1129 = vmatprep.subr.mxu0 %v1092
    %1130 = vmatpush1.msra.mxu0 %v1091
    %1131 = vmatprep.subr.mxu0 %v1089
    %1132 = vmatpush1.msra.mxu0 %v1088
    %1133 = vmatprep.subr.mxu0 %v1086
    %1134 = vmatpush1.msra.mxu0 %v1085
    %1135 = vmatprep.subr.mxu0 %v1083
    %1136 = vmatpush1.msra.mxu0 %v1082
    %1137 = vmatprep.subr.mxu0 %v1080
    %1138 = vmatpush1.msra.mxu0 %v1079
    %1139 = vmatprep.subr.mxu0 %v1077
    %1140 = vmatpush1.msra.mxu0 %v1076
    %1141 = vmatprep.subr.mxu0 %v1074
    %1142 = vmatpush1.msra.mxu0 %v1073
    %1143 = vmatprep.subr.mxu0 %v1071
    %1144 = vmatpush1.msra.mxu0 %v1070
    %1145 = vmatprep.subr.mxu0 %v1068
    %1146 = vmatpush1.msra.mxu0 %v1067
    %1147 = vmatprep.subr.mxu0 0.0
    %1148 = vmatpush2.msra.mxu0 0.0
    %1149 = vmatprep.subr.mxu0 0.0
    %1150 = vmatpush2.msra.mxu0 0.0
    %1151 = vmatprep.subr.mxu0 0.0
    %1152 = vmatpush2.msra.mxu0 0.0
    %1153 = vmatprep.subr.mxu0 0.0
    %1154 = vmatpush2.msra.mxu0 0.0
    %1155 = vmatprep.subr.mxu0 0.0
    %1156 = vmatpush2.msra.mxu0 0.0
    %1157 = vmatprep.subr.mxu0 0.0
    %1158 = vmatpush2.msra.mxu0 0.0
    %1159 = vmatprep.subr.mxu0 0.0
    %1160 = vmatpush2.msra.mxu0 0.0
    %1161 = vmatprep.subr.mxu0 0.0
    %1162 = vmatpush2.msra.mxu0 0.0
    %1163 = vmatprep.subr.mxu0 0.0
    %1164 = vmatpush2.msra.mxu0 0.0
    %1165 = vmatprep.subr.mxu0 0.0
    %1166 = vmatpush2.msra.mxu0 0.0
    %1167 = vmatprep.subr.mxu0 0.0
    %1168 = vmatpush2.msra.mxu0 0.0
    %1169 = vmatprep.subr.mxu0 0.0
    %1170 = vmatpush2.msra.mxu0 0.0
    %1171 = vmatprep.subr.mxu0 0.0
    %1172 = vmatpush2.msra.mxu0 0.0
    %1173 = vmatprep.subr.mxu0 0.0
    %1174 = vmatpush2.msra.mxu0 0.0
    %1175 = vmatprep.subr.mxu0 0.0
    %1176 = vmatpush2.msra.mxu0 0.0
    %1177 = vmatprep.subr.mxu0 0.0
    %1178 = vmatpush2.msra.mxu0 0.0
    %1179 = vmatprep.mubr.f32.mxu0 0.0
    %1180 = vmatmul.mubr.f32.gmra.mxu0 %v1104
    %v1181 = vpop.f32.mrf.mxu0
    %v1182 = vadd.f32 0.0, %v1181
    %v1183 = vpop.f32.mrf.mxu0
    %v1184 = vadd.f32 0.0, %v1183
    %1185 = vmatprep.mubr.f32.mxu0 0.0
    %1186 = vmatmul.mubr.f32.gmra.mxu0 %v1107
    %v1187 = vpop.f32.mrf.mxu0
    %v1188 = vadd.f32 0.0, %v1187
    %v1189 = vpop.f32.mrf.mxu0
    %v1190 = vadd.f32 0.0, %v1189
    %1191 = vmatprep.mubr.f32.mxu0 0.0
    %1192 = vmatmul.mubr.f32.gmra.mxu0 %v1110
    %v1193 = vpop.f32.mrf.mxu0
    %v1194 = vadd.f32 0.0, %v1193
    %v1195 = vpop.f32.mrf.mxu0
    %v1196 = vadd.f32 0.0, %v1195
    %1197 = vmatprep.mubr.f32.mxu0 0.0
    %1198 = vmatmul.mubr.f32.gmra.mxu0 %v1113
    %v1199 = vpop.f32.mrf.mxu0
    %v1200 = vadd.f32 0.0, %v1199
    %v1201 = vpop.f32.mrf.mxu0
    %v1202 = vadd.f32 0.0, %v1201
    %1203 = vdwg.mxu0
    %1204 = vmatprep.subr.mxu0 0.0
    %1205 = vmatpush1.msra.mxu0 0.0
    %1206 = vmatprep.subr.mxu0 0.0
    %1207 = vmatpush1.msra.mxu0 0.0
    %1208 = vmatprep.subr.mxu0 0.0
    %1209 = vmatpush1.msra.mxu0 0.0
    %1210 = vmatprep.subr.mxu0 0.0
    %1211 = vmatpush1.msra.mxu0 0.0
    %1212 = vmatprep.subr.mxu0 0.0
    %1213 = vmatpush1.msra.mxu0 %v1102
    %1214 = vmatprep.subr.mxu0 0.0
    %1215 = vmatpush1.msra.mxu0 %v1099
    %1216 = vmatprep.subr.mxu0 0.0
    %1217 = vmatpush1.msra.mxu0 %v1096
    %1218 = vmatprep.subr.mxu0 0.0
    %1219 = vmatpush1.msra.mxu0 %v1093
    %1220 = vmatprep.subr.mxu0 0.0
    %1221 = vmatpush1.msra.mxu0 %v1090
    %1222 = vmatprep.subr.mxu0 0.0
    %1223 = vmatpush1.msra.mxu0 %v1087
    %1224 = vmatprep.subr.mxu0 0.0
    %1225 = vmatpush1.msra.mxu0 %v1084
    %1226 = vmatprep.subr.mxu0 0.0
    %1227 = vmatpush1.msra.mxu0 %v1081
    %1228 = vmatprep.subr.mxu0 0.0
    %1229 = vmatpush1.msra.mxu0 %v1078
    %1230 = vmatprep.subr.mxu0 0.0
    %1231 = vmatpush1.msra.mxu0 %v1075
    %1232 = vmatprep.subr.mxu0 0.0
    %1233 = vmatpush1.msra.mxu0 %v1072
    %1234 = vmatprep.subr.mxu0 0.0
    %1235 = vmatpush1.msra.mxu0 %v1069
    %1236 = vmatprep.subr.mxu0 0.0
    %1237 = vmatpush2.msra.mxu0 0.0
    %1238 = vmatprep.subr.mxu0 0.0
    %1239 = vmatpush2.msra.mxu0 0.0
    %1240 = vmatprep.subr.mxu0 0.0
    %1241 = vmatpush2.msra.mxu0 0.0
    %1242 = vmatprep.subr.mxu0 0.0
    %1243 = vmatpush2.msra.mxu0 0.0
    %1244 = vmatprep.subr.mxu0 0.0
    %1245 = vmatpush2.msra.mxu0 0.0
    %1246 = vmatprep.subr.mxu0 0.0
    %1247 = vmatpush2.msra.mxu0 0.0
    %1248 = vmatprep.subr.mxu0 0.0
    %1249 = vmatpush2.msra.mxu0 0.0
    %1250 = vmatprep.subr.mxu0 0.0
    %1251 = vmatpush2.msra.mxu0 0.0
    %1252 = vmatprep.subr.mxu0 0.0
    %1253 = vmatpush2.msra.mxu0 0.0
    %1254 = vmatprep.subr.mxu0 0.0
    %1255 = vmatpush2.msra.mxu0 0.0
    %1256 = vmatprep.subr.mxu0 0.0
    %1257 = vmatpush2.msra.mxu0 0.0
    %1258 = vmatprep.subr.mxu0 0.0
    %1259 = vmatpush2.msra.mxu0 0.0
    %1260 = vmatprep.subr.mxu0 0.0
    %1261 = vmatpush2.msra.mxu0 0.0
    %1262 = vmatprep.subr.mxu0 0.0
    %1263 = vmatpush2.msra.mxu0 0.0
    %1264 = vmatprep.subr.mxu0 0.0
    %1265 = vmatpush2.msra.mxu0 0.0
    %1266 = vmatprep.subr.mxu0 0.0
    %1267 = vmatpush2.msra.mxu0 0.0
    %1268 = vmatprep.mubr.f32.mxu0 0.0
    %1269 = vmatmul.mubr.f32.gmra.mxu0 %v1104
    %v1270 = vpop.f32.mrf.mxu0
    %v1271 = vadd.f32 0.0, %v1270
    %v1272 = vpop.f32.mrf.mxu0
    %1273 = vmatprep.mubr.f32.mxu0 0.0
    %1274 = vmatmul.mubr.f32.gmra.mxu0 %v1107
    %v1275 = vpop.f32.mrf.mxu0
    %v1276 = vadd.f32 0.0, %v1275
    %v1277 = vpop.f32.mrf.mxu0
    %1278 = vmatprep.mubr.f32.mxu0 0.0
    %1279 = vmatmul.mubr.f32.gmra.mxu0 %v1110
    %v1280 = vpop.f32.mrf.mxu0
    %v1281 = vadd.f32 0.0, %v1280
    %v1282 = vpop.f32.mrf.mxu0
    %1283 = vmatprep.mubr.f32.mxu0 0.0
    %1284 = vmatmul.mubr.f32.gmra.mxu0 %v1113
    %v1285 = vpop.f32.mrf.mxu0
    %v1286 = vadd.f32 0.0, %v1285
    %v1287 = vpop.f32.mrf.mxu0
    %1288 = vdwg.mxu0
    %v1289 = vadd.f32 %v1051, %v1182
    %v1290 = vadd.f32 %v1052, %v1184
    %v1291 = vadd.f32 %v1053, %v1271
    %v1292 = vadd.f32 %v1054, %v1188
    %v1293 = vadd.f32 %v1055, %v1190
    %v1294 = vadd.f32 %v1056, %v1276
    %v1295 = vadd.f32 %v1057, %v1194
    %v1296 = vadd.f32 %v1058, %v1196
    %v1297 = vadd.f32 %v1059, %v1281
    %v1298 = vadd.f32 %v1060, %v1200
    %v1299 = vadd.f32 %v1061, %v1202
    %v1300 = vadd.f32 %v1062, %v1286
    %v1301 = vadd.f32 %v1289, %v24
    %v1302 = vadd.f32 %v1290, %v28
    %v1303 = vadd.f32 %v1291, %v32
    %v1304 = vadd.f32 %v1292, %v24
    %v1305 = vadd.f32 %v1293, %v28
    %v1306 = vadd.f32 %v1294, %v32
    %v1307 = vadd.f32 %v1295, %v24
    %v1308 = vadd.f32 %v1296, %v28
    %v1309 = vadd.f32 %v1297, %v32
    %v1310 = vadd.f32 %v1298, %v24
    %v1311 = vadd.f32 %v1299, %v28
    %v1312 = vadd.f32 %v1300, %v32
    %v1313 = vmax.f32 %v1301, 0.0
    %v1314 = vmax.f32 %v1302, 0.0
    %v1315 = vmax.f32 %v1303, 0.0
    %v1316 = vmax.f32 %v1304, 0.0
    %v1317 = vmax.f32 %v1305, 0.0
    %v1318 = vmax.f32 %v1306, 0.0
    %v1319 = vmax.f32 %v1307, 0.0
    %v1320 = vmax.f32 %v1308, 0.0
    %v1321 = vmax.f32 %v1309, 0.0
    %v1322 = vmax.f32 %v1310, 0.0
    %v1323 = vmax.f32 %v1311, 0.0
    %v1324 = vmax.f32 %v1312, 0.0
    %vm1337 = vcmask 1046528
    %v1338 = vrot.slane %v1313, 1
    %v1339 = vrot.slane %v1316, 1
    %v1340 = vsel %vm1337, %v1338, %v1339
    %v1341 = vrot.slane %v1314, 1
    %v1342 = vrot.slane %v1317, 1
    %v1343 = vsel %vm1337, %v1341, %v1342
    %v1344 = vrot.slane %v1315, 1
    %v1345 = vrot.slane %v1318, 1
    %v1346 = vsel %vm1337, %v1344, %v1345
    %v1347 = vrot.slane %v1319, 1
    %v1348 = vsel %vm1337, %v1339, %v1347
    %v1349 = vrot.slane %v1320, 1
    %v1350 = vsel %vm1337, %v1342, %v1349
    %v1351 = vrot.slane %v1321, 1
    %v1352 = vsel %vm1337, %v1345, %v1351
    %v1353 = vrot.slane %v1322, 1
    %v1354 = vsel %vm1337, %v1347, %v1353
    %v1355 = vrot.slane %v1323, 1
    %v1356 = vsel %vm1337, %v1349, %v1355
    %v1357 = vrot.slane %v1324, 1
    %v1358 = vsel %vm1337, %v1351, %v1357
    %v1371 = vmax.f32 %v1313, %v1340
    %v1372 = vmax.f32 %v1314, %v1343
    %v1373 = vmax.f32 %v1315, %v1346
    %v1374 = vmax.f32 %v1316, %v1348
    %v1375 = vmax.f32 %v1317, %v1350
    %v1376 = vmax.f32 %v1318, %v1352
    %v1377 = vmax.f32 %v1319, %v1354
    %v1378 = vmax.f32 %v1320, %v1356
    %v1379 = vmax.f32 %v1321, %v1358
    %v1380 = vmax.f32 %v1322, %v1353
    %v1381 = vmax.f32 %v1323, %v1355
    %v1382 = vmax.f32 %v1324, %v1357
    %vm1383 = vcmask 220160
    %v1385 = vsel %vm1383, %v49, 0
    %v1388 = vsel %vm1383, %v50, 0
    %vm1390 = vcmask 1042432
    %v1392 = vsel %vm1390, %v1380, 0
    %v1395 = vsel %vm1390, %v1381, 0
    %v1398 = vsel %vm1390, %v1382, 0
    %1400 = vmatprep.subr.mxu0 0.0
    %1401 = vmatpush1.msra.mxu0 0.0
    %1402 = vmatprep.subr.mxu0 0.0
    %1403 = vmatpush1.msra.mxu0 0.0
    %1404 = vmatprep.subr.mxu0 0.0
    %1405 = vmatpush1.msra.mxu0 0.0
    %1406 = vmatprep.subr.mxu0 0.0
    %1407 = vmatpush1.msra.mxu0 0.0
    %1408 = vmatprep.subr.mxu0 0.0
    %1409 = vmatpush1.msra.mxu0 0.0
    %1410 = vmatprep.subr.mxu0 0.0
    %1411 = vmatpush1.msra.mxu0 0.0
    %1412 = vmatprep.subr.mxu0 0.0
    %1413 = vmatpush1.msra.mxu0 0.0
    %1414 = vmatprep.subr.mxu0 0.0
    %1415 = vmatpush1.msra.mxu0 0.0
    %1416 = vmatprep.subr.mxu0 0.0
    %1417 = vmatpush1.msra.mxu0 0.0
    %1418 = vmatprep.subr.mxu0 0.0
    %1419 = vmatpush1.msra.mxu0 0.0
    %1420 = vmatprep.subr.mxu0 0.0
    %1421 = vmatpush1.msra.mxu0 0.0
    %1422 = vmatprep.subr.mxu0 0.0
    %1423 = vmatpush1.msra.mxu0 0.0
    %1424 = vmatprep.subr.mxu0 %v1395
    %1425 = vmatpush1.msra.mxu0 %v1392
    %1426 = vmatprep.subr.mxu0 %v1378
    %1427 = vmatpush1.msra.mxu0 %v1377
    %1428 = vmatprep.subr.mxu0 %v1375
    %1429 = vmatpush1.msra.mxu0 %v1374
    %1430 = vmatprep.subr.mxu0 %v1372
    %1431 = vmatpush1.msra.mxu0 %v1371
    %1432 = vmatprep.subr.mxu0 0.0
    %1433 = vmatpush2.msra.mxu0 0.0
    %1434 = vmatprep.subr.mxu0 0.0
    %1435 = vmatpush2.msra.mxu0 0.0
    %1436 = vmatprep.subr.mxu0 0.0
    %1437 = vmatpush2.msra.mxu0 0.0
    %1438 = vmatprep.subr.mxu0 0.0
    %1439 = vmatpush2.msra.mxu0 0.0
    %1440 = vmatprep.subr.mxu0 0.0
    %1441 = vmatpush2.msra.mxu0 0.0
    %1442 = vmatprep.subr.mxu0 0.0
    %1443 = vmatpush2.msra.mxu0 0.0
    %1444 = vmatprep.subr.mxu0 0.0
    %1445 = vmatpush2.msra.mxu0 0.0
    %1446 = vmatprep.subr.mxu0 0.0
    %1447 = vmatpush2.msra.mxu0 0.0
    %1448 = vmatprep.subr.mxu0 0.0
    %1449 = vmatpush2.msra.mxu0 0.0
    %1450 = vmatprep.subr.mxu0 0.0
    %1451 = vmatpush2.msra.mxu0 0.0
    %1452 = vmatprep.subr.mxu0 0.0
    %1453 = vmatpush2.msra.mxu0 0.0
    %1454 = vmatprep.subr.mxu0 0.0
    %1455 = vmatpush2.msra.mxu0 0.0
    %1456 = vmatprep.subr.mxu0 0.0
    %1457 = vmatpush2.msra.mxu0 0.0
    %1458 = vmatprep.subr.mxu0 0.0
    %1459 = vmatpush2.msra.mxu0 0.0
    %1460 = vmatprep.subr.mxu0 0.0
    %1461 = vmatpush2.msra.mxu0 0.0
    %1462 = vmatprep.subr.mxu0 0.0
    %1463 = vmatpush2.msra.mxu0 0.0
    %1464 = vmatprep.mubr.f32.mxu0 0.0
    %1465 = vmatmul.mubr.f32.gmra.mxu0 %v1385
    %v1466 = vpop.f32.mrf.mxu0
    %v1467 = vadd.f32 0.0, %v1466
    %v1468 = vpop.f32.mrf.mxu0
    %v1469 = vadd.f32 0.0, %v1468
    %1470 = vmatprep.mubr.f32.mxu0 0.0
    %1471 = vmatmul.mubr.f32.gmra.mxu0 %v1388
    %v1472 = vpop.f32.mrf.mxu0
    %v1473 = vadd.f32 0.0, %v1472
    %v1474 = vpop.f32.mrf.mxu0
    %v1475 = vadd.f32 0.0, %v1474
    %1476 = vdwg.mxu0
    %1477 = vmatprep.subr.mxu0 0.0
    %1478 = vmatpush1.msra.mxu0 0.0
    %1479 = vmatprep.subr.mxu0 0.0
    %1480 = vmatpush1.msra.mxu0 0.0
    %1481 = vmatprep.subr.mxu0 0.0
    %1482 = vmatpush1.msra.mxu0 0.0
    %1483 = vmatprep.subr.mxu0 0.0
    %1484 = vmatpush1.msra.mxu0 0.0
    %1485 = vmatprep.subr.mxu0 0.0
    %1486 = vmatpush1.msra.mxu0 0.0
    %1487 = vmatprep.subr.mxu0 0.0
    %1488 = vmatpush1.msra.mxu0 0.0
    %1489 = vmatprep.subr.mxu0 0.0
    %1490 = vmatpush1.msra.mxu0 0.0
    %1491 = vmatprep.subr.mxu0 0.0
    %1492 = vmatpush1.msra.mxu0 0.0
    %1493 = vmatprep.subr.mxu0 0.0
    %1494 = vmatpush1.msra.mxu0 0.0
    %1495 = vmatprep.subr.mxu0 0.0
    %1496 = vmatpush1.msra.mxu0 0.0
    %1497 = vmatprep.subr.mxu0 0.0
    %1498 = vmatpush1.msra.mxu0 0.0
    %1499 = vmatprep.subr.mxu0 0.0
    %1500 = vmatpush1.msra.mxu0 0.0
    %1501 = vmatprep.subr.mxu0 0.0
    %1502 = vmatpush1.msra.mxu0 %v1398
    %1503 = vmatprep.subr.mxu0 0.0
    %1504 = vmatpush1.msra.mxu0 %v1379
    %1505 = vmatprep.subr.mxu0 0.0
    %1506 = vmatpush1.msra.mxu0 %v1376
    %1507 = vmatprep.subr.mxu0 0.0
    %1508 = vmatpush1.msra.mxu0 %v1373
    %1509 = vmatprep.subr.mxu0 0.0
    %1510 = vmatpush2.msra.mxu0 0.0
    %1511 = vmatprep.subr.mxu0 0.0
    %1512 = vmatpush2.msra.mxu0 0.0
    %1513 = vmatprep.subr.mxu0 0.0
    %1514 = vmatpush2.msra.mxu0 0.0
    %1515 = vmatprep.subr.mxu0 0.0
    %1516 = vmatpush2.msra.mxu0 0.0
    %1517 = vmatprep.subr.mxu0 0.0
    %1518 = vmatpush2.msra.mxu0 0.0
    %1519 = vmatprep.subr.mxu0 0.0
    %1520 = vmatpush2.msra.mxu0 0.0
    %1521 = vmatprep.subr.mxu0 0.0
    %1522 = vmatpush2.msra.mxu0 0.0
    %1523 = vmatprep.subr.mxu0 0.0
    %1524 = vmatpush2.msra.mxu0 0.0
    %1525 = vmatprep.subr.mxu0 0.0
    %1526 = vmatpush2.msra.mxu0 0.0
    %1527 = vmatprep.subr.mxu0 0.0
    %1528 = vmatpush2.msra.mxu0 0.0
    %1529 = vmatprep.subr.mxu0 0.0
    %1530 = vmatpush2.msra.mxu0 0.0
    %1531 = vmatprep.subr.mxu0 0.0
    %1532 = vmatpush2.msra.mxu0 0.0
    %1533 = vmatprep.subr.mxu0 0.0
    %1534 = vmatpush2.msra.mxu0 0.0
    %1535 = vmatprep.subr.mxu0 0.0
    %1536 = vmatpush2.msra.mxu0 0.0
    %1537 = vmatprep.subr.mxu0 0.0
    %1538 = vmatpush2.msra.mxu0 0.0
    %1539 = vmatprep.subr.mxu0 0.0
    %1540 = vmatpush2.msra.mxu0 0.0
    %1541 = vmatprep.mubr.f32.mxu0 0.0
    %1542 = vmatmul.mubr.f32.gmra.mxu0 %v1385
    %v1543 = vpop.f32.mrf.mxu0
    %v1544 = vadd.f32 0.0, %v1543
    %v1545 = vpop.f32.mrf.mxu0
    %1546 = vmatprep.mubr.f32.mxu0 0.0
    %1547 = vmatmul.mubr.f32.gmra.mxu0 %v1388
    %v1548 = vpop.f32.mrf.mxu0
    %v1549 = vadd.f32 0.0, %v1548
    %v1550 = vpop.f32.mrf.mxu0
    %1551 = vdwg.mxu0
    %1558 = vrot.lane.b32.xlu0 %v1467, 116
    %v1559 = vpop.permute.xlu0 %1558
    %1560 = vrot.lane.b32.xlu0 %v1469, 116
    %v1561 = vpop.permute.xlu0 %1560
    %1562 = vrot.lane.b32.xlu0 %v1544, 116
    %v1563 = vpop.permute.xlu0 %1562
    %1564 = vrot.lane.b32.xlu0 %v1473, 116
    %v1565 = vpop.permute.xlu0 %1564
    %1566 = vrot.lane.b32.xlu0 %v1475, 116
    %v1567 = vpop.permute.xlu0 %1566
    %1568 = vrot.lane.b32.xlu0 %v1549, 116
    %v1569 = vpop.permute.xlu0 %1568
    %vm1570 = vcmask 949248
    %v1571 = vsel %vm1570, %v1559, %v1561
    %v1572 = vsel %vm1570, %v1561, %v1563
    %v1573 = vsel %vm1570, %v1565, %v1567
    %v1574 = vsel %vm1570, %v1567, %v1569
    %v1581 = vmax.f32 %v1467, %v1571
    %v1582 = vmax.f32 %v1469, %v1572
    %v1583 = vmax.f32 %v1544, %v1563
    %v1584 = vmax.f32 %v1473, %v1573
    %v1585 = vmax.f32 %v1475, %v1574
    %v1586 = vmax.f32 %v1549, %v1569
    %vm1587 = vcmask 556032
    %v1589 = vsel %vm1587, %v1583, 0
    %v1592 = vsel %vm1587, %v1586, 0
    %vm1594 = vcmask 1043456
    %v1596 = vsel %vm1594, %v131, 0
    %v1599 = vsel %vm1594, %v132, 0
    %1601 = vmatprep.subr.mxu0 %v82
    %1602 = vmatpush1.msra.mxu0 %v81
    %1603 = vmatprep.subr.mxu0 %v80
    %1604 = vmatpush1.msra.mxu0 %v79
    %1605 = vmatprep.subr.mxu0 %v78
    %1606 = vmatpush1.msra.mxu0 %v77
    %1607 = vmatprep.subr.mxu0 %v76
    %1608 = vmatpush1.msra.mxu0 %v75
    %1609 = vmatprep.subr.mxu0 %v74
    %1610 = vmatpush1.msra.mxu0 %v73
    %1611 = vmatprep.subr.mxu0 %v72
    %1612 = vmatpush1.msra.mxu0 %v71
    %1613 = vmatprep.subr.mxu0 %v70
    %1614 = vmatpush1.msra.mxu0 %v69
    %1615 = vmatprep.subr.mxu0 %v68
    %1616 = vmatpush1.msra.mxu0 %v67
    %1617 = vmatprep.subr.mxu0 %v66
    %1618 = vmatpush1.msra.mxu0 %v65
    %1619 = vmatprep.subr.mxu0 %v64
    %1620 = vmatpush1.msra.mxu0 %v63
    %1621 = vmatprep.subr.mxu0 %v62
    %1622 = vmatpush1.msra.mxu0 %v61
    %1623 = vmatprep.subr.mxu0 %v60
    %1624 = vmatpush1.msra.mxu0 %v59
    %1625 = vmatprep.subr.mxu0 %v58
    %1626 = vmatpush1.msra.mxu0 %v57
    %1627 = vmatprep.subr.mxu0 %v56
    %1628 = vmatpush1.msra.mxu0 %v55
    %1629 = vmatprep.subr.mxu0 %v54
    %1630 = vmatpush1.msra.mxu0 %v53
    %1631 = vmatprep.subr.mxu0 %v52
    %1632 = vmatpush1.msra.mxu0 %v51
    %1633 = vmatprep.subr.mxu0 %v114
    %1634 = vmatpush2.msra.mxu0 %v113
    %1635 = vmatprep.subr.mxu0 %v112
    %1636 = vmatpush2.msra.mxu0 %v111
    %1637 = vmatprep.subr.mxu0 %v110
    %1638 = vmatpush2.msra.mxu0 %v109
    %1639 = vmatprep.subr.mxu0 %v108
    %1640 = vmatpush2.msra.mxu0 %v107
    %1641 = vmatprep.subr.mxu0 %v106
    %1642 = vmatpush2.msra.mxu0 %v105
    %1643 = vmatprep.subr.mxu0 %v104
    %1644 = vmatpush2.msra.mxu0 %v103
    %1645 = vmatprep.subr.mxu0 %v102
    %1646 = vmatpush2.msra.mxu0 %v101
    %1647 = vmatprep.subr.mxu0 %v100
    %1648 = vmatpush2.msra.mxu0 %v99
    %1649 = vmatprep.subr.mxu0 %v98
    %1650 = vmatpush2.msra.mxu0 %v97
    %1651 = vmatprep.subr.mxu0 %v96
    %1652 = vmatpush2.msra.mxu0 %v95
    %1653 = vmatprep.subr.mxu0 %v94
    %1654 = vmatpush2.msra.mxu0 %v93
    %1655 = vmatprep.subr.mxu0 %v92
    %1656 = vmatpush2.msra.mxu0 %v91
    %1657 = vmatprep.subr.mxu0 %v90
    %1658 = vmatpush2.msra.mxu0 %v89
    %1659 = vmatprep.subr.mxu0 %v88
    %1660 = vmatpush2.msra.mxu0 %v87
    %1661 = vmatprep.subr.mxu0 %v86
    %1662 = vmatpush2.msra.mxu0 %v85
    %1663 = vmatprep.subr.mxu0 %v84
    %1664 = vmatpush2.msra.mxu0 %v83
    %1665 = vmatprep.mubr.f32.mxu0 %v1582
    %1666 = vmatmul.mubr.f32.gmra.mxu0 %v1581
    %v1667 = vpop.f32.mrf.mxu0
    %v1668 = vadd.f32 0.0, %v1667
    %v1669 = vpop.f32.mrf.mxu0
    %v1670 = vadd.f32 0.0, %v1669
    %1671 = vmatprep.mubr.f32.mxu0 %v1585
    %1672 = vmatmul.mubr.f32.gmra.mxu0 %v1584
    %v1673 = vpop.f32.mrf.mxu0
    %v1674 = vadd.f32 0.0, %v1673
    %v1675 = vpop.f32.mrf.mxu0
    %v1676 = vadd.f32 0.0, %v1675
    %1677 = vdwg.mxu0
    %1678 = vmatprep.subr.mxu0 0.0
    %1679 = vmatpush1.msra.mxu0 0.0
    %1680 = vmatprep.subr.mxu0 0.0
    %1681 = vmatpush1.msra.mxu0 0.0
    %1682 = vmatprep.subr.mxu0 0.0
    %1683 = vmatpush1.msra.mxu0 0.0
    %1684 = vmatprep.subr.mxu0 0.0
    %1685 = vmatpush1.msra.mxu0 0.0
    %1686 = vmatprep.subr.mxu0 0.0
    %1687 = vmatpush1.msra.mxu0 0.0
    %1688 = vmatprep.subr.mxu0 0.0
    %1689 = vmatpush1.msra.mxu0 0.0
    %1690 = vmatprep.subr.mxu0 0.0
    %1691 = vmatpush1.msra.mxu0 0.0
    %1692 = vmatprep.subr.mxu0 %v1599
    %1693 = vmatpush1.msra.mxu0 %v1596
    %1694 = vmatprep.subr.mxu0 %v130
    %1695 = vmatpush1.msra.mxu0 %v129
    %1696 = vmatprep.subr.mxu0 %v128
    %1697 = vmatpush1.msra.mxu0 %v127
    %1698 = vmatprep.subr.mxu0 %v126
    %1699 = vmatpush1.msra.mxu0 %v125
    %1700 = vmatprep.subr.mxu0 %v124
    %1701 = vmatpush1.msra.mxu0 %v123
    %1702 = vmatprep.subr.mxu0 %v122
    %1703 = vmatpush1.msra.mxu0 %v121
    %1704 = vmatprep.subr.mxu0 %v120
    %1705 = vmatpush1.msra.mxu0 %v119
    %1706 = vmatprep.subr.mxu0 %v118
    %1707 = vmatpush1.msra.mxu0 %v117
    %1708 = vmatprep.subr.mxu0 %v116
    %1709 = vmatpush1.msra.mxu0 %v115
    %1710 = vmatprep.subr.mxu0 0.0
    %1711 = vmatpush2.msra.mxu0 0.0
    %1712 = vmatprep.subr.mxu0 0.0
    %1713 = vmatpush2.msra.mxu0 0.0
    %1714 = vmatprep.subr.mxu0 0.0
    %1715 = vmatpush2.msra.mxu0 0.0
    %1716 = vmatprep.subr.mxu0 0.0
    %1717 = vmatpush2.msra.mxu0 0.0
    %1718 = vmatprep.subr.mxu0 0.0
    %1719 = vmatpush2.msra.mxu0 0.0
    %1720 = vmatprep.subr.mxu0 0.0
    %1721 = vmatpush2.msra.mxu0 0.0
    %1722 = vmatprep.subr.mxu0 0.0
    %1723 = vmatpush2.msra.mxu0 0.0
    %1724 = vmatprep.subr.mxu0 0.0
    %1725 = vmatpush2.msra.mxu0 0.0
    %1726 = vmatprep.subr.mxu0 0.0
    %1727 = vmatpush2.msra.mxu0 0.0
    %1728 = vmatprep.subr.mxu0 0.0
    %1729 = vmatpush2.msra.mxu0 0.0
    %1730 = vmatprep.subr.mxu0 0.0
    %1731 = vmatpush2.msra.mxu0 0.0
    %1732 = vmatprep.subr.mxu0 0.0
    %1733 = vmatpush2.msra.mxu0 0.0
    %1734 = vmatprep.subr.mxu0 0.0
    %1735 = vmatpush2.msra.mxu0 0.0
    %1736 = vmatprep.subr.mxu0 0.0
    %1737 = vmatpush2.msra.mxu0 0.0
    %1738 = vmatprep.subr.mxu0 0.0
    %1739 = vmatpush2.msra.mxu0 0.0
    %1740 = vmatprep.subr.mxu0 0.0
    %1741 = vmatpush2.msra.mxu0 0.0
    %1742 = vmatprep.mubr.f32.mxu0 0.0
    %1743 = vmatmul.mubr.f32.gmra.mxu0 %v1589
    %v1744 = vpop.f32.mrf.mxu0
    %v1745 = vadd.f32 %v1668, %v1744
    %v1746 = vpop.f32.mrf.mxu0
    %v1747 = vadd.f32 %v1670, %v1746
    %1748 = vmatprep.mubr.f32.mxu0 0.0
    %1749 = vmatmul.mubr.f32.gmra.mxu0 %v1592
    %v1750 = vpop.f32.mrf.mxu0
    %v1751 = vadd.f32 %v1674, %v1750
    %v1752 = vpop.f32.mrf.mxu0
    %v1753 = vadd.f32 %v1676, %v1752
    %1754 = vdwg.mxu0
    %v1755 = vld [vmem:[%s2] sm:$0xff]
    %v1756 = vld [vmem:[%s2 + $0x8] sm:$0xff]
    %v1757 = vld [vmem:[%s2 + $0x10] sm:$0xff]
    %v1758 = vld [vmem:[%s2 + $0x18] sm:$0xff]
    %v1759 = vld [vmem:[%s2 + $0x20] sm:$0xff]
    %v1760 = vld [vmem:[%s2 + $0x28] sm:$0xff]
    %v1761 = vld [vmem:[%s2 + $0x30] sm:$0xff]
    %v1762 = vld [vmem:[%s2 + $0x38] sm:$0xff]
    %v1763 = vld [vmem:[%s2 + $0x40] sm:$0xff]
    %v1764 = vld [vmem:[%s2 + $0x48] sm:$0xff]
    %v1765 = vld [vmem:[%s2 + $0x50] sm:$0xff]
    %v1766 = vld [vmem:[%s2 + $0x58] sm:$0xff]
    %v1767 = vld [vmem:[%s2 + $0x60] sm:$0xff]
    %v1768 = vld [vmem:[%s2 + $0x68] sm:$0xff]
    %v1769 = vld [vmem:[%s2 + $0x70] sm:$0xff]
    %v1770 = vld [vmem:[%s2 + $0x78] sm:$0xff]
    %v1771 = vld [vmem:[%s2 + $0x80] sm:$0xff]
    %v1772 = vld [vmem:[%s2 + $0x88] sm:$0xff]
    %v1773 = vld [vmem:[%s2 + $0x90] sm:$0xff]
    %v1774 = vld [vmem:[%s2 + $0x98] sm:$0xff]
    %v1775 = vld [vmem:[%s2 + $0xa0] sm:$0xff]
    %v1776 = vld [vmem:[%s2 + $0xa8] sm:$0xff]
    %v1777 = vld [vmem:[%s2 + $0xb0] sm:$0xff]
    %v1778 = vld [vmem:[%s2 + $0xb8] sm:$0xff]
    %v1779 = vld [vmem:[%s2 + $0xc0] sm:$0xff]
    %v1780 = vld [vmem:[%s2 + $0xc8] sm:$0xff]
    %v1781 = vld [vmem:[%s2 + $0xd0] sm:$0xff]
    %v1782 = vld [vmem:[%s2 + $0xd8] sm:$0xff]
    %v1783 = vld [vmem:[%s2 + $0xe0] sm:$0xff]
    %v1784 = vld [vmem:[%s2 + $0xe8] sm:$0xff]
    %v1785 = vld [vmem:[%s2 + $0xf0] sm:$0xff]
    %v1786 = vld [vmem:[%s2 + $0xf8] sm:$0xff]
    %v1787 = vld [vmem:[%s2 + $0x100] sm:$0xff]
    %v1788 = vld [vmem:[%s2 + $0x108] sm:$0xff]
    %v1789 = vld [vmem:[%s2 + $0x110] sm:$0xff]
    %v1790 = vld [vmem:[%s2 + $0x118] sm:$0xff]
    %v1791 = vld [vmem:[%s2 + $0x120] sm:$0xff]
    %v1792 = vld [vmem:[%s2 + $0x128] sm:$0xff]
    %v1793 = vld [vmem:[%s2 + $0x130] sm:$0xff]
    %v1794 = vld [vmem:[%s2 + $0x138] sm:$0xff]
    %v1795 = vld [vmem:[%s2 + $0x140] sm:$0xff]
    %v1796 = vld [vmem:[%s2 + $0x148] sm:$0xff]
    %v1797 = vld [vmem:[%s2 + $0x150] sm:$0xff]
    %v1798 = vld [vmem:[%s2 + $0x158] sm:$0xff]
    %v1799 = vld [vmem:[%s2 + $0x160] sm:$0xff]
    %v1800 = vld [vmem:[%s2 + $0x168] sm:$0xff]
    %v1801 = vld [vmem:[%s2 + $0x170] sm:$0xff]
    %v1802 = vld [vmem:[%s2 + $0x178] sm:$0xff]
    %v1803 = vld [vmem:[%s2 + $0x180] sm:$0xff]
    %v1804 = vld [vmem:[%s2 + $0x188] sm:$0xff]
    %v1805 = vld [vmem:[%s2 + $0x190] sm:$0xff]
    %v1806 = vld [vmem:[%s2 + $0x198] sm:$0xff]
    %v1807 = vld [vmem:[%s2 + $0x1a0] sm:$0xff]
    %v1808 = vld [vmem:[%s2 + $0x1a8] sm:$0xff]
    %v1809 = vld [vmem:[%s2 + $0x1b0] sm:$0xff]
    %v1810 = vld [vmem:[%s2 + $0x1b8] sm:$0xff]
    %v1811 = vld [vmem:[%s2 + $0x1c0] sm:$0xff]
    %v1812 = vld [vmem:[%s2 + $0x1c8] sm:$0xff]
    %v1813 = vld [vmem:[%s2 + $0x1d0] sm:$0xff]
    %v1814 = vld [vmem:[%s2 + $0x1d8] sm:$0xff]
    %v1815 = vld [vmem:[%s2 + $0x1e0] sm:$0xff]
    %v1816 = vld [vmem:[%s2 + $0x1e8] sm:$0xff]
    %v1817 = vld [vmem:[%s2 + $0x1f0] sm:$0xff]
    %v1818 = vld [vmem:[%s2 + $0x1f8] sm:$0xff]
    %v1819 = vld [vmem:[%s2 + $0x200] sm:$0xff]
    %v1820 = vld [vmem:[%s2 + $0x208] sm:$0xff]
    %v1821 = vld [vmem:[%s2 + $0x210] sm:$0xff]
    %v1822 = vld [vmem:[%s2 + $0x218] sm:$0xff]
    %v1823 = vld [vmem:[%s2 + $0x220] sm:$0xff]
    %v1824 = vld [vmem:[%s2 + $0x228] sm:$0xff]
    %v1825 = vld [vmem:[%s2 + $0x230] sm:$0xff]
    %v1826 = vld [vmem:[%s2 + $0x238] sm:$0xff]
    %v1827 = vld [vmem:[%s2 + $0x240] sm:$0xff]
    %v1828 = vld [vmem:[%s2 + $0x248] sm:$0xff]
    %v1829 = vld [vmem:[%s2 + $0x250] sm:$0xff]
    %v1830 = vld [vmem:[%s2 + $0x258] sm:$0xff]
    %v1831 = vld [vmem:[%s2 + $0x260] sm:$0xff]
    %v1832 = vld [vmem:[%s2 + $0x268] sm:$0xff]
    %v1833 = vld [vmem:[%s2 + $0x270] sm:$0xff]
    %v1834 = vld [vmem:[%s2 + $0x278] sm:$0xff]
    %v1835 = vld [vmem:[%s2 + $0x280] sm:$0xff]
    %v1836 = vld [vmem:[%s2 + $0x288] sm:$0xff]
    %v1837 = vld [vmem:[%s2 + $0x290] sm:$0xff]
    %v1838 = vld [vmem:[%s2 + $0x298] sm:$0xff]
    %v1843 = vrot.slane %v1745, 1
    %v1844 = vrot.slane %v1751, 1
    %v1845 = vsel %vm1337, %v1843, %v1844
    %v1846 = vrot.slane %v1747, 1
    %v1847 = vrot.slane %v1753, 1
    %v1848 = vsel %vm1337, %v1846, %v1847
    %vm1851 = vcmask 326656
    %v1852 = vsel %vm1851, %v1848, 0
    %v1854 = vsel %vm1851, %v1847, 0
    %1856 = vmatprep.subr.mxu0 %v1828
    %1857 = vmatpush1.msra.mxu0 %v1827
    %1858 = vmatprep.subr.mxu0 %v1826
    %1859 = vmatpush1.msra.mxu0 %v1825
    %1860 = vmatprep.subr.mxu0 %v1824
    %1861 = vmatpush1.msra.mxu0 %v1823
    %1862 = vmatprep.subr.mxu0 %v1822
    %1863 = vmatpush1.msra.mxu0 %v1821
    %1864 = vmatprep.subr.mxu0 %v1820
    %1865 = vmatpush1.msra.mxu0 %v1819
    %1866 = vmatprep.subr.mxu0 %v1818
    %1867 = vmatpush1.msra.mxu0 %v1817
    %1868 = vmatprep.subr.mxu0 %v1816
    %1869 = vmatpush1.msra.mxu0 %v1815
    %1870 = vmatprep.subr.mxu0 %v1814
    %1871 = vmatpush1.msra.mxu0 %v1813
    %1872 = vmatprep.subr.mxu0 %v1812
    %1873 = vmatpush1.msra.mxu0 %v1811
    %1874 = vmatprep.subr.mxu0 %v1810
    %1875 = vmatpush1.msra.mxu0 %v1809
    %1876 = vmatprep.subr.mxu0 %v1808
    %1877 = vmatpush1.msra.mxu0 %v1807
    %1878 = vmatprep.subr.mxu0 %v1806
    %1879 = vmatpush1.msra.mxu0 %v1805
    %1880 = vmatprep.subr.mxu0 %v1804
    %1881 = vmatpush1.msra.mxu0 %v1803
    %1882 = vmatprep.subr.mxu0 %v1802
    %1883 = vmatpush1.msra.mxu0 %v1801
    %1884 = vmatprep.subr.mxu0 %v1800
    %1885 = vmatpush1.msra.mxu0 %v1799
    %1886 = vmatprep.subr.mxu0 %v1798
    %1887 = vmatpush1.msra.mxu0 %v1797
    %1888 = vmatprep.subr.mxu0 0.0
    %1889 = vmatpush2.msra.mxu0 0.0
    %1890 = vmatprep.subr.mxu0 0.0
    %1891 = vmatpush2.msra.mxu0 0.0
    %1892 = vmatprep.subr.mxu0 0.0
    %1893 = vmatpush2.msra.mxu0 0.0
    %1894 = vmatprep.subr.mxu0 0.0
    %1895 = vmatpush2.msra.mxu0 0.0
    %1896 = vmatprep.subr.mxu0 0.0
    %1897 = vmatpush2.msra.mxu0 0.0
    %1898 = vmatprep.subr.mxu0 0.0
    %1899 = vmatpush2.msra.mxu0 0.0
    %1900 = vmatprep.subr.mxu0 0.0
    %1901 = vmatpush2.msra.mxu0 0.0
    %1902 = vmatprep.subr.mxu0 0.0
    %1903 = vmatpush2.msra.mxu0 0.0
    %1904 = vmatprep.subr.mxu0 0.0
    %1905 = vmatpush2.msra.mxu0 0.0
    %1906 = vmatprep.subr.mxu0 0.0
    %1907 = vmatpush2.msra.mxu0 0.0
    %1908 = vmatprep.subr.mxu0 0.0
    %1909 = vmatpush2.msra.mxu0 0.0
    %1910 = vmatprep.subr.mxu0 %v1838
    %1911 = vmatpush2.msra.mxu0 %v1837
    %1912 = vmatprep.subr.mxu0 %v1836
    %1913 = vmatpush2.msra.mxu0 %v1835
    %1914 = vmatprep.subr.mxu0 %v1834
    %1915 = vmatpush2.msra.mxu0 %v1833
    %1916 = vmatprep.subr.mxu0 %v1832
    %1917 = vmatpush2.msra.mxu0 %v1831
    %1918 = vmatprep.subr.mxu0 %v1830
    %1919 = vmatpush2.msra.mxu0 %v1829
    %1920 = vmatprep.mubr.f32.mxu0 %v1852
    %1921 = vmatmul.mubr.f32.gmra.mxu0 %v1845
    %v1922 = vpop.f32.mrf.mxu0
    %v1923 = vadd.f32 0.0, %v1922
    %v1924 = vpop.f32.mrf.mxu0
    %v1925 = vadd.f32 0.0, %v1924
    %1926 = vmatprep.mubr.f32.mxu0 %v1854
    %1927 = vmatmul.mubr.f32.gmra.mxu0 %v1844
    %v1928 = vpop.f32.mrf.mxu0
    %v1929 = vadd.f32 0.0, %v1928
    %v1930 = vpop.f32.mrf.mxu0
    %v1931 = vadd.f32 0.0, %v1930
    %1932 = vdwg.mxu0
    %v1933 = vsel %vm1851, %v1747, 0
    %v1935 = vsel %vm1851, %v1753, 0
    %1937 = vmatprep.subr.mxu0 %v1786
    %1938 = vmatpush1.msra.mxu0 %v1785
    %1939 = vmatprep.subr.mxu0 %v1784
    %1940 = vmatpush1.msra.mxu0 %v1783
    %1941 = vmatprep.subr.mxu0 %v1782
    %1942 = vmatpush1.msra.mxu0 %v1781
    %1943 = vmatprep.subr.mxu0 %v1780
    %1944 = vmatpush1.msra.mxu0 %v1779
    %1945 = vmatprep.subr.mxu0 %v1778
    %1946 = vmatpush1.msra.mxu0 %v1777
    %1947 = vmatprep.subr.mxu0 %v1776
    %1948 = vmatpush1.msra.mxu0 %v1775
    %1949 = vmatprep.subr.mxu0 %v1774
    %1950 = vmatpush1.msra.mxu0 %v1773
    %1951 = vmatprep.subr.mxu0 %v1772
    %1952 = vmatpush1.msra.mxu0 %v1771
    %1953 = vmatprep.subr.mxu0 %v1770
    %1954 = vmatpush1.msra.mxu0 %v1769
    %1955 = vmatprep.subr.mxu0 %v1768
    %1956 = vmatpush1.msra.mxu0 %v1767
    %1957 = vmatprep.subr.mxu0 %v1766
    %1958 = vmatpush1.msra.mxu0 %v1765
    %1959 = vmatprep.subr.mxu0 %v1764
    %1960 = vmatpush1.msra.mxu0 %v1763
    %1961 = vmatprep.subr.mxu0 %v1762
    %1962 = vmatpush1.msra.mxu0 %v1761
    %1963 = vmatprep.subr.mxu0 %v1760
    %1964 = vmatpush1.msra.mxu0 %v1759
    %1965 = vmatprep.subr.mxu0 %v1758
    %1966 = vmatpush1.msra.mxu0 %v1757
    %1967 = vmatprep.subr.mxu0 %v1756
    %1968 = vmatpush1.msra.mxu0 %v1755
    %1969 = vmatprep.subr.mxu0 0.0
    %1970 = vmatpush2.msra.mxu0 0.0
    %1971 = vmatprep.subr.mxu0 0.0
    %1972 = vmatpush2.msra.mxu0 0.0
    %1973 = vmatprep.subr.mxu0 0.0
    %1974 = vmatpush2.msra.mxu0 0.0
    %1975 = vmatprep.subr.mxu0 0.0
    %1976 = vmatpush2.msra.mxu0 0.0
    %1977 = vmatprep.subr.mxu0 0.0
    %1978 = vmatpush2.msra.mxu0 0.0
    %1979 = vmatprep.subr.mxu0 0.0
    %1980 = vmatpush2.msra.mxu0 0.0
    %1981 = vmatprep.subr.mxu0 0.0
    %1982 = vmatpush2.msra.mxu0 0.0
    %1983 = vmatprep.subr.mxu0 0.0
    %1984 = vmatpush2.msra.mxu0 0.0
    %1985 = vmatprep.subr.mxu0 0.0
    %1986 = vmatpush2.msra.mxu0 0.0
    %1987 = vmatprep.subr.mxu0 0.0
    %1988 = vmatpush2.msra.mxu0 0.0
    %1989 = vmatprep.subr.mxu0 0.0
    %1990 = vmatpush2.msra.mxu0 0.0
    %1991 = vmatprep.subr.mxu0 %v1796
    %1992 = vmatpush2.msra.mxu0 %v1795
    %1993 = vmatprep.subr.mxu0 %v1794
    %1994 = vmatpush2.msra.mxu0 %v1793
    %1995 = vmatprep.subr.mxu0 %v1792
    %1996 = vmatpush2.msra.mxu0 %v1791
    %1997 = vmatprep.subr.mxu0 %v1790
    %1998 = vmatpush2.msra.mxu0 %v1789
    %1999 = vmatprep.subr.mxu0 %v1788
    %2000 = vmatpush2.msra.mxu0 %v1787
    %2001 = vmatprep.mubr.f32.mxu0 %v1933
    %2002 = vmatmul.mubr.f32.gmra.mxu0 %v1745
    %v2003 = vpop.f32.mrf.mxu0
    %v2004 = vadd.f32 %v1923, %v2003
    %v2005 = vpop.f32.mrf.mxu0
    %v2006 = vadd.f32 %v1925, %v2005
    %2007 = vmatprep.mubr.f32.mxu0 %v1935
    %2008 = vmatmul.mubr.f32.gmra.mxu0 %v1751
    %v2009 = vpop.f32.mrf.mxu0
    %v2010 = vadd.f32 %v1929, %v2009
    %v2011 = vpop.f32.mrf.mxu0
    %v2012 = vadd.f32 %v1931, %v2011
    %2013 = vdwg.mxu0
    %v2014 = vld [vmem:[%s2 + $0x2a0] sm:$0xff]
    %v2015 = vld [vmem:[%s2 + $0x2a8] sm:$0xff]
    %v2016 = vld [vmem:[%s2 + $0x2b0] sm:$0xff]
    %v2017 = vld [vmem:[%s2 + $0x2b8] sm:$0xff]
    %v2018 = vld [vmem:[%s2 + $0x2c0] sm:$0xff]
    %v2019 = vld [vmem:[%s2 + $0x2c8] sm:$0xff]
    %v2020 = vld [vmem:[%s2 + $0x2d0] sm:$0xff]
    %v2021 = vld [vmem:[%s2 + $0x2d8] sm:$0xff]
    %v2022 = vld [vmem:[%s2 + $0x2e0] sm:$0xff]
    %v2023 = vld [vmem:[%s2 + $0x2e8] sm:$0xff]
    %v2024 = vld [vmem:[%s2 + $0x2f0] sm:$0xff]
    %v2025 = vld [vmem:[%s2 + $0x2f8] sm:$0xff]
    %v2026 = vld [vmem:[%s2 + $0x300] sm:$0xff]
    %v2027 = vld [vmem:[%s2 + $0x308] sm:$0xff]
    %v2028 = vld [vmem:[%s2 + $0x310] sm:$0xff]
    %v2029 = vld [vmem:[%s2 + $0x318] sm:$0xff]
    %v2030 = vld [vmem:[%s2 + $0x320] sm:$0xff]
    %v2031 = vld [vmem:[%s2 + $0x328] sm:$0xff]
    %v2032 = vld [vmem:[%s2 + $0x330] sm:$0xff]
    %v2033 = vld [vmem:[%s2 + $0x338] sm:$0xff]
    %v2034 = vld [vmem:[%s2 + $0x340] sm:$0xff]
    %v2035 = vld [vmem:[%s2 + $0x348] sm:$0xff]
    %v2036 = vld [vmem:[%s2 + $0x350] sm:$0xff]
    %v2037 = vld [vmem:[%s2 + $0x358] sm:$0xff]
    %v2038 = vld [vmem:[%s2 + $0x360] sm:$0xff]
    %v2039 = vld [vmem:[%s2 + $0x368] sm:$0xff]
    %v2040 = vld [vmem:[%s2 + $0x370] sm:$0xff]
    %v2041 = vld [vmem:[%s2 + $0x378] sm:$0xff]
    %v2042 = vld [vmem:[%s2 + $0x380] sm:$0xff]
    %v2043 = vld [vmem:[%s2 + $0x388] sm:$0xff]
    %v2044 = vld [vmem:[%s2 + $0x390] sm:$0xff]
    %v2045 = vld [vmem:[%s2 + $0x398] sm:$0xff]
    %v2046 = vld [vmem:[%s2 + $0x3a0] sm:$0xff]
    %v2047 = vld [vmem:[%s2 + $0x3a8] sm:$0xff]
    %v2048 = vld [vmem:[%s2 + $0x3b0] sm:$0xff]
    %v2049 = vld [vmem:[%s2 + $0x3b8] sm:$0xff]
    %v2050 = vld [vmem:[%s2 + $0x3c0] sm:$0xff]
    %v2051 = vld [vmem:[%s2 + $0x3c8] sm:$0xff]
    %v2052 = vld [vmem:[%s2 + $0x3d0] sm:$0xff]
    %v2053 = vld [vmem:[%s2 + $0x3d8] sm:$0xff]
    %v2054 = vld [vmem:[%s2 + $0x3e0] sm:$0xff]
    %v2055 = vld [vmem:[%s2 + $0x3e8] sm:$0xff]
    %vm2056 = vcmask 1045504
    %v2057 = vrot.slane %v1745, 2
    %v2058 = vrot.slane %v1751, 2
    %v2059 = vsel %vm2056, %v2057, %v2058
    %v2060 = vrot.slane %v1747, 2
    %v2061 = vrot.slane %v1753, 2
    %v2062 = vsel %vm2056, %v2060, %v2061
    %v2065 = vsel %vm1851, %v2062, 0
    %v2067 = vsel %vm1851, %v2061, 0
    %2069 = vmatprep.subr.mxu0 %v2045
    %2070 = vmatpush1.msra.mxu0 %v2044
    %2071 = vmatprep.subr.mxu0 %v2043
    %2072 = vmatpush1.msra.mxu0 %v2042
    %2073 = vmatprep.subr.mxu0 %v2041
    %2074 = vmatpush1.msra.mxu0 %v2040
    %2075 = vmatprep.subr.mxu0 %v2039
    %2076 = vmatpush1.msra.mxu0 %v2038
    %2077 = vmatprep.subr.mxu0 %v2037
    %2078 = vmatpush1.msra.mxu0 %v2036
    %2079 = vmatprep.subr.mxu0 %v2035
    %2080 = vmatpush1.msra.mxu0 %v2034
    %2081 = vmatprep.subr.mxu0 %v2033
    %2082 = vmatpush1.msra.mxu0 %v2032
    %2083 = vmatprep.subr.mxu0 %v2031
    %2084 = vmatpush1.msra.mxu0 %v2030
    %2085 = vmatprep.subr.mxu0 %v2029
    %2086 = vmatpush1.msra.mxu0 %v2028
    %2087 = vmatprep.subr.mxu0 %v2027
    %2088 = vmatpush1.msra.mxu0 %v2026
    %2089 = vmatprep.subr.mxu0 %v2025
    %2090 = vmatpush1.msra.mxu0 %v2024
    %2091 = vmatprep.subr.mxu0 %v2023
    %2092 = vmatpush1.msra.mxu0 %v2022
    %2093 = vmatprep.subr.mxu0 %v2021
    %2094 = vmatpush1.msra.mxu0 %v2020
    %2095 = vmatprep.subr.mxu0 %v2019
    %2096 = vmatpush1.msra.mxu0 %v2018
    %2097 = vmatprep.subr.mxu0 %v2017
    %2098 = vmatpush1.msra.mxu0 %v2016
    %2099 = vmatprep.subr.mxu0 %v2015
    %2100 = vmatpush1.msra.mxu0 %v2014
    %2101 = vmatprep.subr.mxu0 0.0
    %2102 = vmatpush2.msra.mxu0 0.0
    %2103 = vmatprep.subr.mxu0 0.0
    %2104 = vmatpush2.msra.mxu0 0.0
    %2105 = vmatprep.subr.mxu0 0.0
    %2106 = vmatpush2.msra.mxu0 0.0
    %2107 = vmatprep.subr.mxu0 0.0
    %2108 = vmatpush2.msra.mxu0 0.0
    %2109 = vmatprep.subr.mxu0 0.0
    %2110 = vmatpush2.msra.mxu0 0.0
    %2111 = vmatprep.subr.mxu0 0.0
    %2112 = vmatpush2.msra.mxu0 0.0
    %2113 = vmatprep.subr.mxu0 0.0
    %2114 = vmatpush2.msra.mxu0 0.0
    %2115 = vmatprep.subr.mxu0 0.0
    %2116 = vmatpush2.msra.mxu0 0.0
    %2117 = vmatprep.subr.mxu0 0.0
    %2118 = vmatpush2.msra.mxu0 0.0
    %2119 = vmatprep.subr.mxu0 0.0
    %2120 = vmatpush2.msra.mxu0 0.0
    %2121 = vmatprep.subr.mxu0 0.0
    %2122 = vmatpush2.msra.mxu0 0.0
    %2123 = vmatprep.subr.mxu0 %v2055
    %2124 = vmatpush2.msra.mxu0 %v2054
    %2125 = vmatprep.subr.mxu0 %v2053
    %2126 = vmatpush2.msra.mxu0 %v2052
    %2127 = vmatprep.subr.mxu0 %v2051
    %2128 = vmatpush2.msra.mxu0 %v2050
    %2129 = vmatprep.subr.mxu0 %v2049
    %2130 = vmatpush2.msra.mxu0 %v2048
    %2131 = vmatprep.subr.mxu0 %v2047
    %2132 = vmatpush2.msra.mxu0 %v2046
    %2133 = vmatprep.mubr.f32.mxu0 %v2065
    %2134 = vmatmul.mubr.f32.gmra.mxu0 %v2059
    %v2135 = vpop.f32.mrf.mxu0
    %v2136 = vadd.f32 0.0, %v2135
    %v2137 = vpop.f32.mrf.mxu0
    %v2138 = vadd.f32 0.0, %v2137
    %2139 = vmatprep.mubr.f32.mxu0 %v2067
    %2140 = vmatmul.mubr.f32.gmra.mxu0 %v2058
    %v2141 = vpop.f32.mrf.mxu0
    %v2142 = vadd.f32 0.0, %v2141
    %v2143 = vpop.f32.mrf.mxu0
    %v2144 = vadd.f32 0.0, %v2143
    %2145 = vdwg.mxu0
    %v2146 = vadd.f32 %v2004, %v2136
    %v2147 = vadd.f32 %v2006, %v2138
    %v2148 = vadd.f32 %v2010, %v2142
    %v2149 = vadd.f32 %v2012, %v2144
    %v2150 = vld [vmem:[%s2 + $0x3f0] sm:$0xff]
    %v2151 = vld [vmem:[%s2 + $0x3f8] sm:$0xff]
    %v2152 = vld [vmem:[%s2 + $0x400] sm:$0xff]
    %v2153 = vld [vmem:[%s2 + $0x408] sm:$0xff]
    %v2154 = vld [vmem:[%s2 + $0x410] sm:$0xff]
    %v2155 = vld [vmem:[%s2 + $0x418] sm:$0xff]
    %v2156 = vld [vmem:[%s2 + $0x420] sm:$0xff]
    %v2157 = vld [vmem:[%s2 + $0x428] sm:$0xff]
    %v2158 = vld [vmem:[%s2 + $0x430] sm:$0xff]
    %v2159 = vld [vmem:[%s2 + $0x438] sm:$0xff]
    %v2160 = vld [vmem:[%s2 + $0x440] sm:$0xff]
    %v2161 = vld [vmem:[%s2 + $0x448] sm:$0xff]
    %v2162 = vld [vmem:[%s2 + $0x450] sm:$0xff]
    %v2163 = vld [vmem:[%s2 + $0x458] sm:$0xff]
    %v2164 = vld [vmem:[%s2 + $0x460] sm:$0xff]
    %v2165 = vld [vmem:[%s2 + $0x468] sm:$0xff]
    %v2166 = vld [vmem:[%s2 + $0x470] sm:$0xff]
    %v2167 = vld [vmem:[%s2 + $0x478] sm:$0xff]
    %v2168 = vld [vmem:[%s2 + $0x480] sm:$0xff]
    %v2169 = vld [vmem:[%s2 + $0x488] sm:$0xff]
    %v2170 = vld [vmem:[%s2 + $0x490] sm:$0xff]
    %v2171 = vld [vmem:[%s2 + $0x498] sm:$0xff]
    %v2172 = vld [vmem:[%s2 + $0x4a0] sm:$0xff]
    %v2173 = vld [vmem:[%s2 + $0x4a8] sm:$0xff]
    %v2174 = vld [vmem:[%s2 + $0x4b0] sm:$0xff]
    %v2175 = vld [vmem:[%s2 + $0x4b8] sm:$0xff]
    %v2176 = vld [vmem:[%s2 + $0x4c0] sm:$0xff]
    %v2177 = vld [vmem:[%s2 + $0x4c8] sm:$0xff]
    %v2178 = vld [vmem:[%s2 + $0x4d0] sm:$0xff]
    %v2179 = vld [vmem:[%s2 + $0x4d8] sm:$0xff]
    %v2180 = vld [vmem:[%s2 + $0x4e0] sm:$0xff]
    %v2181 = vld [vmem:[%s2 + $0x4e8] sm:$0xff]
    %v2182 = vld [vmem:[%s2 + $0x4f0] sm:$0xff]
    %v2183 = vld [vmem:[%s2 + $0x4f8] sm:$0xff]
    %v2184 = vld [vmem:[%s2 + $0x500] sm:$0xff]
    %v2185 = vld [vmem:[%s2 + $0x508] sm:$0xff]
    %v2186 = vld [vmem:[%s2 + $0x510] sm:$0xff]
    %v2187 = vld [vmem:[%s2 + $0x518] sm:$0xff]
    %v2188 = vld [vmem:[%s2 + $0x520] sm:$0xff]
    %v2189 = vld [vmem:[%s2 + $0x528] sm:$0xff]
    %v2190 = vld [vmem:[%s2 + $0x530] sm:$0xff]
    %v2191 = vld [vmem:[%s2 + $0x538] sm:$0xff]
    %vm2192 = vcmask 1044480
    %v2193 = vrot.slane %v1745, 3
    %v2194 = vrot.slane %v1751, 3
    %v2195 = vsel %vm2192, %v2193, %v2194
    %v2196 = vrot.slane %v1747, 3
    %v2197 = vrot.slane %v1753, 3
    %v2198 = vsel %vm2192, %v2196, %v2197
    %v2201 = vsel %vm1851, %v2198, 0
    %v2203 = vsel %vm1851, %v2197, 0
    %2205 = vmatprep.subr.mxu0 %v2181
    %2206 = vmatpush1.msra.mxu0 %v2180
    %2207 = vmatprep.subr.mxu0 %v2179
    %2208 = vmatpush1.msra.mxu0 %v2178
    %2209 = vmatprep.subr.mxu0 %v2177
    %2210 = vmatpush1.msra.mxu0 %v2176
    %2211 = vmatprep.subr.mxu0 %v2175
    %2212 = vmatpush1.msra.mxu0 %v2174
    %2213 = vmatprep.subr.mxu0 %v2173
    %2214 = vmatpush1.msra.mxu0 %v2172
    %2215 = vmatprep.subr.mxu0 %v2171
    %2216 = vmatpush1.msra.mxu0 %v2170
    %2217 = vmatprep.subr.mxu0 %v2169
    %2218 = vmatpush1.msra.mxu0 %v2168
    %2219 = vmatprep.subr.mxu0 %v2167
    %2220 = vmatpush1.msra.mxu0 %v2166
    %2221 = vmatprep.subr.mxu0 %v2165
    %2222 = vmatpush1.msra.mxu0 %v2164
    %2223 = vmatprep.subr.mxu0 %v2163
    %2224 = vmatpush1.msra.mxu0 %v2162
    %2225 = vmatprep.subr.mxu0 %v2161
    %2226 = vmatpush1.msra.mxu0 %v2160
    %2227 = vmatprep.subr.mxu0 %v2159
    %2228 = vmatpush1.msra.mxu0 %v2158
    %2229 = vmatprep.subr.mxu0 %v2157
    %2230 = vmatpush1.msra.mxu0 %v2156
    %2231 = vmatprep.subr.mxu0 %v2155
    %2232 = vmatpush1.msra.mxu0 %v2154
    %2233 = vmatprep.subr.mxu0 %v2153
    %2234 = vmatpush1.msra.mxu0 %v2152
    %2235 = vmatprep.subr.mxu0 %v2151
    %2236 = vmatpush1.msra.mxu0 %v2150
    %2237 = vmatprep.subr.mxu0 0.0
    %2238 = vmatpush2.msra.mxu0 0.0
    %2239 = vmatprep.subr.mxu0 0.0
    %2240 = vmatpush2.msra.mxu0 0.0
    %2241 = vmatprep.subr.mxu0 0.0
    %2242 = vmatpush2.msra.mxu0 0.0
    %2243 = vmatprep.subr.mxu0 0.0
    %2244 = vmatpush2.msra.mxu0 0.0
    %2245 = vmatprep.subr.mxu0 0.0
    %2246 = vmatpush2.msra.mxu0 0.0
    %2247 = vmatprep.subr.mxu0 0.0
    %2248 = vmatpush2.msra.mxu0 0.0
    %2249 = vmatprep.subr.mxu0 0.0
    %2250 = vmatpush2.msra.mxu0 0.0
    %2251 = vmatprep.subr.mxu0 0.0
    %2252 = vmatpush2.msra.mxu0 0.0
    %2253 = vmatprep.subr.mxu0 0.0
    %2254 = vmatpush2.msra.mxu0 0.0
    %2255 = vmatprep.subr.mxu0 0.0
    %2256 = vmatpush2.msra.mxu0 0.0
    %2257 = vmatprep.subr.mxu0 0.0
    %2258 = vmatpush2.msra.mxu0 0.0
    %2259 = vmatprep.subr.mxu0 %v2191
    %2260 = vmatpush2.msra.mxu0 %v2190
    %2261 = vmatprep.subr.mxu0 %v2189
    %2262 = vmatpush2.msra.mxu0 %v2188
    %2263 = vmatprep.subr.mxu0 %v2187
    %2264 = vmatpush2.msra.mxu0 %v2186
    %2265 = vmatprep.subr.mxu0 %v2185
    %2266 = vmatpush2.msra.mxu0 %v2184
    %2267 = vmatprep.subr.mxu0 %v2183
    %2268 = vmatpush2.msra.mxu0 %v2182
    %2269 = vmatprep.mubr.f32.mxu0 %v2201
    %2270 = vmatmul.mubr.f32.gmra.mxu0 %v2195
    %v2271 = vpop.f32.mrf.mxu0
    %v2272 = vadd.f32 0.0, %v2271
    %v2273 = vpop.f32.mrf.mxu0
    %v2274 = vadd.f32 0.0, %v2273
    %2275 = vmatprep.mubr.f32.mxu0 %v2203
    %2276 = vmatmul.mubr.f32.gmra.mxu0 %v2194
    %v2277 = vpop.f32.mrf.mxu0
    %v2278 = vadd.f32 0.0, %v2277
    %v2279 = vpop.f32.mrf.mxu0
    %v2280 = vadd.f32 0.0, %v2279
    %2281 = vdwg.mxu0
    %v2282 = vadd.f32 %v2146, %v2272
    %v2283 = vadd.f32 %v2147, %v2274
    %v2284 = vadd.f32 %v2148, %v2278
    %v2285 = vadd.f32 %v2149, %v2280
    %v2286 = vld [vmem:[%s2 + $0x540] sm:$0xff]
    %v2287 = vld [vmem:[%s2 + $0x548] sm:$0xff]
    %v2288 = vld [vmem:[%s2 + $0x550] sm:$0xff]
    %v2289 = vld [vmem:[%s2 + $0x558] sm:$0xff]
    %v2290 = vld [vmem:[%s2 + $0x560] sm:$0xff]
    %v2291 = vld [vmem:[%s2 + $0x568] sm:$0xff]
    %v2292 = vld [vmem:[%s2 + $0x570] sm:$0xff]
    %v2293 = vld [vmem:[%s2 + $0x578] sm:$0xff]
    %v2294 = vld [vmem:[%s2 + $0x580] sm:$0xff]
    %v2295 = vld [vmem:[%s2 + $0x588] sm:$0xff]
    %v2296 = vld [vmem:[%s2 + $0x590] sm:$0xff]
    %v2297 = vld [vmem:[%s2 + $0x598] sm:$0xff]
    %v2298 = vld [vmem:[%s2 + $0x5a0] sm:$0xff]
    %v2299 = vld [vmem:[%s2 + $0x5a8] sm:$0xff]
    %v2300 = vld [vmem:[%s2 + $0x5b0] sm:$0xff]
    %v2301 = vld [vmem:[%s2 + $0x5b8] sm:$0xff]
    %v2302 = vld [vmem:[%s2 + $0x5c0] sm:$0xff]
    %v2303 = vld [vmem:[%s2 + $0x5c8] sm:$0xff]
    %v2304 = vld [vmem:[%s2 + $0x5d0] sm:$0xff]
    %v2305 = vld [vmem:[%s2 + $0x5d8] sm:$0xff]
    %v2306 = vld [vmem:[%s2 + $0x5e0] sm:$0xff]
    %v2307 = vld [vmem:[%s2 + $0x5e8] sm:$0xff]
    %v2308 = vld [vmem:[%s2 + $0x5f0] sm:$0xff]
    %v2309 = vld [vmem:[%s2 + $0x5f8] sm:$0xff]
    %v2310 = vld [vmem:[%s2 + $0x600] sm:$0xff]
    %v2311 = vld [vmem:[%s2 + $0x608] sm:$0xff]
    %v2312 = vld [vmem:[%s2 + $0x610] sm:$0xff]
    %v2313 = vld [vmem:[%s2 + $0x618] sm:$0xff]
    %v2314 = vld [vmem:[%s2 + $0x620] sm:$0xff]
    %v2315 = vld [vmem:[%s2 + $0x628] sm:$0xff]
    %v2316 = vld [vmem:[%s2 + $0x630] sm:$0xff]
    %v2317 = vld [vmem:[%s2 + $0x638] sm:$0xff]
    %v2318 = vld [vmem:[%s2 + $0x640] sm:$0xff]
    %v2319 = vld [vmem:[%s2 + $0x648] sm:$0xff]
    %v2320 = vld [vmem:[%s2 + $0x650] sm:$0xff]
    %v2321 = vld [vmem:[%s2 + $0x658] sm:$0xff]
    %v2322 = vld [vmem:[%s2 + $0x660] sm:$0xff]
    %v2323 = vld [vmem:[%s2 + $0x668] sm:$0xff]
    %v2324 = vld [vmem:[%s2 + $0x670] sm:$0xff]
    %v2325 = vld [vmem:[%s2 + $0x678] sm:$0xff]
    %v2326 = vld [vmem:[%s2 + $0x680] sm:$0xff]
    %v2327 = vld [vmem:[%s2 + $0x688] sm:$0xff]
    %v2328 = vrot.slane %v1745, 4
    %v2329 = vrot.slane %v1751, 4
    %v2330 = vsel %vm1594, %v2328, %v2329
    %v2331 = vrot.slane %v1747, 4
    %v2332 = vrot.slane %v1753, 4
    %v2333 = vsel %vm1594, %v2331, %v2332
    %v2336 = vsel %vm1851, %v2333, 0
    %v2338 = vsel %vm1851, %v2332, 0
    %2340 = vmatprep.subr.mxu0 %v2317
    %2341 = vmatpush1.msra.mxu0 %v2316
    %2342 = vmatprep.subr.mxu0 %v2315
    %2343 = vmatpush1.msra.mxu0 %v2314
    %2344 = vmatprep.subr.mxu0 %v2313
    %2345 = vmatpush1.msra.mxu0 %v2312
    %2346 = vmatprep.subr.mxu0 %v2311
    %2347 = vmatpush1.msra.mxu0 %v2310
    %2348 = vmatprep.subr.mxu0 %v2309
    %2349 = vmatpush1.msra.mxu0 %v2308
    %2350 = vmatprep.subr.mxu0 %v2307
    %2351 = vmatpush1.msra.mxu0 %v2306
    %2352 = vmatprep.subr.mxu0 %v2305
    %2353 = vmatpush1.msra.mxu0 %v2304
    %2354 = vmatprep.subr.mxu0 %v2303
    %2355 = vmatpush1.msra.mxu0 %v2302
    %2356 = vmatprep.subr.mxu0 %v2301
    %2357 = vmatpush1.msra.mxu0 %v2300
    %2358 = vmatprep.subr.mxu0 %v2299
    %2359 = vmatpush1.msra.mxu0 %v2298
    %2360 = vmatprep.subr.mxu0 %v2297
    %2361 = vmatpush1.msra.mxu0 %v2296
    %2362 = vmatprep.subr.mxu0 %v2295
    %2363 = vmatpush1.msra.mxu0 %v2294
    %2364 = vmatprep.subr.mxu0 %v2293
    %2365 = vmatpush1.msra.mxu0 %v2292
    %2366 = vmatprep.subr.mxu0 %v2291
    %2367 = vmatpush1.msra.mxu0 %v2290
    %2368 = vmatprep.subr.mxu0 %v2289
    %2369 = vmatpush1.msra.mxu0 %v2288
    %2370 = vmatprep.subr.mxu0 %v2287
    %2371 = vmatpush1.msra.mxu0 %v2286
    %2372 = vmatprep.subr.mxu0 0.0
    %2373 = vmatpush2.msra.mxu0 0.0
    %2374 = vmatprep.subr.mxu0 0.0
    %2375 = vmatpush2.msra.mxu0 0.0
    %2376 = vmatprep.subr.mxu0 0.0
    %2377 = vmatpush2.msra.mxu0 0.0
    %2378 = vmatprep.subr.mxu0 0.0
    %2379 = vmatpush2.msra.mxu0 0.0
    %2380 = vmatprep.subr.mxu0 0.0
    %2381 = vmatpush2.msra.mxu0 0.0
    %2382 = vmatprep.subr.mxu0 0.0
    %2383 = vmatpush2.msra.mxu0 0.0
    %2384 = vmatprep.subr.mxu0 0.0
    %2385 = vmatpush2.msra.mxu0 0.0
    %2386 = vmatprep.subr.mxu0 0.0
    %2387 = vmatpush2.msra.mxu0 0.0
    %2388 = vmatprep.subr.mxu0 0.0
    %2389 = vmatpush2.msra.mxu0 0.0
    %2390 = vmatprep.subr.mxu0 0.0
    %2391 = vmatpush2.msra.mxu0 0.0
    %2392 = vmatprep.subr.mxu0 0.0
    %2393 = vmatpush2.msra.mxu0 0.0
    %2394 = vmatprep.subr.mxu0 %v2327
    %2395 = vmatpush2.msra.mxu0 %v2326
    %2396 = vmatprep.subr.mxu0 %v2325
    %2397 = vmatpush2.msra.mxu0 %v2324
    %2398 = vmatprep.subr.mxu0 %v2323
    %2399 = vmatpush2.msra.mxu0 %v2322
    %2400 = vmatprep.subr.mxu0 %v2321
    %2401 = vmatpush2.msra.mxu0 %v2320
    %2402 = vmatprep.subr.mxu0 %v2319
    %2403 = vmatpush2.msra.mxu0 %v2318
    %2404 = vmatprep.mubr.f32.mxu0 %v2336
    %2405 = vmatmul.mubr.f32.gmra.mxu0 %v2330
    %v2406 = vpop.f32.mrf.mxu0
    %v2407 = vadd.f32 0.0, %v2406
    %v2408 = vpop.f32.mrf.mxu0
    %v2409 = vadd.f32 0.0, %v2408
    %2410 = vmatprep.mubr.f32.mxu0 %v2338
    %2411 = vmatmul.mubr.f32.gmra.mxu0 %v2329
    %v2412 = vpop.f32.mrf.mxu0
    %v2413 = vadd.f32 0.0, %v2412
    %v2414 = vpop.f32.mrf.mxu0
    %v2415 = vadd.f32 0.0, %v2414
    %2416 = vdwg.mxu0
    %v2417 = vadd.f32 %v2282, %v2407
    %v2418 = vadd.f32 %v2283, %v2409
    %v2419 = vadd.f32 %v2284, %v2413
    %v2420 = vadd.f32 %v2285, %v2415
    %v2421 = vadd.f32 %v2417, %v42
    %v2422 = vadd.f32 %v2418, %v46
    %v2423 = vadd.f32 %v2419, %v42
    %v2424 = vadd.f32 %v2420, %v46
    %v2425 = vmax.f32 %v2421, 0.0
    %v2426 = vmax.f32 %v2422, 0.0
    %v2427 = vmax.f32 %v2423, 0.0
    %v2428 = vmax.f32 %v2424, 0.0
    %v2433 = vrot.slane %v2425, 1
    %v2434 = vrot.slane %v2427, 1
    %v2435 = vsel %vm1337, %v2433, %v2434
    %v2436 = vrot.slane %v2426, 1
    %v2437 = vrot.slane %v2428, 1
    %v2438 = vsel %vm1337, %v2436, %v2437
    %v2443 = vmax.f32 %v2425, %v2435
    %v2444 = vmax.f32 %v2426, %v2438
    %v2445 = vmax.f32 %v2427, %v2434
    %v2446 = vmax.f32 %v2428, %v2437
    %vm2447 = vcmask 72704
    %v2449 = vsel %vm2447, %v133, 0
    %vm2451 = vcmask 1040384
    %v2453 = vsel %vm2451, %v2445, 0
    %v2456 = vsel %vm2451, %v2446, 0
    %2458 = vmatprep.subr.mxu0 0.0
    %2459 = vmatpush1.msra.mxu0 0.0
    %2460 = vmatprep.subr.mxu0 0.0
    %2461 = vmatpush1.msra.mxu0 0.0
    %2462 = vmatprep.subr.mxu0 0.0
    %2463 = vmatpush1.msra.mxu0 0.0
    %2464 = vmatprep.subr.mxu0 0.0
    %2465 = vmatpush1.msra.mxu0 0.0
    %2466 = vmatprep.subr.mxu0 0.0
    %2467 = vmatpush1.msra.mxu0 0.0
    %2468 = vmatprep.subr.mxu0 0.0
    %2469 = vmatpush1.msra.mxu0 0.0
    %2470 = vmatprep.subr.mxu0 0.0
    %2471 = vmatpush1.msra.mxu0 0.0
    %2472 = vmatprep.subr.mxu0 0.0
    %2473 = vmatpush1.msra.mxu0 0.0
    %2474 = vmatprep.subr.mxu0 0.0
    %2475 = vmatpush1.msra.mxu0 0.0
    %2476 = vmatprep.subr.mxu0 0.0
    %2477 = vmatpush1.msra.mxu0 0.0
    %2478 = vmatprep.subr.mxu0 0.0
    %2479 = vmatpush1.msra.mxu0 0.0
    %2480 = vmatprep.subr.mxu0 0.0
    %2481 = vmatpush1.msra.mxu0 0.0
    %2482 = vmatprep.subr.mxu0 0.0
    %2483 = vmatpush1.msra.mxu0 0.0
    %2484 = vmatprep.subr.mxu0 0.0
    %2485 = vmatpush1.msra.mxu0 0.0
    %2486 = vmatprep.subr.mxu0 %v2456
    %2487 = vmatpush1.msra.mxu0 %v2453
    %2488 = vmatprep.subr.mxu0 %v2444
    %2489 = vmatpush1.msra.mxu0 %v2443
    %2490 = vmatprep.subr.mxu0 0.0
    %2491 = vmatpush2.msra.mxu0 0.0
    %2492 = vmatprep.subr.mxu0 0.0
    %2493 = vmatpush2.msra.mxu0 0.0
    %2494 = vmatprep.subr.mxu0 0.0
    %2495 = vmatpush2.msra.mxu0 0.0
    %2496 = vmatprep.subr.mxu0 0.0
    %2497 = vmatpush2.msra.mxu0 0.0
    %2498 = vmatprep.subr.mxu0 0.0
    %2499 = vmatpush2.msra.mxu0 0.0
    %2500 = vmatprep.subr.mxu0 0.0
    %2501 = vmatpush2.msra.mxu0 0.0
    %2502 = vmatprep.subr.mxu0 0.0
    %2503 = vmatpush2.msra.mxu0 0.0
    %2504 = vmatprep.subr.mxu0 0.0
    %2505 = vmatpush2.msra.mxu0 0.0
    %2506 = vmatprep.subr.mxu0 0.0
    %2507 = vmatpush2.msra.mxu0 0.0
    %2508 = vmatprep.subr.mxu0 0.0
    %2509 = vmatpush2.msra.mxu0 0.0
    %2510 = vmatprep.subr.mxu0 0.0
    %2511 = vmatpush2.msra.mxu0 0.0
    %2512 = vmatprep.subr.mxu0 0.0
    %2513 = vmatpush2.msra.mxu0 0.0
    %2514 = vmatprep.subr.mxu0 0.0
    %2515 = vmatpush2.msra.mxu0 0.0
    %2516 = vmatprep.subr.mxu0 0.0
    %2517 = vmatpush2.msra.mxu0 0.0
    %2518 = vmatprep.subr.mxu0 0.0
    %2519 = vmatpush2.msra.mxu0 0.0
    %2520 = vmatprep.subr.mxu0 0.0
    %2521 = vmatpush2.msra.mxu0 0.0
    %2522 = vmatprep.mubr.f32.mxu0 0.0
    %2523 = vmatmul.mubr.f32.gmra.mxu0 %v2449
    %v2524 = vpop.f32.mrf.mxu0
    %v2525 = vadd.f32 0.0, %v2524
    %v2526 = vpop.f32.mrf.mxu0
    %v2527 = vadd.f32 0.0, %v2526
    %2528 = vdwg.mxu0
    %2531 = vrot.lane.b32.xlu0 %v2525, 112
    %v2532 = vpop.permute.xlu0 %2531
    %2533 = vrot.lane.b32.xlu0 %v2527, 112
    %v2534 = vpop.permute.xlu0 %2533
    %vm2535 = vcmask 916480
    %v2536 = vsel %vm2535, %v2532, %v2534
    %v2539 = vmax.f32 %v2525, %v2536
    %v2540 = vmax.f32 %v2527, %v2534
    %v2543 = vcombine.low %v2539, %v2540
    %v2545 = vunpack.c.l.s4 1966171168
    %v2546 = vunpack.c.0.s8 %v2545
    %v2547 = vlaneseq
    %v2548 = vshrl.u32 %v2547, 7
    %v2549 = vsub.s32 %v2546, %v2548
    %v2550 = vrot.slane %v2543, %v2549
    %v2552 = vunpack.c.l.s4 1966171168
    %v2553 = vunpack.c.0.s8 %v2552
    %v2554 = vlaneseq
    %v2555 = vshrl.u32 %v2554, 7
    %v2556 = vsub.s32 %v2553, %v2555
    %v2557 = vrot.slane %v2550, %v2556
    %v2559 = vlaneseq
    %vm2560 = vcmp.ge.s32.totalorder %v2559, 0
    %vm2561 = vcmp.lt.s32.totalorder %v2559, 144
    %vm2562 = vmand %vm2560, %vm2561
    %2563 = vst.msk [vmem:[#allocation2] ss:$2 sm:$0x3] %vm2562, %v2557
    %v2564 = vcombine.high %v2550, %v2550
    %v2566 = vunpack.c.l.s4 1966171168
    %v2567 = vunpack.c.0.s8 %v2566
    %v2568 = vlaneseq
    %v2569 = vshrl.u32 %v2568, 7
    %v2570 = vsub.s32 %v2567, %v2569
    %v2571 = vrot.slane %v2564, %v2570
    %s2573 = scalar_lea.vmem [#allocation2], 4
    %2574 = vst.msk [vmem:[%s2573] ss:$2 sm:$0x3] %vm2562, %v2571
    %v2575 = vcombine.high %v2557, %v2557
    %s2577 = scalar_lea.vmem [#allocation2], 8
    %2578 = vst.msk [vmem:[%s2577] ss:$2 sm:$0x3] %vm2562, %v2575
    %v2579 = vcombine.high %v2571, %v2571
    %s2581 = scalar_lea.vmem [#allocation2], 12
    %2582 = vst.msk [vmem:[%s2581] ss:$2 sm:$0x3] %vm2562, %v2579
    %v2583 = vcombine.high %v2539, %v2540
    %v2585 = vunpack.c.l.s4 1966171168
    %v2586 = vunpack.c.0.s8 %v2585
    %v2587 = vlaneseq
    %v2588 = vshrl.u32 %v2587, 7
    %v2589 = vsub.s32 %v2586, %v2588
    %v2590 = vrot.slane %v2583, %v2589
    %v2592 = vunpack.c.l.s4 1966171168
    %v2593 = vunpack.c.0.s8 %v2592
    %v2594 = vlaneseq
    %v2595 = vshrl.u32 %v2594, 7
    %v2596 = vsub.s32 %v2593, %v2595
    %v2597 = vrot.slane %v2590, %v2596
    %s2599 = scalar_lea.vmem [#allocation2], 16
    %2600 = vst.msk [vmem:[%s2599] ss:$2 sm:$0x3] %vm2562, %v2597
    %v2601 = vld [vmem:[%s0 + $0x20] sm:$0xff]
    %v2602 = vld [vmem:[%s0 + $0x28] sm:$0xff]
    %v2603 = vld [vmem:[%s0 + $0x30] sm:$0xff]
    %v2604 = vld [vmem:[%s0 + $0x38] sm:$0xf]
    %v2605 = vld [vmem:[%s1] sm:$0xff]
    %v2606 = vld [vmem:[%s1 + $0x8] sm:$0xff]
    %v2607 = vld [vmem:[%s1 + $0x10] sm:$0xff]
    %v2608 = vld [vmem:[%s1 + $0x18] sm:$0xff]
    %v2609 = vld [vmem:[%s1 + $0x20] sm:$0xff]
    %v2610 = vld [vmem:[%s1 + $0x28] sm:$0xff]
    %v2611 = vld [vmem:[%s1 + $0x30] sm:$0xff]
    %v2612 = vld [vmem:[%s1 + $0x38] sm:$0xff]
    %v2613 = vld [vmem:[%s1 + $0x40] sm:$0xff]
    %v2614 = vld [vmem:[%s1 + $0x48] sm:$0xff]
    %v2615 = vld [vmem:[%s1 + $0x50] sm:$0xff]
    %v2616 = vld [vmem:[%s1 + $0x58] sm:$0xff]
    %v2617 = vld [vmem:[%s1 + $0x60] sm:$0xff]
    %v2618 = vld [vmem:[%s1 + $0x68] sm:$0xff]
    %v2619 = vld [vmem:[%s1 + $0x70] sm:$0xff]
    %v2620 = vld [vmem:[%s1 + $0x78] sm:$0xff]
    %v2621 = vld [vmem:[%s1 + $0x80] sm:$0xff]
    %v2622 = vld [vmem:[%s1 + $0x88] sm:$0xff]
    %v2623 = vld [vmem:[%s1 + $0x90] sm:$0xff]
    %v2624 = vld [vmem:[%s1 + $0x98] sm:$0xff]
    %v2625 = vld [vmem:[%s1 + $0xa0] sm:$0xff]
    %v2626 = vld [vmem:[%s1 + $0xa8] sm:$0xff]
    %v2627 = vld [vmem:[%s1 + $0xb0] sm:$0xff]
    %v2628 = vld [vmem:[%s1 + $0xb8] sm:$0xff]
    %v2629 = vld [vmem:[%s1 + $0xc0] sm:$0xff]
    %v2630 = vld [vmem:[%s1 + $0xc8] sm:$0xff]
    %v2631 = vld [vmem:[%s1 + $0xd0] sm:$0xff]
    %v2632 = vld [vmem:[%s1 + $0xd8] sm:$0xff]
    %v2633 = vld [vmem:[%s1 + $0xe0] sm:$0xff]
    %v2634 = vld [vmem:[%s1 + $0xe8] sm:$0xff]
    %v2635 = vld [vmem:[%s1 + $0xf0] sm:$0xff]
    %v2636 = vld [vmem:[%s1 + $0xf8] sm:$0xff]
    %v2637 = vld [vmem:[%s1 + $0x100] sm:$0xff]
    %v2638 = vld [vmem:[%s1 + $0x108] sm:$0xff]
    %v2639 = vld [vmem:[%s1 + $0x110] sm:$0xff]
    %v2640 = vld [vmem:[%s1 + $0x118] sm:$0xff]
    %v2641 = vld [vmem:[%s0 + $0x21] sm:$0xff]
    %v2642 = vld [vmem:[%s0 + $0x29] sm:$0xff]
    %v2643 = vld [vmem:[%s0 + $0x31] sm:$0xff]
    %v2644 = vld [vmem:[%s0 + $0x39] sm:$0xf]
    %v2645 = vld [vmem:[%s1 + $0x120] sm:$0xff]
    %v2646 = vld [vmem:[%s1 + $0x128] sm:$0xff]
    %v2647 = vld [vmem:[%s1 + $0x130] sm:$0xff]
    %v2648 = vld [vmem:[%s1 + $0x138] sm:$0xff]
    %v2649 = vld [vmem:[%s1 + $0x140] sm:$0xff]
    %v2650 = vld [vmem:[%s1 + $0x148] sm:$0xff]
    %v2651 = vld [vmem:[%s1 + $0x150] sm:$0xff]
    %v2652 = vld [vmem:[%s1 + $0x158] sm:$0xff]
    %v2653 = vld [vmem:[%s1 + $0x160] sm:$0xff]
    %v2654 = vld [vmem:[%s1 + $0x168] sm:$0xff]
    %v2655 = vld [vmem:[%s1 + $0x170] sm:$0xff]
    %v2656 = vld [vmem:[%s1 + $0x178] sm:$0xff]
    %v2657 = vld [vmem:[%s1 + $0x180] sm:$0xff]
    %v2658 = vld [vmem:[%s1 + $0x188] sm:$0xff]
    %v2659 = vld [vmem:[%s1 + $0x190] sm:$0xff]
    %v2660 = vld [vmem:[%s1 + $0x198] sm:$0xff]
    %v2661 = vld [vmem:[%s1 + $0x1a0] sm:$0xff]
    %v2662 = vld [vmem:[%s1 + $0x1a8] sm:$0xff]
    %v2663 = vld [vmem:[%s1 + $0x1b0] sm:$0xff]
    %v2664 = vld [vmem:[%s1 + $0x1b8] sm:$0xff]
    %v2665 = vld [vmem:[%s1 + $0x1c0] sm:$0xff]
    %v2666 = vld [vmem:[%s1 + $0x1c8] sm:$0xff]
    %v2667 = vld [vmem:[%s1 + $0x1d0] sm:$0xff]
    %v2668 = vld [vmem:[%s1 + $0x1d8] sm:$0xff]
    %v2669 = vld [vmem:[%s1 + $0x1e0] sm:$0xff]
    %v2670 = vld [vmem:[%s1 + $0x1e8] sm:$0xff]
    %v2671 = vld [vmem:[%s1 + $0x1f0] sm:$0xff]
    %v2672 = vld [vmem:[%s1 + $0x1f8] sm:$0xff]
    %v2673 = vld [vmem:[%s1 + $0x200] sm:$0xff]
    %v2674 = vld [vmem:[%s1 + $0x208] sm:$0xff]
    %v2675 = vld [vmem:[%s1 + $0x210] sm:$0xff]
    %v2676 = vld [vmem:[%s1 + $0x218] sm:$0xff]
    %v2677 = vld [vmem:[%s1 + $0x220] sm:$0xff]
    %v2678 = vld [vmem:[%s1 + $0x228] sm:$0xff]
    %v2679 = vld [vmem:[%s1 + $0x230] sm:$0xff]
    %v2680 = vld [vmem:[%s1 + $0x238] sm:$0xff]
    %v2682 = vsel %vm214, %v2641, 0
    %v2685 = vsel %vm214, %v2642, 0
    %v2688 = vsel %vm214, %v2643, 0
    %v2691 = vsel %vm214, %v2644, 0
    %2693 = vmatprep.subr.mxu0 0.0
    %2694 = vmatpush1.msra.mxu0 0.0
    %2695 = vmatprep.subr.mxu0 0.0
    %2696 = vmatpush1.msra.mxu0 0.0
    %2697 = vmatprep.subr.mxu0 0.0
    %2698 = vmatpush1.msra.mxu0 0.0
    %2699 = vmatprep.subr.mxu0 0.0
    %2700 = vmatpush1.msra.mxu0 0.0
    %2701 = vmatprep.subr.mxu0 %v2679
    %2702 = vmatpush1.msra.mxu0 %v2678
    %2703 = vmatprep.subr.mxu0 %v2676
    %2704 = vmatpush1.msra.mxu0 %v2675
    %2705 = vmatprep.subr.mxu0 %v2673
    %2706 = vmatpush1.msra.mxu0 %v2672
    %2707 = vmatprep.subr.mxu0 %v2670
    %2708 = vmatpush1.msra.mxu0 %v2669
    %2709 = vmatprep.subr.mxu0 %v2667
    %2710 = vmatpush1.msra.mxu0 %v2666
    %2711 = vmatprep.subr.mxu0 %v2664
    %2712 = vmatpush1.msra.mxu0 %v2663
    %2713 = vmatprep.subr.mxu0 %v2661
    %2714 = vmatpush1.msra.mxu0 %v2660
    %2715 = vmatprep.subr.mxu0 %v2658
    %2716 = vmatpush1.msra.mxu0 %v2657
    %2717 = vmatprep.subr.mxu0 %v2655
    %2718 = vmatpush1.msra.mxu0 %v2654
    %2719 = vmatprep.subr.mxu0 %v2652
    %2720 = vmatpush1.msra.mxu0 %v2651
    %2721 = vmatprep.subr.mxu0 %v2649
    %2722 = vmatpush1.msra.mxu0 %v2648
    %2723 = vmatprep.subr.mxu0 %v2646
    %2724 = vmatpush1.msra.mxu0 %v2645
    %2725 = vmatprep.subr.mxu0 0.0
    %2726 = vmatpush2.msra.mxu0 0.0
    %2727 = vmatprep.subr.mxu0 0.0
    %2728 = vmatpush2.msra.mxu0 0.0
    %2729 = vmatprep.subr.mxu0 0.0
    %2730 = vmatpush2.msra.mxu0 0.0
    %2731 = vmatprep.subr.mxu0 0.0
    %2732 = vmatpush2.msra.mxu0 0.0
    %2733 = vmatprep.subr.mxu0 0.0
    %2734 = vmatpush2.msra.mxu0 0.0
    %2735 = vmatprep.subr.mxu0 0.0
    %2736 = vmatpush2.msra.mxu0 0.0
    %2737 = vmatprep.subr.mxu0 0.0
    %2738 = vmatpush2.msra.mxu0 0.0
    %2739 = vmatprep.subr.mxu0 0.0
    %2740 = vmatpush2.msra.mxu0 0.0
    %2741 = vmatprep.subr.mxu0 0.0
    %2742 = vmatpush2.msra.mxu0 0.0
    %2743 = vmatprep.subr.mxu0 0.0
    %2744 = vmatpush2.msra.mxu0 0.0
    %2745 = vmatprep.subr.mxu0 0.0
    %2746 = vmatpush2.msra.mxu0 0.0
    %2747 = vmatprep.subr.mxu0 0.0
    %2748 = vmatpush2.msra.mxu0 0.0
    %2749 = vmatprep.subr.mxu0 0.0
    %2750 = vmatpush2.msra.mxu0 0.0
    %2751 = vmatprep.subr.mxu0 0.0
    %2752 = vmatpush2.msra.mxu0 0.0
    %2753 = vmatprep.subr.mxu0 0.0
    %2754 = vmatpush2.msra.mxu0 0.0
    %2755 = vmatprep.subr.mxu0 0.0
    %2756 = vmatpush2.msra.mxu0 0.0
    %2757 = vmatprep.mubr.f32.mxu0 0.0
    %2758 = vmatmul.mubr.f32.gmra.mxu0 %v2682
    %v2759 = vpop.f32.mrf.mxu0
    %v2760 = vadd.f32 0.0, %v2759
    %v2761 = vpop.f32.mrf.mxu0
    %v2762 = vadd.f32 0.0, %v2761
    %2763 = vmatprep.mubr.f32.mxu0 0.0
    %2764 = vmatmul.mubr.f32.gmra.mxu0 %v2685
    %v2765 = vpop.f32.mrf.mxu0
    %v2766 = vadd.f32 0.0, %v2765
    %v2767 = vpop.f32.mrf.mxu0
    %v2768 = vadd.f32 0.0, %v2767
    %2769 = vmatprep.mubr.f32.mxu0 0.0
    %2770 = vmatmul.mubr.f32.gmra.mxu0 %v2688
    %v2771 = vpop.f32.mrf.mxu0
    %v2772 = vadd.f32 0.0, %v2771
    %v2773 = vpop.f32.mrf.mxu0
    %v2774 = vadd.f32 0.0, %v2773
    %2775 = vmatprep.mubr.f32.mxu0 0.0
    %2776 = vmatmul.mubr.f32.gmra.mxu0 %v2691
    %v2777 = vpop.f32.mrf.mxu0
    %v2778 = vadd.f32 0.0, %v2777
    %v2779 = vpop.f32.mrf.mxu0
    %v2780 = vadd.f32 0.0, %v2779
    %2781 = vdwg.mxu0
    %2782 = vmatprep.subr.mxu0 0.0
    %2783 = vmatpush1.msra.mxu0 0.0
    %2784 = vmatprep.subr.mxu0 0.0
    %2785 = vmatpush1.msra.mxu0 0.0
    %2786 = vmatprep.subr.mxu0 0.0
    %2787 = vmatpush1.msra.mxu0 0.0
    %2788 = vmatprep.subr.mxu0 0.0
    %2789 = vmatpush1.msra.mxu0 0.0
    %2790 = vmatprep.subr.mxu0 0.0
    %2791 = vmatpush1.msra.mxu0 %v2680
    %2792 = vmatprep.subr.mxu0 0.0
    %2793 = vmatpush1.msra.mxu0 %v2677
    %2794 = vmatprep.subr.mxu0 0.0
    %2795 = vmatpush1.msra.mxu0 %v2674
    %2796 = vmatprep.subr.mxu0 0.0
    %2797 = vmatpush1.msra.mxu0 %v2671
    %2798 = vmatprep.subr.mxu0 0.0
    %2799 = vmatpush1.msra.mxu0 %v2668
    %2800 = vmatprep.subr.mxu0 0.0
    %2801 = vmatpush1.msra.mxu0 %v2665
    %2802 = vmatprep.subr.mxu0 0.0
    %2803 = vmatpush1.msra.mxu0 %v2662
    %2804 = vmatprep.subr.mxu0 0.0
    %2805 = vmatpush1.msra.mxu0 %v2659
    %2806 = vmatprep.subr.mxu0 0.0
    %2807 = vmatpush1.msra.mxu0 %v2656
    %2808 = vmatprep.subr.mxu0 0.0
    %2809 = vmatpush1.msra.mxu0 %v2653
    %2810 = vmatprep.subr.mxu0 0.0
    %2811 = vmatpush1.msra.mxu0 %v2650
    %2812 = vmatprep.subr.mxu0 0.0
    %2813 = vmatpush1.msra.mxu0 %v2647
    %2814 = vmatprep.subr.mxu0 0.0
    %2815 = vmatpush2.msra.mxu0 0.0
    %2816 = vmatprep.subr.mxu0 0.0
    %2817 = vmatpush2.msra.mxu0 0.0
    %2818 = vmatprep.subr.mxu0 0.0
    %2819 = vmatpush2.msra.mxu0 0.0
    %2820 = vmatprep.subr.mxu0 0.0
    %2821 = vmatpush2.msra.mxu0 0.0
    %2822 = vmatprep.subr.mxu0 0.0
    %2823 = vmatpush2.msra.mxu0 0.0
    %2824 = vmatprep.subr.mxu0 0.0
    %2825 = vmatpush2.msra.mxu0 0.0
    %2826 = vmatprep.subr.mxu0 0.0
    %2827 = vmatpush2.msra.mxu0 0.0
    %2828 = vmatprep.subr.mxu0 0.0
    %2829 = vmatpush2.msra.mxu0 0.0
    %2830 = vmatprep.subr.mxu0 0.0
    %2831 = vmatpush2.msra.mxu0 0.0
    %2832 = vmatprep.subr.mxu0 0.0
    %2833 = vmatpush2.msra.mxu0 0.0
    %2834 = vmatprep.subr.mxu0 0.0
    %2835 = vmatpush2.msra.mxu0 0.0
    %2836 = vmatprep.subr.mxu0 0.0
    %2837 = vmatpush2.msra.mxu0 0.0
    %2838 = vmatprep.subr.mxu0 0.0
    %2839 = vmatpush2.msra.mxu0 0.0
    %2840 = vmatprep.subr.mxu0 0.0
    %2841 = vmatpush2.msra.mxu0 0.0
    %2842 = vmatprep.subr.mxu0 0.0
    %2843 = vmatpush2.msra.mxu0 0.0
    %2844 = vmatprep.subr.mxu0 0.0
    %2845 = vmatpush2.msra.mxu0 0.0
    %2846 = vmatprep.mubr.f32.mxu0 0.0
    %2847 = vmatmul.mubr.f32.gmra.mxu0 %v2682
    %v2848 = vpop.f32.mrf.mxu0
    %v2849 = vadd.f32 0.0, %v2848
    %v2850 = vpop.f32.mrf.mxu0
    %2851 = vmatprep.mubr.f32.mxu0 0.0
    %2852 = vmatmul.mubr.f32.gmra.mxu0 %v2685
    %v2853 = vpop.f32.mrf.mxu0
    %v2854 = vadd.f32 0.0, %v2853
    %v2855 = vpop.f32.mrf.mxu0
    %2856 = vmatprep.mubr.f32.mxu0 0.0
    %2857 = vmatmul.mubr.f32.gmra.mxu0 %v2688
    %v2858 = vpop.f32.mrf.mxu0
    %v2859 = vadd.f32 0.0, %v2858
    %v2860 = vpop.f32.mrf.mxu0
    %2861 = vmatprep.mubr.f32.mxu0 0.0
    %2862 = vmatmul.mubr.f32.gmra.mxu0 %v2691
    %v2863 = vpop.f32.mrf.mxu0
    %v2864 = vadd.f32 0.0, %v2863
    %v2865 = vpop.f32.mrf.mxu0
    %2866 = vdwg.mxu0
    %v2868 = vsel %vm214, %v2601, 0
    %v2871 = vsel %vm214, %v2602, 0
    %v2874 = vsel %vm214, %v2603, 0
    %v2877 = vsel %vm214, %v2604, 0
    %2879 = vmatprep.subr.mxu0 0.0
    %2880 = vmatpush1.msra.mxu0 0.0
    %2881 = vmatprep.subr.mxu0 0.0
    %2882 = vmatpush1.msra.mxu0 0.0
    %2883 = vmatprep.subr.mxu0 0.0
    %2884 = vmatpush1.msra.mxu0 0.0
    %2885 = vmatprep.subr.mxu0 0.0
    %2886 = vmatpush1.msra.mxu0 0.0
    %2887 = vmatprep.subr.mxu0 %v2639
    %2888 = vmatpush1.msra.mxu0 %v2638
    %2889 = vmatprep.subr.mxu0 %v2636
    %2890 = vmatpush1.msra.mxu0 %v2635
    %2891 = vmatprep.subr.mxu0 %v2633
    %2892 = vmatpush1.msra.mxu0 %v2632
    %2893 = vmatprep.subr.mxu0 %v2630
    %2894 = vmatpush1.msra.mxu0 %v2629
    %2895 = vmatprep.subr.mxu0 %v2627
    %2896 = vmatpush1.msra.mxu0 %v2626
    %2897 = vmatprep.subr.mxu0 %v2624
    %2898 = vmatpush1.msra.mxu0 %v2623
    %2899 = vmatprep.subr.mxu0 %v2621
    %2900 = vmatpush1.msra.mxu0 %v2620
    %2901 = vmatprep.subr.mxu0 %v2618
    %2902 = vmatpush1.msra.mxu0 %v2617
    %2903 = vmatprep.subr.mxu0 %v2615
    %2904 = vmatpush1.msra.mxu0 %v2614
    %2905 = vmatprep.subr.mxu0 %v2612
    %2906 = vmatpush1.msra.mxu0 %v2611
    %2907 = vmatprep.subr.mxu0 %v2609
    %2908 = vmatpush1.msra.mxu0 %v2608
    %2909 = vmatprep.subr.mxu0 %v2606
    %2910 = vmatpush1.msra.mxu0 %v2605
    %2911 = vmatprep.subr.mxu0 0.0
    %2912 = vmatpush2.msra.mxu0 0.0
    %2913 = vmatprep.subr.mxu0 0.0
    %2914 = vmatpush2.msra.mxu0 0.0
    %2915 = vmatprep.subr.mxu0 0.0
    %2916 = vmatpush2.msra.mxu0 0.0
    %2917 = vmatprep.subr.mxu0 0.0
    %2918 = vmatpush2.msra.mxu0 0.0
    %2919 = vmatprep.subr.mxu0 0.0
    %2920 = vmatpush2.msra.mxu0 0.0
    %2921 = vmatprep.subr.mxu0 0.0
    %2922 = vmatpush2.msra.mxu0 0.0
    %2923 = vmatprep.subr.mxu0 0.0
    %2924 = vmatpush2.msra.mxu0 0.0
    %2925 = vmatprep.subr.mxu0 0.0
    %2926 = vmatpush2.msra.mxu0 0.0
    %2927 = vmatprep.subr.mxu0 0.0
    %2928 = vmatpush2.msra.mxu0 0.0
    %2929 = vmatprep.subr.mxu0 0.0
    %2930 = vmatpush2.msra.mxu0 0.0
    %2931 = vmatprep.subr.mxu0 0.0
    %2932 = vmatpush2.msra.mxu0 0.0
    %2933 = vmatprep.subr.mxu0 0.0
    %2934 = vmatpush2.msra.mxu0 0.0
    %2935 = vmatprep.subr.mxu0 0.0
    %2936 = vmatpush2.msra.mxu0 0.0
    %2937 = vmatprep.subr.mxu0 0.0
    %2938 = vmatpush2.msra.mxu0 0.0
    %2939 = vmatprep.subr.mxu0 0.0
    %2940 = vmatpush2.msra.mxu0 0.0
    %2941 = vmatprep.subr.mxu0 0.0
    %2942 = vmatpush2.msra.mxu0 0.0
    %2943 = vmatprep.mubr.f32.mxu0 0.0
    %2944 = vmatmul.mubr.f32.gmra.mxu0 %v2868
    %v2945 = vpop.f32.mrf.mxu0
    %v2946 = vadd.f32 %v2760, %v2945
    %v2947 = vpop.f32.mrf.mxu0
    %v2948 = vadd.f32 %v2762, %v2947
    %2949 = vmatprep.mubr.f32.mxu0 0.0
    %2950 = vmatmul.mubr.f32.gmra.mxu0 %v2871
    %v2951 = vpop.f32.mrf.mxu0
    %v2952 = vadd.f32 %v2766, %v2951
    %v2953 = vpop.f32.mrf.mxu0
    %v2954 = vadd.f32 %v2768, %v2953
    %2955 = vmatprep.mubr.f32.mxu0 0.0
    %2956 = vmatmul.mubr.f32.gmra.mxu0 %v2874
    %v2957 = vpop.f32.mrf.mxu0
    %v2958 = vadd.f32 %v2772, %v2957
    %v2959 = vpop.f32.mrf.mxu0
    %v2960 = vadd.f32 %v2774, %v2959
    %2961 = vmatprep.mubr.f32.mxu0 0.0
    %2962 = vmatmul.mubr.f32.gmra.mxu0 %v2877
    %v2963 = vpop.f32.mrf.mxu0
    %v2964 = vadd.f32 %v2778, %v2963
    %v2965 = vpop.f32.mrf.mxu0
    %v2966 = vadd.f32 %v2780, %v2965
    %2967 = vdwg.mxu0
    %2968 = vmatprep.subr.mxu0 0.0
    %2969 = vmatpush1.msra.mxu0 0.0
    %2970 = vmatprep.subr.mxu0 0.0
    %2971 = vmatpush1.msra.mxu0 0.0
    %2972 = vmatprep.subr.mxu0 0.0
    %2973 = vmatpush1.msra.mxu0 0.0
    %2974 = vmatprep.subr.mxu0 0.0
    %2975 = vmatpush1.msra.mxu0 0.0
    %2976 = vmatprep.subr.mxu0 0.0
    %2977 = vmatpush1.msra.mxu0 %v2640
    %2978 = vmatprep.subr.mxu0 0.0
    %2979 = vmatpush1.msra.mxu0 %v2637
    %2980 = vmatprep.subr.mxu0 0.0
    %2981 = vmatpush1.msra.mxu0 %v2634
    %2982 = vmatprep.subr.mxu0 0.0
    %2983 = vmatpush1.msra.mxu0 %v2631
    %2984 = vmatprep.subr.mxu0 0.0
    %2985 = vmatpush1.msra.mxu0 %v2628
    %2986 = vmatprep.subr.mxu0 0.0
    %2987 = vmatpush1.msra.mxu0 %v2625
    %2988 = vmatprep.subr.mxu0 0.0
    %2989 = vmatpush1.msra.mxu0 %v2622
    %2990 = vmatprep.subr.mxu0 0.0
    %2991 = vmatpush1.msra.mxu0 %v2619
    %2992 = vmatprep.subr.mxu0 0.0
    %2993 = vmatpush1.msra.mxu0 %v2616
    %2994 = vmatprep.subr.mxu0 0.0
    %2995 = vmatpush1.msra.mxu0 %v2613
    %2996 = vmatprep.subr.mxu0 0.0
    %2997 = vmatpush1.msra.mxu0 %v2610
    %2998 = vmatprep.subr.mxu0 0.0
    %2999 = vmatpush1.msra.mxu0 %v2607
    %3000 = vmatprep.subr.mxu0 0.0
    %3001 = vmatpush2.msra.mxu0 0.0
    %3002 = vmatprep.subr.mxu0 0.0
    %3003 = vmatpush2.msra.mxu0 0.0
    %3004 = vmatprep.subr.mxu0 0.0
    %3005 = vmatpush2.msra.mxu0 0.0
    %3006 = vmatprep.subr.mxu0 0.0
    %3007 = vmatpush2.msra.mxu0 0.0
    %3008 = vmatprep.subr.mxu0 0.0
    %3009 = vmatpush2.msra.mxu0 0.0
    %3010 = vmatprep.subr.mxu0 0.0
    %3011 = vmatpush2.msra.mxu0 0.0
    %3012 = vmatprep.subr.mxu0 0.0
    %3013 = vmatpush2.msra.mxu0 0.0
    %3014 = vmatprep.subr.mxu0 0.0
    %3015 = vmatpush2.msra.mxu0 0.0
    %3016 = vmatprep.subr.mxu0 0.0
    %3017 = vmatpush2.msra.mxu0 0.0
    %3018 = vmatprep.subr.mxu0 0.0
    %3019 = vmatpush2.msra.mxu0 0.0
    %3020 = vmatprep.subr.mxu0 0.0
    %3021 = vmatpush2.msra.mxu0 0.0
    %3022 = vmatprep.subr.mxu0 0.0
    %3023 = vmatpush2.msra.mxu0 0.0
    %3024 = vmatprep.subr.mxu0 0.0
    %3025 = vmatpush2.msra.mxu0 0.0
    %3026 = vmatprep.subr.mxu0 0.0
    %3027 = vmatpush2.msra.mxu0 0.0
    %3028 = vmatprep.subr.mxu0 0.0
    %3029 = vmatpush2.msra.mxu0 0.0
    %3030 = vmatprep.subr.mxu0 0.0
    %3031 = vmatpush2.msra.mxu0 0.0
    %3032 = vmatprep.mubr.f32.mxu0 0.0
    %3033 = vmatmul.mubr.f32.gmra.mxu0 %v2868
    %v3034 = vpop.f32.mrf.mxu0
    %v3035 = vadd.f32 %v2849, %v3034
    %v3036 = vpop.f32.mrf.mxu0
    %3037 = vmatprep.mubr.f32.mxu0 0.0
    %3038 = vmatmul.mubr.f32.gmra.mxu0 %v2871
    %v3039 = vpop.f32.mrf.mxu0
    %v3040 = vadd.f32 %v2854, %v3039
    %v3041 = vpop.f32.mrf.mxu0
    %3042 = vmatprep.mubr.f32.mxu0 0.0
    %3043 = vmatmul.mubr.f32.gmra.mxu0 %v2874
    %v3044 = vpop.f32.mrf.mxu0
    %v3045 = vadd.f32 %v2859, %v3044
    %v3046 = vpop.f32.mrf.mxu0
    %3047 = vmatprep.mubr.f32.mxu0 0.0
    %3048 = vmatmul.mubr.f32.gmra.mxu0 %v2877
    %v3049 = vpop.f32.mrf.mxu0
    %v3050 = vadd.f32 %v2864, %v3049
    %v3051 = vpop.f32.mrf.mxu0
    %3052 = vdwg.mxu0
    %v3053 = vld [vmem:[%s0 + $0x22] sm:$0xff]
    %v3054 = vld [vmem:[%s0 + $0x2a] sm:$0xff]
    %v3055 = vld [vmem:[%s0 + $0x32] sm:$0xff]
    %v3056 = vld [vmem:[%s0 + $0x3a] sm:$0xf]
    %v3057 = vld [vmem:[%s1 + $0x240] sm:$0xff]
    %v3058 = vld [vmem:[%s1 + $0x248] sm:$0xff]
    %v3059 = vld [vmem:[%s1 + $0x250] sm:$0xff]
    %v3060 = vld [vmem:[%s1 + $0x258] sm:$0xff]
    %v3061 = vld [vmem:[%s1 + $0x260] sm:$0xff]
    %v3062 = vld [vmem:[%s1 + $0x268] sm:$0xff]
    %v3063 = vld [vmem:[%s1 + $0x270] sm:$0xff]
    %v3064 = vld [vmem:[%s1 + $0x278] sm:$0xff]
    %v3065 = vld [vmem:[%s1 + $0x280] sm:$0xff]
    %v3066 = vld [vmem:[%s1 + $0x288] sm:$0xff]
    %v3067 = vld [vmem:[%s1 + $0x290] sm:$0xff]
    %v3068 = vld [vmem:[%s1 + $0x298] sm:$0xff]
    %v3069 = vld [vmem:[%s1 + $0x2a0] sm:$0xff]
    %v3070 = vld [vmem:[%s1 + $0x2a8] sm:$0xff]
    %v3071 = vld [vmem:[%s1 + $0x2b0] sm:$0xff]
    %v3072 = vld [vmem:[%s1 + $0x2b8] sm:$0xff]
    %v3073 = vld [vmem:[%s1 + $0x2c0] sm:$0xff]
    %v3074 = vld [vmem:[%s1 + $0x2c8] sm:$0xff]
    %v3075 = vld [vmem:[%s1 + $0x2d0] sm:$0xff]
    %v3076 = vld [vmem:[%s1 + $0x2d8] sm:$0xff]
    %v3077 = vld [vmem:[%s1 + $0x2e0] sm:$0xff]
    %v3078 = vld [vmem:[%s1 + $0x2e8] sm:$0xff]
    %v3079 = vld [vmem:[%s1 + $0x2f0] sm:$0xff]
    %v3080 = vld [vmem:[%s1 + $0x2f8] sm:$0xff]
    %v3081 = vld [vmem:[%s1 + $0x300] sm:$0xff]
    %v3082 = vld [vmem:[%s1 + $0x308] sm:$0xff]
    %v3083 = vld [vmem:[%s1 + $0x310] sm:$0xff]
    %v3084 = vld [vmem:[%s1 + $0x318] sm:$0xff]
    %v3085 = vld [vmem:[%s1 + $0x320] sm:$0xff]
    %v3086 = vld [vmem:[%s1 + $0x328] sm:$0xff]
    %v3087 = vld [vmem:[%s1 + $0x330] sm:$0xff]
    %v3088 = vld [vmem:[%s1 + $0x338] sm:$0xff]
    %v3089 = vld [vmem:[%s1 + $0x340] sm:$0xff]
    %v3090 = vld [vmem:[%s1 + $0x348] sm:$0xff]
    %v3091 = vld [vmem:[%s1 + $0x350] sm:$0xff]
    %v3092 = vld [vmem:[%s1 + $0x358] sm:$0xff]
    %v3094 = vsel %vm214, %v3053, 0
    %v3097 = vsel %vm214, %v3054, 0
    %v3100 = vsel %vm214, %v3055, 0
    %v3103 = vsel %vm214, %v3056, 0
    %3105 = vmatprep.subr.mxu0 0.0
    %3106 = vmatpush1.msra.mxu0 0.0
    %3107 = vmatprep.subr.mxu0 0.0
    %3108 = vmatpush1.msra.mxu0 0.0
    %3109 = vmatprep.subr.mxu0 0.0
    %3110 = vmatpush1.msra.mxu0 0.0
    %3111 = vmatprep.subr.mxu0 0.0
    %3112 = vmatpush1.msra.mxu0 0.0
    %3113 = vmatprep.subr.mxu0 %v3091
    %3114 = vmatpush1.msra.mxu0 %v3090
    %3115 = vmatprep.subr.mxu0 %v3088
    %3116 = vmatpush1.msra.mxu0 %v3087
    %3117 = vmatprep.subr.mxu0 %v3085
    %3118 = vmatpush1.msra.mxu0 %v3084
    %3119 = vmatprep.subr.mxu0 %v3082
    %3120 = vmatpush1.msra.mxu0 %v3081
    %3121 = vmatprep.subr.mxu0 %v3079
    %3122 = vmatpush1.msra.mxu0 %v3078
    %3123 = vmatprep.subr.mxu0 %v3076
    %3124 = vmatpush1.msra.mxu0 %v3075
    %3125 = vmatprep.subr.mxu0 %v3073
    %3126 = vmatpush1.msra.mxu0 %v3072
    %3127 = vmatprep.subr.mxu0 %v3070
    %3128 = vmatpush1.msra.mxu0 %v3069
    %3129 = vmatprep.subr.mxu0 %v3067
    %3130 = vmatpush1.msra.mxu0 %v3066
    %3131 = vmatprep.subr.mxu0 %v3064
    %3132 = vmatpush1.msra.mxu0 %v3063
    %3133 = vmatprep.subr.mxu0 %v3061
    %3134 = vmatpush1.msra.mxu0 %v3060
    %3135 = vmatprep.subr.mxu0 %v3058
    %3136 = vmatpush1.msra.mxu0 %v3057
    %3137 = vmatprep.subr.mxu0 0.0
    %3138 = vmatpush2.msra.mxu0 0.0
    %3139 = vmatprep.subr.mxu0 0.0
    %3140 = vmatpush2.msra.mxu0 0.0
    %3141 = vmatprep.subr.mxu0 0.0
    %3142 = vmatpush2.msra.mxu0 0.0
    %3143 = vmatprep.subr.mxu0 0.0
    %3144 = vmatpush2.msra.mxu0 0.0
    %3145 = vmatprep.subr.mxu0 0.0
    %3146 = vmatpush2.msra.mxu0 0.0
    %3147 = vmatprep.subr.mxu0 0.0
    %3148 = vmatpush2.msra.mxu0 0.0
    %3149 = vmatprep.subr.mxu0 0.0
    %3150 = vmatpush2.msra.mxu0 0.0
    %3151 = vmatprep.subr.mxu0 0.0
    %3152 = vmatpush2.msra.mxu0 0.0
    %3153 = vmatprep.subr.mxu0 0.0
    %3154 = vmatpush2.msra.mxu0 0.0
    %3155 = vmatprep.subr.mxu0 0.0
    %3156 = vmatpush2.msra.mxu0 0.0
    %3157 = vmatprep.subr.mxu0 0.0
    %3158 = vmatpush2.msra.mxu0 0.0
    %3159 = vmatprep.subr.mxu0 0.0
    %3160 = vmatpush2.msra.mxu0 0.0
    %3161 = vmatprep.subr.mxu0 0.0
    %3162 = vmatpush2.msra.mxu0 0.0
    %3163 = vmatprep.subr.mxu0 0.0
    %3164 = vmatpush2.msra.mxu0 0.0
    %3165 = vmatprep.subr.mxu0 0.0
    %3166 = vmatpush2.msra.mxu0 0.0
    %3167 = vmatprep.subr.mxu0 0.0
    %3168 = vmatpush2.msra.mxu0 0.0
    %3169 = vmatprep.mubr.f32.mxu0 0.0
    %3170 = vmatmul.mubr.f32.gmra.mxu0 %v3094
    %v3171 = vpop.f32.mrf.mxu0
    %v3172 = vadd.f32 0.0, %v3171
    %v3173 = vpop.f32.mrf.mxu0
    %v3174 = vadd.f32 0.0, %v3173
    %3175 = vmatprep.mubr.f32.mxu0 0.0
    %3176 = vmatmul.mubr.f32.gmra.mxu0 %v3097
    %v3177 = vpop.f32.mrf.mxu0
    %v3178 = vadd.f32 0.0, %v3177
    %v3179 = vpop.f32.mrf.mxu0
    %v3180 = vadd.f32 0.0, %v3179
    %3181 = vmatprep.mubr.f32.mxu0 0.0
    %3182 = vmatmul.mubr.f32.gmra.mxu0 %v3100
    %v3183 = vpop.f32.mrf.mxu0
    %v3184 = vadd.f32 0.0, %v3183
    %v3185 = vpop.f32.mrf.mxu0
    %v3186 = vadd.f32 0.0, %v3185
    %3187 = vmatprep.mubr.f32.mxu0 0.0
    %3188 = vmatmul.mubr.f32.gmra.mxu0 %v3103
    %v3189 = vpop.f32.mrf.mxu0
    %v3190 = vadd.f32 0.0, %v3189
    %v3191 = vpop.f32.mrf.mxu0
    %v3192 = vadd.f32 0.0, %v3191
    %3193 = vdwg.mxu0
    %3194 = vmatprep.subr.mxu0 0.0
    %3195 = vmatpush1.msra.mxu0 0.0
    %3196 = vmatprep.subr.mxu0 0.0
    %3197 = vmatpush1.msra.mxu0 0.0
    %3198 = vmatprep.subr.mxu0 0.0
    %3199 = vmatpush1.msra.mxu0 0.0
    %3200 = vmatprep.subr.mxu0 0.0
    %3201 = vmatpush1.msra.mxu0 0.0
    %3202 = vmatprep.subr.mxu0 0.0
    %3203 = vmatpush1.msra.mxu0 %v3092
    %3204 = vmatprep.subr.mxu0 0.0
    %3205 = vmatpush1.msra.mxu0 %v3089
    %3206 = vmatprep.subr.mxu0 0.0
    %3207 = vmatpush1.msra.mxu0 %v3086
    %3208 = vmatprep.subr.mxu0 0.0
    %3209 = vmatpush1.msra.mxu0 %v3083
    %3210 = vmatprep.subr.mxu0 0.0
    %3211 = vmatpush1.msra.mxu0 %v3080
    %3212 = vmatprep.subr.mxu0 0.0
    %3213 = vmatpush1.msra.mxu0 %v3077
    %3214 = vmatprep.subr.mxu0 0.0
    %3215 = vmatpush1.msra.mxu0 %v3074
    %3216 = vmatprep.subr.mxu0 0.0
    %3217 = vmatpush1.msra.mxu0 %v3071
    %3218 = vmatprep.subr.mxu0 0.0
    %3219 = vmatpush1.msra.mxu0 %v3068
    %3220 = vmatprep.subr.mxu0 0.0
    %3221 = vmatpush1.msra.mxu0 %v3065
    %3222 = vmatprep.subr.mxu0 0.0
    %3223 = vmatpush1.msra.mxu0 %v3062
    %3224 = vmatprep.subr.mxu0 0.0
    %3225 = vmatpush1.msra.mxu0 %v3059
    %3226 = vmatprep.subr.mxu0 0.0
    %3227 = vmatpush2.msra.mxu0 0.0
    %3228 = vmatprep.subr.mxu0 0.0
    %3229 = vmatpush2.msra.mxu0 0.0
    %3230 = vmatprep.subr.mxu0 0.0
    %3231 = vmatpush2.msra.mxu0 0.0
    %3232 = vmatprep.subr.mxu0 0.0
    %3233 = vmatpush2.msra.mxu0 0.0
    %3234 = vmatprep.subr.mxu0 0.0
    %3235 = vmatpush2.msra.mxu0 0.0
    %3236 = vmatprep.subr.mxu0 0.0
    %3237 = vmatpush2.msra.mxu0 0.0
    %3238 = vmatprep.subr.mxu0 0.0
    %3239 = vmatpush2.msra.mxu0 0.0
    %3240 = vmatprep.subr.mxu0 0.0
    %3241 = vmatpush2.msra.mxu0 0.0
    %3242 = vmatprep.subr.mxu0 0.0
    %3243 = vmatpush2.msra.mxu0 0.0
    %3244 = vmatprep.subr.mxu0 0.0
    %3245 = vmatpush2.msra.mxu0 0.0
    %3246 = vmatprep.subr.mxu0 0.0
    %3247 = vmatpush2.msra.mxu0 0.0
    %3248 = vmatprep.subr.mxu0 0.0
    %3249 = vmatpush2.msra.mxu0 0.0
    %3250 = vmatprep.subr.mxu0 0.0
    %3251 = vmatpush2.msra.mxu0 0.0
    %3252 = vmatprep.subr.mxu0 0.0
    %3253 = vmatpush2.msra.mxu0 0.0
    %3254 = vmatprep.subr.mxu0 0.0
    %3255 = vmatpush2.msra.mxu0 0.0
    %3256 = vmatprep.subr.mxu0 0.0
    %3257 = vmatpush2.msra.mxu0 0.0
    %3258 = vmatprep.mubr.f32.mxu0 0.0
    %3259 = vmatmul.mubr.f32.gmra.mxu0 %v3094
    %v3260 = vpop.f32.mrf.mxu0
    %v3261 = vadd.f32 0.0, %v3260
    %v3262 = vpop.f32.mrf.mxu0
    %3263 = vmatprep.mubr.f32.mxu0 0.0
    %3264 = vmatmul.mubr.f32.gmra.mxu0 %v3097
    %v3265 = vpop.f32.mrf.mxu0
    %v3266 = vadd.f32 0.0, %v3265
    %v3267 = vpop.f32.mrf.mxu0
    %3268 = vmatprep.mubr.f32.mxu0 0.0
    %3269 = vmatmul.mubr.f32.gmra.mxu0 %v3100
    %v3270 = vpop.f32.mrf.mxu0
    %v3271 = vadd.f32 0.0, %v3270
    %v3272 = vpop.f32.mrf.mxu0
    %3273 = vmatprep.mubr.f32.mxu0 0.0
    %3274 = vmatmul.mubr.f32.gmra.mxu0 %v3103
    %v3275 = vpop.f32.mrf.mxu0
    %v3276 = vadd.f32 0.0, %v3275
    %v3277 = vpop.f32.mrf.mxu0
    %3278 = vdwg.mxu0
    %v3279 = vadd.f32 %v2946, %v3172
    %v3280 = vadd.f32 %v2948, %v3174
    %v3281 = vadd.f32 %v3035, %v3261
    %v3282 = vadd.f32 %v2952, %v3178
    %v3283 = vadd.f32 %v2954, %v3180
    %v3284 = vadd.f32 %v3040, %v3266
    %v3285 = vadd.f32 %v2958, %v3184
    %v3286 = vadd.f32 %v2960, %v3186
    %v3287 = vadd.f32 %v3045, %v3271
    %v3288 = vadd.f32 %v2964, %v3190
    %v3289 = vadd.f32 %v2966, %v3192
    %v3290 = vadd.f32 %v3050, %v3276
    %v3291 = vld [vmem:[%s0 + $0x23] sm:$0xff]
    %v3292 = vld [vmem:[%s0 + $0x2b] sm:$0xff]
    %v3293 = vld [vmem:[%s0 + $0x33] sm:$0xff]
    %v3294 = vld [vmem:[%s0 + $0x3b] sm:$0xf]
    %v3295 = vld [vmem:[%s1 + $0x360] sm:$0xff]
    %v3296 = vld [vmem:[%s1 + $0x368] sm:$0xff]
    %v3297 = vld [vmem:[%s1 + $0x370] sm:$0xff]
    %v3298 = vld [vmem:[%s1 + $0x378] sm:$0xff]
    %v3299 = vld [vmem:[%s1 + $0x380] sm:$0xff]
    %v3300 = vld [vmem:[%s1 + $0x388] sm:$0xff]
    %v3301 = vld [vmem:[%s1 + $0x390] sm:$0xff]
    %v3302 = vld [vmem:[%s1 + $0x398] sm:$0xff]
    %v3303 = vld [vmem:[%s1 + $0x3a0] sm:$0xff]
    %v3304 = vld [vmem:[%s1 + $0x3a8] sm:$0xff]
    %v3305 = vld [vmem:[%s1 + $0x3b0] sm:$0xff]
    %v3306 = vld [vmem:[%s1 + $0x3b8] sm:$0xff]
    %v3307 = vld [vmem:[%s1 + $0x3c0] sm:$0xff]
    %v3308 = vld [vmem:[%s1 + $0x3c8] sm:$0xff]
    %v3309 = vld [vmem:[%s1 + $0x3d0] sm:$0xff]
    %v3310 = vld [vmem:[%s1 + $0x3d8] sm:$0xff]
    %v3311 = vld [vmem:[%s1 + $0x3e0] sm:$0xff]
    %v3312 = vld [vmem:[%s1 + $0x3e8] sm:$0xff]
    %v3313 = vld [vmem:[%s1 + $0x3f0] sm:$0xff]
    %v3314 = vld [vmem:[%s1 + $0x3f8] sm:$0xff]
    %v3315 = vld [vmem:[%s1 + $0x400] sm:$0xff]
    %v3316 = vld [vmem:[%s1 + $0x408] sm:$0xff]
    %v3317 = vld [vmem:[%s1 + $0x410] sm:$0xff]
    %v3318 = vld [vmem:[%s1 + $0x418] sm:$0xff]
    %v3319 = vld [vmem:[%s1 + $0x420] sm:$0xff]
    %v3320 = vld [vmem:[%s1 + $0x428] sm:$0xff]
    %v3321 = vld [vmem:[%s1 + $0x430] sm:$0xff]
    %v3322 = vld [vmem:[%s1 + $0x438] sm:$0xff]
    %v3323 = vld [vmem:[%s1 + $0x440] sm:$0xff]
    %v3324 = vld [vmem:[%s1 + $0x448] sm:$0xff]
    %v3325 = vld [vmem:[%s1 + $0x450] sm:$0xff]
    %v3326 = vld [vmem:[%s1 + $0x458] sm:$0xff]
    %v3327 = vld [vmem:[%s1 + $0x460] sm:$0xff]
    %v3328 = vld [vmem:[%s1 + $0x468] sm:$0xff]
    %v3329 = vld [vmem:[%s1 + $0x470] sm:$0xff]
    %v3330 = vld [vmem:[%s1 + $0x478] sm:$0xff]
    %v3332 = vsel %vm214, %v3291, 0
    %v3335 = vsel %vm214, %v3292, 0
    %v3338 = vsel %vm214, %v3293, 0
    %v3341 = vsel %vm214, %v3294, 0
    %3343 = vmatprep.subr.mxu0 0.0
    %3344 = vmatpush1.msra.mxu0 0.0
    %3345 = vmatprep.subr.mxu0 0.0
    %3346 = vmatpush1.msra.mxu0 0.0
    %3347 = vmatprep.subr.mxu0 0.0
    %3348 = vmatpush1.msra.mxu0 0.0
    %3349 = vmatprep.subr.mxu0 0.0
    %3350 = vmatpush1.msra.mxu0 0.0
    %3351 = vmatprep.subr.mxu0 %v3329
    %3352 = vmatpush1.msra.mxu0 %v3328
    %3353 = vmatprep.subr.mxu0 %v3326
    %3354 = vmatpush1.msra.mxu0 %v3325
    %3355 = vmatprep.subr.mxu0 %v3323
    %3356 = vmatpush1.msra.mxu0 %v3322
    %3357 = vmatprep.subr.mxu0 %v3320
    %3358 = vmatpush1.msra.mxu0 %v3319
    %3359 = vmatprep.subr.mxu0 %v3317
    %3360 = vmatpush1.msra.mxu0 %v3316
    %3361 = vmatprep.subr.mxu0 %v3314
    %3362 = vmatpush1.msra.mxu0 %v3313
    %3363 = vmatprep.subr.mxu0 %v3311
    %3364 = vmatpush1.msra.mxu0 %v3310
    %3365 = vmatprep.subr.mxu0 %v3308
    %3366 = vmatpush1.msra.mxu0 %v3307
    %3367 = vmatprep.subr.mxu0 %v3305
    %3368 = vmatpush1.msra.mxu0 %v3304
    %3369 = vmatprep.subr.mxu0 %v3302
    %3370 = vmatpush1.msra.mxu0 %v3301
    %3371 = vmatprep.subr.mxu0 %v3299
    %3372 = vmatpush1.msra.mxu0 %v3298
    %3373 = vmatprep.subr.mxu0 %v3296
    %3374 = vmatpush1.msra.mxu0 %v3295
    %3375 = vmatprep.subr.mxu0 0.0
    %3376 = vmatpush2.msra.mxu0 0.0
    %3377 = vmatprep.subr.mxu0 0.0
    %3378 = vmatpush2.msra.mxu0 0.0
    %3379 = vmatprep.subr.mxu0 0.0
    %3380 = vmatpush2.msra.mxu0 0.0
    %3381 = vmatprep.subr.mxu0 0.0
    %3382 = vmatpush2.msra.mxu0 0.0
    %3383 = vmatprep.subr.mxu0 0.0
    %3384 = vmatpush2.msra.mxu0 0.0
    %3385 = vmatprep.subr.mxu0 0.0
    %3386 = vmatpush2.msra.mxu0 0.0
    %3387 = vmatprep.subr.mxu0 0.0
    %3388 = vmatpush2.msra.mxu0 0.0
    %3389 = vmatprep.subr.mxu0 0.0
    %3390 = vmatpush2.msra.mxu0 0.0
    %3391 = vmatprep.subr.mxu0 0.0
    %3392 = vmatpush2.msra.mxu0 0.0
    %3393 = vmatprep.subr.mxu0 0.0
    %3394 = vmatpush2.msra.mxu0 0.0
    %3395 = vmatprep.subr.mxu0 0.0
    %3396 = vmatpush2.msra.mxu0 0.0
    %3397 = vmatprep.subr.mxu0 0.0
    %3398 = vmatpush2.msra.mxu0 0.0
    %3399 = vmatprep.subr.mxu0 0.0
    %3400 = vmatpush2.msra.mxu0 0.0
    %3401 = vmatprep.subr.mxu0 0.0
    %3402 = vmatpush2.msra.mxu0 0.0
    %3403 = vmatprep.subr.mxu0 0.0
    %3404 = vmatpush2.msra.mxu0 0.0
    %3405 = vmatprep.subr.mxu0 0.0
    %3406 = vmatpush2.msra.mxu0 0.0
    %3407 = vmatprep.mubr.f32.mxu0 0.0
    %3408 = vmatmul.mubr.f32.gmra.mxu0 %v3332
    %v3409 = vpop.f32.mrf.mxu0
    %v3410 = vadd.f32 0.0, %v3409
    %v3411 = vpop.f32.mrf.mxu0
    %v3412 = vadd.f32 0.0, %v3411
    %3413 = vmatprep.mubr.f32.mxu0 0.0
    %3414 = vmatmul.mubr.f32.gmra.mxu0 %v3335
    %v3415 = vpop.f32.mrf.mxu0
    %v3416 = vadd.f32 0.0, %v3415
    %v3417 = vpop.f32.mrf.mxu0
    %v3418 = vadd.f32 0.0, %v3417
    %3419 = vmatprep.mubr.f32.mxu0 0.0
    %3420 = vmatmul.mubr.f32.gmra.mxu0 %v3338
    %v3421 = vpop.f32.mrf.mxu0
    %v3422 = vadd.f32 0.0, %v3421
    %v3423 = vpop.f32.mrf.mxu0
    %v3424 = vadd.f32 0.0, %v3423
    %3425 = vmatprep.mubr.f32.mxu0 0.0
    %3426 = vmatmul.mubr.f32.gmra.mxu0 %v3341
    %v3427 = vpop.f32.mrf.mxu0
    %v3428 = vadd.f32 0.0, %v3427
    %v3429 = vpop.f32.mrf.mxu0
    %v3430 = vadd.f32 0.0, %v3429
    %3431 = vdwg.mxu0
    %3432 = vmatprep.subr.mxu0 0.0
    %3433 = vmatpush1.msra.mxu0 0.0
    %3434 = vmatprep.subr.mxu0 0.0
    %3435 = vmatpush1.msra.mxu0 0.0
    %3436 = vmatprep.subr.mxu0 0.0
    %3437 = vmatpush1.msra.mxu0 0.0
    %3438 = vmatprep.subr.mxu0 0.0
    %3439 = vmatpush1.msra.mxu0 0.0
    %3440 = vmatprep.subr.mxu0 0.0
    %3441 = vmatpush1.msra.mxu0 %v3330
    %3442 = vmatprep.subr.mxu0 0.0
    %3443 = vmatpush1.msra.mxu0 %v3327
    %3444 = vmatprep.subr.mxu0 0.0
    %3445 = vmatpush1.msra.mxu0 %v3324
    %3446 = vmatprep.subr.mxu0 0.0
    %3447 = vmatpush1.msra.mxu0 %v3321
    %3448 = vmatprep.subr.mxu0 0.0
    %3449 = vmatpush1.msra.mxu0 %v3318
    %3450 = vmatprep.subr.mxu0 0.0
    %3451 = vmatpush1.msra.mxu0 %v3315
    %3452 = vmatprep.subr.mxu0 0.0
    %3453 = vmatpush1.msra.mxu0 %v3312
    %3454 = vmatprep.subr.mxu0 0.0
    %3455 = vmatpush1.msra.mxu0 %v3309
    %3456 = vmatprep.subr.mxu0 0.0
    %3457 = vmatpush1.msra.mxu0 %v3306
    %3458 = vmatprep.subr.mxu0 0.0
    %3459 = vmatpush1.msra.mxu0 %v3303
    %3460 = vmatprep.subr.mxu0 0.0
    %3461 = vmatpush1.msra.mxu0 %v3300
    %3462 = vmatprep.subr.mxu0 0.0
    %3463 = vmatpush1.msra.mxu0 %v3297
    %3464 = vmatprep.subr.mxu0 0.0
    %3465 = vmatpush2.msra.mxu0 0.0
    %3466 = vmatprep.subr.mxu0 0.0
    %3467 = vmatpush2.msra.mxu0 0.0
    %3468 = vmatprep.subr.mxu0 0.0
    %3469 = vmatpush2.msra.mxu0 0.0
    %3470 = vmatprep.subr.mxu0 0.0
    %3471 = vmatpush2.msra.mxu0 0.0
    %3472 = vmatprep.subr.mxu0 0.0
    %3473 = vmatpush2.msra.mxu0 0.0
    %3474 = vmatprep.subr.mxu0 0.0
    %3475 = vmatpush2.msra.mxu0 0.0
    %3476 = vmatprep.subr.mxu0 0.0
    %3477 = vmatpush2.msra.mxu0 0.0
    %3478 = vmatprep.subr.mxu0 0.0
    %3479 = vmatpush2.msra.mxu0 0.0
    %3480 = vmatprep.subr.mxu0 0.0
    %3481 = vmatpush2.msra.mxu0 0.0
    %3482 = vmatprep.subr.mxu0 0.0
    %3483 = vmatpush2.msra.mxu0 0.0
    %3484 = vmatprep.subr.mxu0 0.0
    %3485 = vmatpush2.msra.mxu0 0.0
    %3486 = vmatprep.subr.mxu0 0.0
    %3487 = vmatpush2.msra.mxu0 0.0
    %3488 = vmatprep.subr.mxu0 0.0
    %3489 = vmatpush2.msra.mxu0 0.0
    %3490 = vmatprep.subr.mxu0 0.0
    %3491 = vmatpush2.msra.mxu0 0.0
    %3492 = vmatprep.subr.mxu0 0.0
    %3493 = vmatpush2.msra.mxu0 0.0
    %3494 = vmatprep.subr.mxu0 0.0
    %3495 = vmatpush2.msra.mxu0 0.0
    %3496 = vmatprep.mubr.f32.mxu0 0.0
    %3497 = vmatmul.mubr.f32.gmra.mxu0 %v3332
    %v3498 = vpop.f32.mrf.mxu0
    %v3499 = vadd.f32 0.0, %v3498
    %v3500 = vpop.f32.mrf.mxu0
    %3501 = vmatprep.mubr.f32.mxu0 0.0
    %3502 = vmatmul.mubr.f32.gmra.mxu0 %v3335
    %v3503 = vpop.f32.mrf.mxu0
    %v3504 = vadd.f32 0.0, %v3503
    %v3505 = vpop.f32.mrf.mxu0
    %3506 = vmatprep.mubr.f32.mxu0 0.0
    %3507 = vmatmul.mubr.f32.gmra.mxu0 %v3338
    %v3508 = vpop.f32.mrf.mxu0
    %v3509 = vadd.f32 0.0, %v3508
    %v3510 = vpop.f32.mrf.mxu0
    %3511 = vmatprep.mubr.f32.mxu0 0.0
    %3512 = vmatmul.mubr.f32.gmra.mxu0 %v3341
    %v3513 = vpop.f32.mrf.mxu0
    %v3514 = vadd.f32 0.0, %v3513
    %v3515 = vpop.f32.mrf.mxu0
    %3516 = vdwg.mxu0
    %v3517 = vadd.f32 %v3279, %v3410
    %v3518 = vadd.f32 %v3280, %v3412
    %v3519 = vadd.f32 %v3281, %v3499
    %v3520 = vadd.f32 %v3282, %v3416
    %v3521 = vadd.f32 %v3283, %v3418
    %v3522 = vadd.f32 %v3284, %v3504
    %v3523 = vadd.f32 %v3285, %v3422
    %v3524 = vadd.f32 %v3286, %v3424
    %v3525 = vadd.f32 %v3287, %v3509
    %v3526 = vadd.f32 %v3288, %v3428
    %v3527 = vadd.f32 %v3289, %v3430
    %v3528 = vadd.f32 %v3290, %v3514
    %v3529 = vld [vmem:[%s0 + $0x24] sm:$0xff]
    %v3530 = vld [vmem:[%s0 + $0x2c] sm:$0xff]
    %v3531 = vld [vmem:[%s0 + $0x34] sm:$0xff]
    %v3532 = vld [vmem:[%s0 + $0x3c] sm:$0xf]
    %v3533 = vld [vmem:[%s1 + $0x480] sm:$0xff]
    %v3534 = vld [vmem:[%s1 + $0x488] sm:$0xff]
    %v3535 = vld [vmem:[%s1 + $0x490] sm:$0xff]
    %v3536 = vld [vmem:[%s1 + $0x498] sm:$0xff]
    %v3537 = vld [vmem:[%s1 + $0x4a0] sm:$0xff]
    %v3538 = vld [vmem:[%s1 + $0x4a8] sm:$0xff]
    %v3539 = vld [vmem:[%s1 + $0x4b0] sm:$0xff]
    %v3540 = vld [vmem:[%s1 + $0x4b8] sm:$0xff]
    %v3541 = vld [vmem:[%s1 + $0x4c0] sm:$0xff]
    %v3542 = vld [vmem:[%s1 + $0x4c8] sm:$0xff]
    %v3543 = vld [vmem:[%s1 + $0x4d0] sm:$0xff]
    %v3544 = vld [vmem:[%s1 + $0x4d8] sm:$0xff]
    %v3545 = vld [vmem:[%s1 + $0x4e0] sm:$0xff]
    %v3546 = vld [vmem:[%s1 + $0x4e8] sm:$0xff]
    %v3547 = vld [vmem:[%s1 + $0x4f0] sm:$0xff]
    %v3548 = vld [vmem:[%s1 + $0x4f8] sm:$0xff]
    %v3549 = vld [vmem:[%s1 + $0x500] sm:$0xff]
    %v3550 = vld [vmem:[%s1 + $0x508] sm:$0xff]
    %v3551 = vld [vmem:[%s1 + $0x510] sm:$0xff]
    %v3552 = vld [vmem:[%s1 + $0x518] sm:$0xff]
    %v3553 = vld [vmem:[%s1 + $0x520] sm:$0xff]
    %v3554 = vld [vmem:[%s1 + $0x528] sm:$0xff]
    %v3555 = vld [vmem:[%s1 + $0x530] sm:$0xff]
    %v3556 = vld [vmem:[%s1 + $0x538] sm:$0xff]
    %v3557 = vld [vmem:[%s1 + $0x540] sm:$0xff]
    %v3558 = vld [vmem:[%s1 + $0x548] sm:$0xff]
    %v3559 = vld [vmem:[%s1 + $0x550] sm:$0xff]
    %v3560 = vld [vmem:[%s1 + $0x558] sm:$0xff]
    %v3561 = vld [vmem:[%s1 + $0x560] sm:$0xff]
    %v3562 = vld [vmem:[%s1 + $0x568] sm:$0xff]
    %v3563 = vld [vmem:[%s1 + $0x570] sm:$0xff]
    %v3564 = vld [vmem:[%s1 + $0x578] sm:$0xff]
    %v3565 = vld [vmem:[%s1 + $0x580] sm:$0xff]
    %v3566 = vld [vmem:[%s1 + $0x588] sm:$0xff]
    %v3567 = vld [vmem:[%s1 + $0x590] sm:$0xff]
    %v3568 = vld [vmem:[%s1 + $0x598] sm:$0xff]
    %v3570 = vsel %vm214, %v3529, 0
    %v3573 = vsel %vm214, %v3530, 0
    %v3576 = vsel %vm214, %v3531, 0
    %v3579 = vsel %vm214, %v3532, 0
    %3581 = vmatprep.subr.mxu0 0.0
    %3582 = vmatpush1.msra.mxu0 0.0
    %3583 = vmatprep.subr.mxu0 0.0
    %3584 = vmatpush1.msra.mxu0 0.0
    %3585 = vmatprep.subr.mxu0 0.0
    %3586 = vmatpush1.msra.mxu0 0.0
    %3587 = vmatprep.subr.mxu0 0.0
    %3588 = vmatpush1.msra.mxu0 0.0
    %3589 = vmatprep.subr.mxu0 %v3567
    %3590 = vmatpush1.msra.mxu0 %v3566
    %3591 = vmatprep.subr.mxu0 %v3564
    %3592 = vmatpush1.msra.mxu0 %v3563
    %3593 = vmatprep.subr.mxu0 %v3561
    %3594 = vmatpush1.msra.mxu0 %v3560
    %3595 = vmatprep.subr.mxu0 %v3558
    %3596 = vmatpush1.msra.mxu0 %v3557
    %3597 = vmatprep.subr.mxu0 %v3555
    %3598 = vmatpush1.msra.mxu0 %v3554
    %3599 = vmatprep.subr.mxu0 %v3552
    %3600 = vmatpush1.msra.mxu0 %v3551
    %3601 = vmatprep.subr.mxu0 %v3549
    %3602 = vmatpush1.msra.mxu0 %v3548
    %3603 = vmatprep.subr.mxu0 %v3546
    %3604 = vmatpush1.msra.mxu0 %v3545
    %3605 = vmatprep.subr.mxu0 %v3543
    %3606 = vmatpush1.msra.mxu0 %v3542
    %3607 = vmatprep.subr.mxu0 %v3540
    %3608 = vmatpush1.msra.mxu0 %v3539
    %3609 = vmatprep.subr.mxu0 %v3537
    %3610 = vmatpush1.msra.mxu0 %v3536
    %3611 = vmatprep.subr.mxu0 %v3534
    %3612 = vmatpush1.msra.mxu0 %v3533
    %3613 = vmatprep.subr.mxu0 0.0
    %3614 = vmatpush2.msra.mxu0 0.0
    %3615 = vmatprep.subr.mxu0 0.0
    %3616 = vmatpush2.msra.mxu0 0.0
    %3617 = vmatprep.subr.mxu0 0.0
    %3618 = vmatpush2.msra.mxu0 0.0
    %3619 = vmatprep.subr.mxu0 0.0
    %3620 = vmatpush2.msra.mxu0 0.0
    %3621 = vmatprep.subr.mxu0 0.0
    %3622 = vmatpush2.msra.mxu0 0.0
    %3623 = vmatprep.subr.mxu0 0.0
    %3624 = vmatpush2.msra.mxu0 0.0
    %3625 = vmatprep.subr.mxu0 0.0
    %3626 = vmatpush2.msra.mxu0 0.0
    %3627 = vmatprep.subr.mxu0 0.0
    %3628 = vmatpush2.msra.mxu0 0.0
    %3629 = vmatprep.subr.mxu0 0.0
    %3630 = vmatpush2.msra.mxu0 0.0
    %3631 = vmatprep.subr.mxu0 0.0
    %3632 = vmatpush2.msra.mxu0 0.0
    %3633 = vmatprep.subr.mxu0 0.0
    %3634 = vmatpush2.msra.mxu0 0.0
    %3635 = vmatprep.subr.mxu0 0.0
    %3636 = vmatpush2.msra.mxu0 0.0
    %3637 = vmatprep.subr.mxu0 0.0
    %3638 = vmatpush2.msra.mxu0 0.0
    %3639 = vmatprep.subr.mxu0 0.0
    %3640 = vmatpush2.msra.mxu0 0.0
    %3641 = vmatprep.subr.mxu0 0.0
    %3642 = vmatpush2.msra.mxu0 0.0
    %3643 = vmatprep.subr.mxu0 0.0
    %3644 = vmatpush2.msra.mxu0 0.0
    %3645 = vmatprep.mubr.f32.mxu0 0.0
    %3646 = vmatmul.mubr.f32.gmra.mxu0 %v3570
    %v3647 = vpop.f32.mrf.mxu0
    %v3648 = vadd.f32 0.0, %v3647
    %v3649 = vpop.f32.mrf.mxu0
    %v3650 = vadd.f32 0.0, %v3649
    %3651 = vmatprep.mubr.f32.mxu0 0.0
    %3652 = vmatmul.mubr.f32.gmra.mxu0 %v3573
    %v3653 = vpop.f32.mrf.mxu0
    %v3654 = vadd.f32 0.0, %v3653
    %v3655 = vpop.f32.mrf.mxu0
    %v3656 = vadd.f32 0.0, %v3655
    %3657 = vmatprep.mubr.f32.mxu0 0.0
    %3658 = vmatmul.mubr.f32.gmra.mxu0 %v3576
    %v3659 = vpop.f32.mrf.mxu0
    %v3660 = vadd.f32 0.0, %v3659
    %v3661 = vpop.f32.mrf.mxu0
    %v3662 = vadd.f32 0.0, %v3661
    %3663 = vmatprep.mubr.f32.mxu0 0.0
    %3664 = vmatmul.mubr.f32.gmra.mxu0 %v3579
    %v3665 = vpop.f32.mrf.mxu0
    %v3666 = vadd.f32 0.0, %v3665
    %v3667 = vpop.f32.mrf.mxu0
    %v3668 = vadd.f32 0.0, %v3667
    %3669 = vdwg.mxu0
    %3670 = vmatprep.subr.mxu0 0.0
    %3671 = vmatpush1.msra.mxu0 0.0
    %3672 = vmatprep.subr.mxu0 0.0
    %3673 = vmatpush1.msra.mxu0 0.0
    %3674 = vmatprep.subr.mxu0 0.0
    %3675 = vmatpush1.msra.mxu0 0.0
    %3676 = vmatprep.subr.mxu0 0.0
    %3677 = vmatpush1.msra.mxu0 0.0
    %3678 = vmatprep.subr.mxu0 0.0
    %3679 = vmatpush1.msra.mxu0 %v3568
    %3680 = vmatprep.subr.mxu0 0.0
    %3681 = vmatpush1.msra.mxu0 %v3565
    %3682 = vmatprep.subr.mxu0 0.0
    %3683 = vmatpush1.msra.mxu0 %v3562
    %3684 = vmatprep.subr.mxu0 0.0
    %3685 = vmatpush1.msra.mxu0 %v3559
    %3686 = vmatprep.subr.mxu0 0.0
    %3687 = vmatpush1.msra.mxu0 %v3556
    %3688 = vmatprep.subr.mxu0 0.0
    %3689 = vmatpush1.msra.mxu0 %v3553
    %3690 = vmatprep.subr.mxu0 0.0
    %3691 = vmatpush1.msra.mxu0 %v3550
    %3692 = vmatprep.subr.mxu0 0.0
    %3693 = vmatpush1.msra.mxu0 %v3547
    %3694 = vmatprep.subr.mxu0 0.0
    %3695 = vmatpush1.msra.mxu0 %v3544
    %3696 = vmatprep.subr.mxu0 0.0
    %3697 = vmatpush1.msra.mxu0 %v3541
    %3698 = vmatprep.subr.mxu0 0.0
    %3699 = vmatpush1.msra.mxu0 %v3538
    %3700 = vmatprep.subr.mxu0 0.0
    %3701 = vmatpush1.msra.mxu0 %v3535
    %3702 = vmatprep.subr.mxu0 0.0
    %3703 = vmatpush2.msra.mxu0 0.0
    %3704 = vmatprep.subr.mxu0 0.0
    %3705 = vmatpush2.msra.mxu0 0.0
    %3706 = vmatprep.subr.mxu0 0.0
    %3707 = vmatpush2.msra.mxu0 0.0
    %3708 = vmatprep.subr.mxu0 0.0
    %3709 = vmatpush2.msra.mxu0 0.0
    %3710 = vmatprep.subr.mxu0 0.0
    %3711 = vmatpush2.msra.mxu0 0.0
    %3712 = vmatprep.subr.mxu0 0.0
    %3713 = vmatpush2.msra.mxu0 0.0
    %3714 = vmatprep.subr.mxu0 0.0
    %3715 = vmatpush2.msra.mxu0 0.0
    %3716 = vmatprep.subr.mxu0 0.0
    %3717 = vmatpush2.msra.mxu0 0.0
    %3718 = vmatprep.subr.mxu0 0.0
    %3719 = vmatpush2.msra.mxu0 0.0
    %3720 = vmatprep.subr.mxu0 0.0
    %3721 = vmatpush2.msra.mxu0 0.0
    %3722 = vmatprep.subr.mxu0 0.0
    %3723 = vmatpush2.msra.mxu0 0.0
    %3724 = vmatprep.subr.mxu0 0.0
    %3725 = vmatpush2.msra.mxu0 0.0
    %3726 = vmatprep.subr.mxu0 0.0
    %3727 = vmatpush2.msra.mxu0 0.0
    %3728 = vmatprep.subr.mxu0 0.0
    %3729 = vmatpush2.msra.mxu0 0.0
    %3730 = vmatprep.subr.mxu0 0.0
    %3731 = vmatpush2.msra.mxu0 0.0
    %3732 = vmatprep.subr.mxu0 0.0
    %3733 = vmatpush2.msra.mxu0 0.0
    %3734 = vmatprep.mubr.f32.mxu0 0.0
    %3735 = vmatmul.mubr.f32.gmra.mxu0 %v3570
    %v3736 = vpop.f32.mrf.mxu0
    %v3737 = vadd.f32 0.0, %v3736
    %v3738 = vpop.f32.mrf.mxu0
    %3739 = vmatprep.mubr.f32.mxu0 0.0
    %3740 = vmatmul.mubr.f32.gmra.mxu0 %v3573
    %v3741 = vpop.f32.mrf.mxu0
    %v3742 = vadd.f32 0.0, %v3741
    %v3743 = vpop.f32.mrf.mxu0
    %3744 = vmatprep.mubr.f32.mxu0 0.0
    %3745 = vmatmul.mubr.f32.gmra.mxu0 %v3576
    %v3746 = vpop.f32.mrf.mxu0
    %v3747 = vadd.f32 0.0, %v3746
    %v3748 = vpop.f32.mrf.mxu0
    %3749 = vmatprep.mubr.f32.mxu0 0.0
    %3750 = vmatmul.mubr.f32.gmra.mxu0 %v3579
    %v3751 = vpop.f32.mrf.mxu0
    %v3752 = vadd.f32 0.0, %v3751
    %v3753 = vpop.f32.mrf.mxu0
    %3754 = vdwg.mxu0
    %v3755 = vadd.f32 %v3517, %v3648
    %v3756 = vadd.f32 %v3518, %v3650
    %v3757 = vadd.f32 %v3519, %v3737
    %v3758 = vadd.f32 %v3520, %v3654
    %v3759 = vadd.f32 %v3521, %v3656
    %v3760 = vadd.f32 %v3522, %v3742
    %v3761 = vadd.f32 %v3523, %v3660
    %v3762 = vadd.f32 %v3524, %v3662
    %v3763 = vadd.f32 %v3525, %v3747
    %v3764 = vadd.f32 %v3526, %v3666
    %v3765 = vadd.f32 %v3527, %v3668
    %v3766 = vadd.f32 %v3528, %v3752
    %v3767 = vadd.f32 %v3755, %v24
    %v3768 = vadd.f32 %v3756, %v28
    %v3769 = vadd.f32 %v3757, %v32
    %v3770 = vadd.f32 %v3758, %v24
    %v3771 = vadd.f32 %v3759, %v28
    %v3772 = vadd.f32 %v3760, %v32
    %v3773 = vadd.f32 %v3761, %v24
    %v3774 = vadd.f32 %v3762, %v28
    %v3775 = vadd.f32 %v3763, %v32
    %v3776 = vadd.f32 %v3764, %v24
    %v3777 = vadd.f32 %v3765, %v28
    %v3778 = vadd.f32 %v3766, %v32
    %v3779 = vmax.f32 %v3767, 0.0
    %v3780 = vmax.f32 %v3768, 0.0
    %v3781 = vmax.f32 %v3769, 0.0
    %v3782 = vmax.f32 %v3770, 0.0
    %v3783 = vmax.f32 %v3771, 0.0
    %v3784 = vmax.f32 %v3772, 0.0
    %v3785 = vmax.f32 %v3773, 0.0
    %v3786 = vmax.f32 %v3774, 0.0
    %v3787 = vmax.f32 %v3775, 0.0
    %v3788 = vmax.f32 %v3776, 0.0
    %v3789 = vmax.f32 %v3777, 0.0
    %v3790 = vmax.f32 %v3778, 0.0
    %v3803 = vrot.slane %v3779, 1
    %v3804 = vrot.slane %v3782, 1
    %v3805 = vsel %vm1337, %v3803, %v3804
    %v3806 = vrot.slane %v3780, 1
    %v3807 = vrot.slane %v3783, 1
    %v3808 = vsel %vm1337, %v3806, %v3807
    %v3809 = vrot.slane %v3781, 1
    %v3810 = vrot.slane %v3784, 1
    %v3811 = vsel %vm1337, %v3809, %v3810
    %v3812 = vrot.slane %v3785, 1
    %v3813 = vsel %vm1337, %v3804, %v3812
    %v3814 = vrot.slane %v3786, 1
    %v3815 = vsel %vm1337, %v3807, %v3814
    %v3816 = vrot.slane %v3787, 1
    %v3817 = vsel %vm1337, %v3810, %v3816
    %v3818 = vrot.slane %v3788, 1
    %v3819 = vsel %vm1337, %v3812, %v3818
    %v3820 = vrot.slane %v3789, 1
    %v3821 = vsel %vm1337, %v3814, %v3820
    %v3822 = vrot.slane %v3790, 1
    %v3823 = vsel %vm1337, %v3816, %v3822
    %v3836 = vmax.f32 %v3779, %v3805
    %v3837 = vmax.f32 %v3780, %v3808
    %v3838 = vmax.f32 %v3781, %v3811
    %v3839 = vmax.f32 %v3782, %v3813
    %v3840 = vmax.f32 %v3783, %v3815
    %v3841 = vmax.f32 %v3784, %v3817
    %v3842 = vmax.f32 %v3785, %v3819
    %v3843 = vmax.f32 %v3786, %v3821
    %v3844 = vmax.f32 %v3787, %v3823
    %v3845 = vmax.f32 %v3788, %v3818
    %v3846 = vmax.f32 %v3789, %v3820
    %v3847 = vmax.f32 %v3790, %v3822
    %v3849 = vsel %vm1390, %v3845, 0
    %v3852 = vsel %vm1390, %v3846, 0
    %v3855 = vsel %vm1390, %v3847, 0
    %3857 = vmatprep.subr.mxu0 0.0
    %3858 = vmatpush1.msra.mxu0 0.0
    %3859 = vmatprep.subr.mxu0 0.0
    %3860 = vmatpush1.msra.mxu0 0.0
    %3861 = vmatprep.subr.mxu0 0.0
    %3862 = vmatpush1.msra.mxu0 0.0
    %3863 = vmatprep.subr.mxu0 0.0
    %3864 = vmatpush1.msra.mxu0 0.0
    %3865 = vmatprep.subr.mxu0 0.0
    %3866 = vmatpush1.msra.mxu0 0.0
    %3867 = vmatprep.subr.mxu0 0.0
    %3868 = vmatpush1.msra.mxu0 0.0
    %3869 = vmatprep.subr.mxu0 0.0
    %3870 = vmatpush1.msra.mxu0 0.0
    %3871 = vmatprep.subr.mxu0 0.0
    %3872 = vmatpush1.msra.mxu0 0.0
    %3873 = vmatprep.subr.mxu0 0.0
    %3874 = vmatpush1.msra.mxu0 0.0
    %3875 = vmatprep.subr.mxu0 0.0
    %3876 = vmatpush1.msra.mxu0 0.0
    %3877 = vmatprep.subr.mxu0 0.0
    %3878 = vmatpush1.msra.mxu0 0.0
    %3879 = vmatprep.subr.mxu0 0.0
    %3880 = vmatpush1.msra.mxu0 0.0
    %3881 = vmatprep.subr.mxu0 %v3852
    %3882 = vmatpush1.msra.mxu0 %v3849
    %3883 = vmatprep.subr.mxu0 %v3843
    %3884 = vmatpush1.msra.mxu0 %v3842
    %3885 = vmatprep.subr.mxu0 %v3840
    %3886 = vmatpush1.msra.mxu0 %v3839
    %3887 = vmatprep.subr.mxu0 %v3837
    %3888 = vmatpush1.msra.mxu0 %v3836
    %3889 = vmatprep.subr.mxu0 0.0
    %3890 = vmatpush2.msra.mxu0 0.0
    %3891 = vmatprep.subr.mxu0 0.0
    %3892 = vmatpush2.msra.mxu0 0.0
    %3893 = vmatprep.subr.mxu0 0.0
    %3894 = vmatpush2.msra.mxu0 0.0
    %3895 = vmatprep.subr.mxu0 0.0
    %3896 = vmatpush2.msra.mxu0 0.0
    %3897 = vmatprep.subr.mxu0 0.0
    %3898 = vmatpush2.msra.mxu0 0.0
    %3899 = vmatprep.subr.mxu0 0.0
    %3900 = vmatpush2.msra.mxu0 0.0
    %3901 = vmatprep.subr.mxu0 0.0
    %3902 = vmatpush2.msra.mxu0 0.0
    %3903 = vmatprep.subr.mxu0 0.0
    %3904 = vmatpush2.msra.mxu0 0.0
    %3905 = vmatprep.subr.mxu0 0.0
    %3906 = vmatpush2.msra.mxu0 0.0
    %3907 = vmatprep.subr.mxu0 0.0
    %3908 = vmatpush2.msra.mxu0 0.0
    %3909 = vmatprep.subr.mxu0 0.0
    %3910 = vmatpush2.msra.mxu0 0.0
    %3911 = vmatprep.subr.mxu0 0.0
    %3912 = vmatpush2.msra.mxu0 0.0
    %3913 = vmatprep.subr.mxu0 0.0
    %3914 = vmatpush2.msra.mxu0 0.0
    %3915 = vmatprep.subr.mxu0 0.0
    %3916 = vmatpush2.msra.mxu0 0.0
    %3917 = vmatprep.subr.mxu0 0.0
    %3918 = vmatpush2.msra.mxu0 0.0
    %3919 = vmatprep.subr.mxu0 0.0
    %3920 = vmatpush2.msra.mxu0 0.0
    %3921 = vmatprep.mubr.f32.mxu0 0.0
    %3922 = vmatmul.mubr.f32.gmra.mxu0 %v1385
    %v3923 = vpop.f32.mrf.mxu0
    %v3924 = vadd.f32 0.0, %v3923
    %v3925 = vpop.f32.mrf.mxu0
    %v3926 = vadd.f32 0.0, %v3925
    %3927 = vmatprep.mubr.f32.mxu0 0.0
    %3928 = vmatmul.mubr.f32.gmra.mxu0 %v1388
    %v3929 = vpop.f32.mrf.mxu0
    %v3930 = vadd.f32 0.0, %v3929
    %v3931 = vpop.f32.mrf.mxu0
    %v3932 = vadd.f32 0.0, %v3931
    %3933 = vdwg.mxu0
    %3934 = vmatprep.subr.mxu0 0.0
    %3935 = vmatpush1.msra.mxu0 0.0
    %3936 = vmatprep.subr.mxu0 0.0
    %3937 = vmatpush1.msra.mxu0 0.0
    %3938 = vmatprep.subr.mxu0 0.0
    %3939 = vmatpush1.msra.mxu0 0.0
    %3940 = vmatprep.subr.mxu0 0.0
    %3941 = vmatpush1.msra.mxu0 0.0
    %3942 = vmatprep.subr.mxu0 0.0
    %3943 = vmatpush1.msra.mxu0 0.0
    %3944 = vmatprep.subr.mxu0 0.0
    %3945 = vmatpush1.msra.mxu0 0.0
    %3946 = vmatprep.subr.mxu0 0.0
    %3947 = vmatpush1.msra.mxu0 0.0
    %3948 = vmatprep.subr.mxu0 0.0
    %3949 = vmatpush1.msra.mxu0 0.0
    %3950 = vmatprep.subr.mxu0 0.0
    %3951 = vmatpush1.msra.mxu0 0.0
    %3952 = vmatprep.subr.mxu0 0.0
    %3953 = vmatpush1.msra.mxu0 0.0
    %3954 = vmatprep.subr.mxu0 0.0
    %3955 = vmatpush1.msra.mxu0 0.0
    %3956 = vmatprep.subr.mxu0 0.0
    %3957 = vmatpush1.msra.mxu0 0.0
    %3958 = vmatprep.subr.mxu0 0.0
    %3959 = vmatpush1.msra.mxu0 %v3855
    %3960 = vmatprep.subr.mxu0 0.0
    %3961 = vmatpush1.msra.mxu0 %v3844
    %3962 = vmatprep.subr.mxu0 0.0
    %3963 = vmatpush1.msra.mxu0 %v3841
    %3964 = vmatprep.subr.mxu0 0.0
    %3965 = vmatpush1.msra.mxu0 %v3838
    %3966 = vmatprep.subr.mxu0 0.0
    %3967 = vmatpush2.msra.mxu0 0.0
    %3968 = vmatprep.subr.mxu0 0.0
    %3969 = vmatpush2.msra.mxu0 0.0
    %3970 = vmatprep.subr.mxu0 0.0
    %3971 = vmatpush2.msra.mxu0 0.0
    %3972 = vmatprep.subr.mxu0 0.0
    %3973 = vmatpush2.msra.mxu0 0.0
    %3974 = vmatprep.subr.mxu0 0.0
    %3975 = vmatpush2.msra.mxu0 0.0
    %3976 = vmatprep.subr.mxu0 0.0
    %3977 = vmatpush2.msra.mxu0 0.0
    %3978 = vmatprep.subr.mxu0 0.0
    %3979 = vmatpush2.msra.mxu0 0.0
    %3980 = vmatprep.subr.mxu0 0.0
    %3981 = vmatpush2.msra.mxu0 0.0
    %3982 = vmatprep.subr.mxu0 0.0
    %3983 = vmatpush2.msra.mxu0 0.0
    %3984 = vmatprep.subr.mxu0 0.0
    %3985 = vmatpush2.msra.mxu0 0.0
    %3986 = vmatprep.subr.mxu0 0.0
    %3987 = vmatpush2.msra.mxu0 0.0
    %3988 = vmatprep.subr.mxu0 0.0
    %3989 = vmatpush2.msra.mxu0 0.0
    %3990 = vmatprep.subr.mxu0 0.0
    %3991 = vmatpush2.msra.mxu0 0.0
    %3992 = vmatprep.subr.mxu0 0.0
    %3993 = vmatpush2.msra.mxu0 0.0
    %3994 = vmatprep.subr.mxu0 0.0
    %3995 = vmatpush2.msra.mxu0 0.0
    %3996 = vmatprep.subr.mxu0 0.0
    %3997 = vmatpush2.msra.mxu0 0.0
    %3998 = vmatprep.mubr.f32.mxu0 0.0
    %3999 = vmatmul.mubr.f32.gmra.mxu0 %v1385
    %v4000 = vpop.f32.mrf.mxu0
    %v4001 = vadd.f32 0.0, %v4000
    %v4002 = vpop.f32.mrf.mxu0
    %4003 = vmatprep.mubr.f32.mxu0 0.0
    %4004 = vmatmul.mubr.f32.gmra.mxu0 %v1388
    %v4005 = vpop.f32.mrf.mxu0
    %v4006 = vadd.f32 0.0, %v4005
    %v4007 = vpop.f32.mrf.mxu0
    %4008 = vdwg.mxu0
    %4015 = vrot.lane.b32.xlu0 %v3924, 116
    %v4016 = vpop.permute.xlu0 %4015
    %4017 = vrot.lane.b32.xlu0 %v3926, 116
    %v4018 = vpop.permute.xlu0 %4017
    %4019 = vrot.lane.b32.xlu0 %v4001, 116
    %v4020 = vpop.permute.xlu0 %4019
    %4021 = vrot.lane.b32.xlu0 %v3930, 116
    %v4022 = vpop.permute.xlu0 %4021
    %4023 = vrot.lane.b32.xlu0 %v3932, 116
    %v4024 = vpop.permute.xlu0 %4023
    %4025 = vrot.lane.b32.xlu0 %v4006, 116
    %v4026 = vpop.permute.xlu0 %4025
    %v4027 = vsel %vm1570, %v4016, %v4018
    %v4028 = vsel %vm1570, %v4018, %v4020
    %v4029 = vsel %vm1570, %v4022, %v4024
    %v4030 = vsel %vm1570, %v4024, %v4026
    %v4037 = vmax.f32 %v3924, %v4027
    %v4038 = vmax.f32 %v3926, %v4028
    %v4039 = vmax.f32 %v4001, %v4020
    %v4040 = vmax.f32 %v3930, %v4029
    %v4041 = vmax.f32 %v3932, %v4030
    %v4042 = vmax.f32 %v4006, %v4026
    %v4044 = vsel %vm1587, %v4039, 0
    %v4047 = vsel %vm1587, %v4042, 0
    %4049 = vmatprep.subr.mxu0 %v82
    %4050 = vmatpush1.msra.mxu0 %v81
    %4051 = vmatprep.subr.mxu0 %v80
    %4052 = vmatpush1.msra.mxu0 %v79
    %4053 = vmatprep.subr.mxu0 %v78
    %4054 = vmatpush1.msra.mxu0 %v77
    %4055 = vmatprep.subr.mxu0 %v76
    %4056 = vmatpush1.msra.mxu0 %v75
    %4057 = vmatprep.subr.mxu0 %v74
    %4058 = vmatpush1.msra.mxu0 %v73
    %4059 = vmatprep.subr.mxu0 %v72
    %4060 = vmatpush1.msra.mxu0 %v71
    %4061 = vmatprep.subr.mxu0 %v70
    %4062 = vmatpush1.msra.mxu0 %v69
    %4063 = vmatprep.subr.mxu0 %v68
    %4064 = vmatpush1.msra.mxu0 %v67
    %4065 = vmatprep.subr.mxu0 %v66
    %4066 = vmatpush1.msra.mxu0 %v65
    %4067 = vmatprep.subr.mxu0 %v64
    %4068 = vmatpush1.msra.mxu0 %v63
    %4069 = vmatprep.subr.mxu0 %v62
    %4070 = vmatpush1.msra.mxu0 %v61
    %4071 = vmatprep.subr.mxu0 %v60
    %4072 = vmatpush1.msra.mxu0 %v59
    %4073 = vmatprep.subr.mxu0 %v58
    %4074 = vmatpush1.msra.mxu0 %v57
    %4075 = vmatprep.subr.mxu0 %v56
    %4076 = vmatpush1.msra.mxu0 %v55
    %4077 = vmatprep.subr.mxu0 %v54
    %4078 = vmatpush1.msra.mxu0 %v53
    %4079 = vmatprep.subr.mxu0 %v52
    %4080 = vmatpush1.msra.mxu0 %v51
    %4081 = vmatprep.subr.mxu0 %v114
    %4082 = vmatpush2.msra.mxu0 %v113
    %4083 = vmatprep.subr.mxu0 %v112
    %4084 = vmatpush2.msra.mxu0 %v111
    %4085 = vmatprep.subr.mxu0 %v110
    %4086 = vmatpush2.msra.mxu0 %v109
    %4087 = vmatprep.subr.mxu0 %v108
    %4088 = vmatpush2.msra.mxu0 %v107
    %4089 = vmatprep.subr.mxu0 %v106
    %4090 = vmatpush2.msra.mxu0 %v105
    %4091 = vmatprep.subr.mxu0 %v104
    %4092 = vmatpush2.msra.mxu0 %v103
    %4093 = vmatprep.subr.mxu0 %v102
    %4094 = vmatpush2.msra.mxu0 %v101
    %4095 = vmatprep.subr.mxu0 %v100
    %4096 = vmatpush2.msra.mxu0 %v99
    %4097 = vmatprep.subr.mxu0 %v98
    %4098 = vmatpush2.msra.mxu0 %v97
    %4099 = vmatprep.subr.mxu0 %v96
    %4100 = vmatpush2.msra.mxu0 %v95
    %4101 = vmatprep.subr.mxu0 %v94
    %4102 = vmatpush2.msra.mxu0 %v93
    %4103 = vmatprep.subr.mxu0 %v92
    %4104 = vmatpush2.msra.mxu0 %v91
    %4105 = vmatprep.subr.mxu0 %v90
    %4106 = vmatpush2.msra.mxu0 %v89
    %4107 = vmatprep.subr.mxu0 %v88
    %4108 = vmatpush2.msra.mxu0 %v87
    %4109 = vmatprep.subr.mxu0 %v86
    %4110 = vmatpush2.msra.mxu0 %v85
    %4111 = vmatprep.subr.mxu0 %v84
    %4112 = vmatpush2.msra.mxu0 %v83
    %4113 = vmatprep.mubr.f32.mxu0 %v4038
    %4114 = vmatmul.mubr.f32.gmra.mxu0 %v4037
    %v4115 = vpop.f32.mrf.mxu0
    %v4116 = vadd.f32 0.0, %v4115
    %v4117 = vpop.f32.mrf.mxu0
    %v4118 = vadd.f32 0.0, %v4117
    %4119 = vmatprep.mubr.f32.mxu0 %v4041
    %4120 = vmatmul.mubr.f32.gmra.mxu0 %v4040
    %v4121 = vpop.f32.mrf.mxu0
    %v4122 = vadd.f32 0.0, %v4121
    %v4123 = vpop.f32.mrf.mxu0
    %v4124 = vadd.f32 0.0, %v4123
    %4125 = vdwg.mxu0
    %4126 = vmatprep.subr.mxu0 0.0
    %4127 = vmatpush1.msra.mxu0 0.0
    %4128 = vmatprep.subr.mxu0 0.0
    %4129 = vmatpush1.msra.mxu0 0.0
    %4130 = vmatprep.subr.mxu0 0.0
    %4131 = vmatpush1.msra.mxu0 0.0
    %4132 = vmatprep.subr.mxu0 0.0
    %4133 = vmatpush1.msra.mxu0 0.0
    %4134 = vmatprep.subr.mxu0 0.0
    %4135 = vmatpush1.msra.mxu0 0.0
    %4136 = vmatprep.subr.mxu0 0.0
    %4137 = vmatpush1.msra.mxu0 0.0
    %4138 = vmatprep.subr.mxu0 0.0
    %4139 = vmatpush1.msra.mxu0 0.0
    %4140 = vmatprep.subr.mxu0 %v1599
    %4141 = vmatpush1.msra.mxu0 %v1596
    %4142 = vmatprep.subr.mxu0 %v130
    %4143 = vmatpush1.msra.mxu0 %v129
    %4144 = vmatprep.subr.mxu0 %v128
    %4145 = vmatpush1.msra.mxu0 %v127
    %4146 = vmatprep.subr.mxu0 %v126
    %4147 = vmatpush1.msra.mxu0 %v125
    %4148 = vmatprep.subr.mxu0 %v124
    %4149 = vmatpush1.msra.mxu0 %v123
    %4150 = vmatprep.subr.mxu0 %v122
    %4151 = vmatpush1.msra.mxu0 %v121
    %4152 = vmatprep.subr.mxu0 %v120
    %4153 = vmatpush1.msra.mxu0 %v119
    %4154 = vmatprep.subr.mxu0 %v118
    %4155 = vmatpush1.msra.mxu0 %v117
    %4156 = vmatprep.subr.mxu0 %v116
    %4157 = vmatpush1.msra.mxu0 %v115
    %4158 = vmatprep.subr.mxu0 0.0
    %4159 = vmatpush2.msra.mxu0 0.0
    %4160 = vmatprep.subr.mxu0 0.0
    %4161 = vmatpush2.msra.mxu0 0.0
    %4162 = vmatprep.subr.mxu0 0.0
    %4163 = vmatpush2.msra.mxu0 0.0
    %4164 = vmatprep.subr.mxu0 0.0
    %4165 = vmatpush2.msra.mxu0 0.0
    %4166 = vmatprep.subr.mxu0 0.0
    %4167 = vmatpush2.msra.mxu0 0.0
    %4168 = vmatprep.subr.mxu0 0.0
    %4169 = vmatpush2.msra.mxu0 0.0
    %4170 = vmatprep.subr.mxu0 0.0
    %4171 = vmatpush2.msra.mxu0 0.0
    %4172 = vmatprep.subr.mxu0 0.0
    %4173 = vmatpush2.msra.mxu0 0.0
    %4174 = vmatprep.subr.mxu0 0.0
    %4175 = vmatpush2.msra.mxu0 0.0
    %4176 = vmatprep.subr.mxu0 0.0
    %4177 = vmatpush2.msra.mxu0 0.0
    %4178 = vmatprep.subr.mxu0 0.0
    %4179 = vmatpush2.msra.mxu0 0.0
    %4180 = vmatprep.subr.mxu0 0.0
    %4181 = vmatpush2.msra.mxu0 0.0
    %4182 = vmatprep.subr.mxu0 0.0
    %4183 = vmatpush2.msra.mxu0 0.0
    %4184 = vmatprep.subr.mxu0 0.0
    %4185 = vmatpush2.msra.mxu0 0.0
    %4186 = vmatprep.subr.mxu0 0.0
    %4187 = vmatpush2.msra.mxu0 0.0
    %4188 = vmatprep.subr.mxu0 0.0
    %4189 = vmatpush2.msra.mxu0 0.0
    %4190 = vmatprep.mubr.f32.mxu0 0.0
    %4191 = vmatmul.mubr.f32.gmra.mxu0 %v4044
    %v4192 = vpop.f32.mrf.mxu0
    %v4193 = vadd.f32 %v4116, %v4192
    %v4194 = vpop.f32.mrf.mxu0
    %v4195 = vadd.f32 %v4118, %v4194
    %4196 = vmatprep.mubr.f32.mxu0 0.0
    %4197 = vmatmul.mubr.f32.gmra.mxu0 %v4047
    %v4198 = vpop.f32.mrf.mxu0
    %v4199 = vadd.f32 %v4122, %v4198
    %v4200 = vpop.f32.mrf.mxu0
    %v4201 = vadd.f32 %v4124, %v4200
    %4202 = vdwg.mxu0
    %v4203 = vld [vmem:[%s2] sm:$0xff]
    %v4204 = vld [vmem:[%s2 + $0x8] sm:$0xff]
    %v4205 = vld [vmem:[%s2 + $0x10] sm:$0xff]
    %v4206 = vld [vmem:[%s2 + $0x18] sm:$0xff]
    %v4207 = vld [vmem:[%s2 + $0x20] sm:$0xff]
    %v4208 = vld [vmem:[%s2 + $0x28] sm:$0xff]
    %v4209 = vld [vmem:[%s2 + $0x30] sm:$0xff]
    %v4210 = vld [vmem:[%s2 + $0x38] sm:$0xff]
    %v4211 = vld [vmem:[%s2 + $0x40] sm:$0xff]
    %v4212 = vld [vmem:[%s2 + $0x48] sm:$0xff]
    %v4213 = vld [vmem:[%s2 + $0x50] sm:$0xff]
    %v4214 = vld [vmem:[%s2 + $0x58] sm:$0xff]
    %v4215 = vld [vmem:[%s2 + $0x60] sm:$0xff]
    %v4216 = vld [vmem:[%s2 + $0x68] sm:$0xff]
    %v4217 = vld [vmem:[%s2 + $0x70] sm:$0xff]
    %v4218 = vld [vmem:[%s2 + $0x78] sm:$0xff]
    %v4219 = vld [vmem:[%s2 + $0x80] sm:$0xff]
    %v4220 = vld [vmem:[%s2 + $0x88] sm:$0xff]
    %v4221 = vld [vmem:[%s2 + $0x90] sm:$0xff]
    %v4222 = vld [vmem:[%s2 + $0x98] sm:$0xff]
    %v4223 = vld [vmem:[%s2 + $0xa0] sm:$0xff]
    %v4224 = vld [vmem:[%s2 + $0xa8] sm:$0xff]
    %v4225 = vld [vmem:[%s2 + $0xb0] sm:$0xff]
    %v4226 = vld [vmem:[%s2 + $0xb8] sm:$0xff]
    %v4227 = vld [vmem:[%s2 + $0xc0] sm:$0xff]
    %v4228 = vld [vmem:[%s2 + $0xc8] sm:$0xff]
    %v4229 = vld [vmem:[%s2 + $0xd0] sm:$0xff]
    %v4230 = vld [vmem:[%s2 + $0xd8] sm:$0xff]
    %v4231 = vld [vmem:[%s2 + $0xe0] sm:$0xff]
    %v4232 = vld [vmem:[%s2 + $0xe8] sm:$0xff]
    %v4233 = vld [vmem:[%s2 + $0xf0] sm:$0xff]
    %v4234 = vld [vmem:[%s2 + $0xf8] sm:$0xff]
    %v4235 = vld [vmem:[%s2 + $0x100] sm:$0xff]
    %v4236 = vld [vmem:[%s2 + $0x108] sm:$0xff]
    %v4237 = vld [vmem:[%s2 + $0x110] sm:$0xff]
    %v4238 = vld [vmem:[%s2 + $0x118] sm:$0xff]
    %v4239 = vld [vmem:[%s2 + $0x120] sm:$0xff]
    %v4240 = vld [vmem:[%s2 + $0x128] sm:$0xff]
    %v4241 = vld [vmem:[%s2 + $0x130] sm:$0xff]
    %v4242 = vld [vmem:[%s2 + $0x138] sm:$0xff]
    %v4243 = vld [vmem:[%s2 + $0x140] sm:$0xff]
    %v4244 = vld [vmem:[%s2 + $0x148] sm:$0xff]
    %v4245 = vld [vmem:[%s2 + $0x150] sm:$0xff]
    %v4246 = vld [vmem:[%s2 + $0x158] sm:$0xff]
    %v4247 = vld [vmem:[%s2 + $0x160] sm:$0xff]
    %v4248 = vld [vmem:[%s2 + $0x168] sm:$0xff]
    %v4249 = vld [vmem:[%s2 + $0x170] sm:$0xff]
    %v4250 = vld [vmem:[%s2 + $0x178] sm:$0xff]
    %v4251 = vld [vmem:[%s2 + $0x180] sm:$0xff]
    %v4252 = vld [vmem:[%s2 + $0x188] sm:$0xff]
    %v4253 = vld [vmem:[%s2 + $0x190] sm:$0xff]
    %v4254 = vld [vmem:[%s2 + $0x198] sm:$0xff]
    %v4255 = vld [vmem:[%s2 + $0x1a0] sm:$0xff]
    %v4256 = vld [vmem:[%s2 + $0x1a8] sm:$0xff]
    %v4257 = vld [vmem:[%s2 + $0x1b0] sm:$0xff]
    %v4258 = vld [vmem:[%s2 + $0x1b8] sm:$0xff]
    %v4259 = vld [vmem:[%s2 + $0x1c0] sm:$0xff]
    %v4260 = vld [vmem:[%s2 + $0x1c8] sm:$0xff]
    %v4261 = vld [vmem:[%s2 + $0x1d0] sm:$0xff]
    %v4262 = vld [vmem:[%s2 + $0x1d8] sm:$0xff]
    %v4263 = vld [vmem:[%s2 + $0x1e0] sm:$0xff]
    %v4264 = vld [vmem:[%s2 + $0x1e8] sm:$0xff]
    %v4265 = vld [vmem:[%s2 + $0x1f0] sm:$0xff]
    %v4266 = vld [vmem:[%s2 + $0x1f8] sm:$0xff]
    %v4267 = vld [vmem:[%s2 + $0x200] sm:$0xff]
    %v4268 = vld [vmem:[%s2 + $0x208] sm:$0xff]
    %v4269 = vld [vmem:[%s2 + $0x210] sm:$0xff]
    %v4270 = vld [vmem:[%s2 + $0x218] sm:$0xff]
    %v4271 = vld [vmem:[%s2 + $0x220] sm:$0xff]
    %v4272 = vld [vmem:[%s2 + $0x228] sm:$0xff]
    %v4273 = vld [vmem:[%s2 + $0x230] sm:$0xff]
    %v4274 = vld [vmem:[%s2 + $0x238] sm:$0xff]
    %v4275 = vld [vmem:[%s2 + $0x240] sm:$0xff]
    %v4276 = vld [vmem:[%s2 + $0x248] sm:$0xff]
    %v4277 = vld [vmem:[%s2 + $0x250] sm:$0xff]
    %v4278 = vld [vmem:[%s2 + $0x258] sm:$0xff]
    %v4279 = vld [vmem:[%s2 + $0x260] sm:$0xff]
    %v4280 = vld [vmem:[%s2 + $0x268] sm:$0xff]
    %v4281 = vld [vmem:[%s2 + $0x270] sm:$0xff]
    %v4282 = vld [vmem:[%s2 + $0x278] sm:$0xff]
    %v4283 = vld [vmem:[%s2 + $0x280] sm:$0xff]
    %v4284 = vld [vmem:[%s2 + $0x288] sm:$0xff]
    %v4285 = vld [vmem:[%s2 + $0x290] sm:$0xff]
    %v4286 = vld [vmem:[%s2 + $0x298] sm:$0xff]
    %v4291 = vrot.slane %v4193, 1
    %v4292 = vrot.slane %v4199, 1
    %v4293 = vsel %vm1337, %v4291, %v4292
    %v4294 = vrot.slane %v4195, 1
    %v4295 = vrot.slane %v4201, 1
    %v4296 = vsel %vm1337, %v4294, %v4295
    %v4299 = vsel %vm1851, %v4296, 0
    %v4301 = vsel %vm1851, %v4295, 0
    %4303 = vmatprep.subr.mxu0 %v4276
    %4304 = vmatpush1.msra.mxu0 %v4275
    %4305 = vmatprep.subr.mxu0 %v4274
    %4306 = vmatpush1.msra.mxu0 %v4273
    %4307 = vmatprep.subr.mxu0 %v4272
    %4308 = vmatpush1.msra.mxu0 %v4271
    %4309 = vmatprep.subr.mxu0 %v4270
    %4310 = vmatpush1.msra.mxu0 %v4269
    %4311 = vmatprep.subr.mxu0 %v4268
    %4312 = vmatpush1.msra.mxu0 %v4267
    %4313 = vmatprep.subr.mxu0 %v4266
    %4314 = vmatpush1.msra.mxu0 %v4265
    %4315 = vmatprep.subr.mxu0 %v4264
    %4316 = vmatpush1.msra.mxu0 %v4263
    %4317 = vmatprep.subr.mxu0 %v4262
    %4318 = vmatpush1.msra.mxu0 %v4261
    %4319 = vmatprep.subr.mxu0 %v4260
    %4320 = vmatpush1.msra.mxu0 %v4259
    %4321 = vmatprep.subr.mxu0 %v4258
    %4322 = vmatpush1.msra.mxu0 %v4257
    %4323 = vmatprep.subr.mxu0 %v4256
    %4324 = vmatpush1.msra.mxu0 %v4255
    %4325 = vmatprep.subr.mxu0 %v4254
    %4326 = vmatpush1.msra.mxu0 %v4253
    %4327 = vmatprep.subr.mxu0 %v4252
    %4328 = vmatpush1.msra.mxu0 %v4251
    %4329 = vmatprep.subr.mxu0 %v4250
    %4330 = vmatpush1.msra.mxu0 %v4249
    %4331 = vmatprep.subr.mxu0 %v4248
    %4332 = vmatpush1.msra.mxu0 %v4247
    %4333 = vmatprep.subr.mxu0 %v4246
    %4334 = vmatpush1.msra.mxu0 %v4245
    %4335 = vmatprep.subr.mxu0 0.0
    %4336 = vmatpush2.msra.mxu0 0.0
    %4337 = vmatprep.subr.mxu0 0.0
    %4338 = vmatpush2.msra.mxu0 0.0
    %4339 = vmatprep.subr.mxu0 0.0
    %4340 = vmatpush2.msra.mxu0 0.0
    %4341 = vmatprep.subr.mxu0 0.0
    %4342 = vmatpush2.msra.mxu0 0.0
    %4343 = vmatprep.subr.mxu0 0.0
    %4344 = vmatpush2.msra.mxu0 0.0
    %4345 = vmatprep.subr.mxu0 0.0
    %4346 = vmatpush2.msra.mxu0 0.0
    %4347 = vmatprep.subr.mxu0 0.0
    %4348 = vmatpush2.msra.mxu0 0.0
    %4349 = vmatprep.subr.mxu0 0.0
    %4350 = vmatpush2.msra.mxu0 0.0
    %4351 = vmatprep.subr.mxu0 0.0
    %4352 = vmatpush2.msra.mxu0 0.0
    %4353 = vmatprep.subr.mxu0 0.0
    %4354 = vmatpush2.msra.mxu0 0.0
    %4355 = vmatprep.subr.mxu0 0.0
    %4356 = vmatpush2.msra.mxu0 0.0
    %4357 = vmatprep.subr.mxu0 %v4286
    %4358 = vmatpush2.msra.mxu0 %v4285
    %4359 = vmatprep.subr.mxu0 %v4284
    %4360 = vmatpush2.msra.mxu0 %v4283
    %4361 = vmatprep.subr.mxu0 %v4282
    %4362 = vmatpush2.msra.mxu0 %v4281
    %4363 = vmatprep.subr.mxu0 %v4280
    %4364 = vmatpush2.msra.mxu0 %v4279
    %4365 = vmatprep.subr.mxu0 %v4278
    %4366 = vmatpush2.msra.mxu0 %v4277
    %4367 = vmatprep.mubr.f32.mxu0 %v4299
    %4368 = vmatmul.mubr.f32.gmra.mxu0 %v4293
    %v4369 = vpop.f32.mrf.mxu0
    %v4370 = vadd.f32 0.0, %v4369
    %v4371 = vpop.f32.mrf.mxu0
    %v4372 = vadd.f32 0.0, %v4371
    %4373 = vmatprep.mubr.f32.mxu0 %v4301
    %4374 = vmatmul.mubr.f32.gmra.mxu0 %v4292
    %v4375 = vpop.f32.mrf.mxu0
    %v4376 = vadd.f32 0.0, %v4375
    %v4377 = vpop.f32.mrf.mxu0
    %v4378 = vadd.f32 0.0, %v4377
    %4379 = vdwg.mxu0
    %v4380 = vsel %vm1851, %v4195, 0
    %v4382 = vsel %vm1851, %v4201, 0
    %4384 = vmatprep.subr.mxu0 %v4234
    %4385 = vmatpush1.msra.mxu0 %v4233
    %4386 = vmatprep.subr.mxu0 %v4232
    %4387 = vmatpush1.msra.mxu0 %v4231
    %4388 = vmatprep.subr.mxu0 %v4230
    %4389 = vmatpush1.msra.mxu0 %v4229
    %4390 = vmatprep.subr.mxu0 %v4228
    %4391 = vmatpush1.msra.mxu0 %v4227
    %4392 = vmatprep.subr.mxu0 %v4226
    %4393 = vmatpush1.msra.mxu0 %v4225
    %4394 = vmatprep.subr.mxu0 %v4224
    %4395 = vmatpush1.msra.mxu0 %v4223
    %4396 = vmatprep.subr.mxu0 %v4222
    %4397 = vmatpush1.msra.mxu0 %v4221
    %4398 = vmatprep.subr.mxu0 %v4220
    %4399 = vmatpush1.msra.mxu0 %v4219
    %4400 = vmatprep.subr.mxu0 %v4218
    %4401 = vmatpush1.msra.mxu0 %v4217
    %4402 = vmatprep.subr.mxu0 %v4216
    %4403 = vmatpush1.msra.mxu0 %v4215
    %4404 = vmatprep.subr.mxu0 %v4214
    %4405 = vmatpush1.msra.mxu0 %v4213
    %4406 = vmatprep.subr.mxu0 %v4212
    %4407 = vmatpush1.msra.mxu0 %v4211
    %4408 = vmatprep.subr.mxu0 %v4210
    %4409 = vmatpush1.msra.mxu0 %v4209
    %4410 = vmatprep.subr.mxu0 %v4208
    %4411 = vmatpush1.msra.mxu0 %v4207
    %4412 = vmatprep.subr.mxu0 %v4206
    %4413 = vmatpush1.msra.mxu0 %v4205
    %4414 = vmatprep.subr.mxu0 %v4204
    %4415 = vmatpush1.msra.mxu0 %v4203
    %4416 = vmatprep.subr.mxu0 0.0
    %4417 = vmatpush2.msra.mxu0 0.0
    %4418 = vmatprep.subr.mxu0 0.0
    %4419 = vmatpush2.msra.mxu0 0.0
    %4420 = vmatprep.subr.mxu0 0.0
    %4421 = vmatpush2.msra.mxu0 0.0
    %4422 = vmatprep.subr.mxu0 0.0
    %4423 = vmatpush2.msra.mxu0 0.0
    %4424 = vmatprep.subr.mxu0 0.0
    %4425 = vmatpush2.msra.mxu0 0.0
    %4426 = vmatprep.subr.mxu0 0.0
    %4427 = vmatpush2.msra.mxu0 0.0
    %4428 = vmatprep.subr.mxu0 0.0
    %4429 = vmatpush2.msra.mxu0 0.0
    %4430 = vmatprep.subr.mxu0 0.0
    %4431 = vmatpush2.msra.mxu0 0.0
    %4432 = vmatprep.subr.mxu0 0.0
    %4433 = vmatpush2.msra.mxu0 0.0
    %4434 = vmatprep.subr.mxu0 0.0
    %4435 = vmatpush2.msra.mxu0 0.0
    %4436 = vmatprep.subr.mxu0 0.0
    %4437 = vmatpush2.msra.mxu0 0.0
    %4438 = vmatprep.subr.mxu0 %v4244
    %4439 = vmatpush2.msra.mxu0 %v4243
    %4440 = vmatprep.subr.mxu0 %v4242
    %4441 = vmatpush2.msra.mxu0 %v4241
    %4442 = vmatprep.subr.mxu0 %v4240
    %4443 = vmatpush2.msra.mxu0 %v4239
    %4444 = vmatprep.subr.mxu0 %v4238
    %4445 = vmatpush2.msra.mxu0 %v4237
    %4446 = vmatprep.subr.mxu0 %v4236
    %4447 = vmatpush2.msra.mxu0 %v4235
    %4448 = vmatprep.mubr.f32.mxu0 %v4380
    %4449 = vmatmul.mubr.f32.gmra.mxu0 %v4193
    %v4450 = vpop.f32.mrf.mxu0
    %v4451 = vadd.f32 %v4370, %v4450
    %v4452 = vpop.f32.mrf.mxu0
    %v4453 = vadd.f32 %v4372, %v4452
    %4454 = vmatprep.mubr.f32.mxu0 %v4382
    %4455 = vmatmul.mubr.f32.gmra.mxu0 %v4199
    %v4456 = vpop.f32.mrf.mxu0
    %v4457 = vadd.f32 %v4376, %v4456
    %v4458 = vpop.f32.mrf.mxu0
    %v4459 = vadd.f32 %v4378, %v4458
    %4460 = vdwg.mxu0
    %v4461 = vld [vmem:[%s2 + $0x2a0] sm:$0xff]
    %v4462 = vld [vmem:[%s2 + $0x2a8] sm:$0xff]
    %v4463 = vld [vmem:[%s2 + $0x2b0] sm:$0xff]
    %v4464 = vld [vmem:[%s2 + $0x2b8] sm:$0xff]
    %v4465 = vld [vmem:[%s2 + $0x2c0] sm:$0xff]
    %v4466 = vld [vmem:[%s2 + $0x2c8] sm:$0xff]
    %v4467 = vld [vmem:[%s2 + $0x2d0] sm:$0xff]
    %v4468 = vld [vmem:[%s2 + $0x2d8] sm:$0xff]
    %v4469 = vld [vmem:[%s2 + $0x2e0] sm:$0xff]
    %v4470 = vld [vmem:[%s2 + $0x2e8] sm:$0xff]
    %v4471 = vld [vmem:[%s2 + $0x2f0] sm:$0xff]
    %v4472 = vld [vmem:[%s2 + $0x2f8] sm:$0xff]
    %v4473 = vld [vmem:[%s2 + $0x300] sm:$0xff]
    %v4474 = vld [vmem:[%s2 + $0x308] sm:$0xff]
    %v4475 = vld [vmem:[%s2 + $0x310] sm:$0xff]
    %v4476 = vld [vmem:[%s2 + $0x318] sm:$0xff]
    %v4477 = vld [vmem:[%s2 + $0x320] sm:$0xff]
    %v4478 = vld [vmem:[%s2 + $0x328] sm:$0xff]
    %v4479 = vld [vmem:[%s2 + $0x330] sm:$0xff]
    %v4480 = vld [vmem:[%s2 + $0x338] sm:$0xff]
    %v4481 = vld [vmem:[%s2 + $0x340] sm:$0xff]
    %v4482 = vld [vmem:[%s2 + $0x348] sm:$0xff]
    %v4483 = vld [vmem:[%s2 + $0x350] sm:$0xff]
    %v4484 = vld [vmem:[%s2 + $0x358] sm:$0xff]
    %v4485 = vld [vmem:[%s2 + $0x360] sm:$0xff]
    %v4486 = vld [vmem:[%s2 + $0x368] sm:$0xff]
    %v4487 = vld [vmem:[%s2 + $0x370] sm:$0xff]
    %v4488 = vld [vmem:[%s2 + $0x378] sm:$0xff]
    %v4489 = vld [vmem:[%s2 + $0x380] sm:$0xff]
    %v4490 = vld [vmem:[%s2 + $0x388] sm:$0xff]
    %v4491 = vld [vmem:[%s2 + $0x390] sm:$0xff]
    %v4492 = vld [vmem:[%s2 + $0x398] sm:$0xff]
    %v4493 = vld [vmem:[%s2 + $0x3a0] sm:$0xff]
    %v4494 = vld [vmem:[%s2 + $0x3a8] sm:$0xff]
    %v4495 = vld [vmem:[%s2 + $0x3b0] sm:$0xff]
    %v4496 = vld [vmem:[%s2 + $0x3b8] sm:$0xff]
    %v4497 = vld [vmem:[%s2 + $0x3c0] sm:$0xff]
    %v4498 = vld [vmem:[%s2 + $0x3c8] sm:$0xff]
    %v4499 = vld [vmem:[%s2 + $0x3d0] sm:$0xff]
    %v4500 = vld [vmem:[%s2 + $0x3d8] sm:$0xff]
    %v4501 = vld [vmem:[%s2 + $0x3e0] sm:$0xff]
    %v4502 = vld [vmem:[%s2 + $0x3e8] sm:$0xff]
    %v4503 = vrot.slane %v4193, 2
    %v4504 = vrot.slane %v4199, 2
    %v4505 = vsel %vm2056, %v4503, %v4504
    %v4506 = vrot.slane %v4195, 2
    %v4507 = vrot.slane %v4201, 2
    %v4508 = vsel %vm2056, %v4506, %v4507
    %v4511 = vsel %vm1851, %v4508, 0
    %v4513 = vsel %vm1851, %v4507, 0
    %4515 = vmatprep.subr.mxu0 %v4492
    %4516 = vmatpush1.msra.mxu0 %v4491
    %4517 = vmatprep.subr.mxu0 %v4490
    %4518 = vmatpush1.msra.mxu0 %v4489
    %4519 = vmatprep.subr.mxu0 %v4488
    %4520 = vmatpush1.msra.mxu0 %v4487
    %4521 = vmatprep.subr.mxu0 %v4486
    %4522 = vmatpush1.msra.mxu0 %v4485
    %4523 = vmatprep.subr.mxu0 %v4484
    %4524 = vmatpush1.msra.mxu0 %v4483
    %4525 = vmatprep.subr.mxu0 %v4482
    %4526 = vmatpush1.msra.mxu0 %v4481
    %4527 = vmatprep.subr.mxu0 %v4480
    %4528 = vmatpush1.msra.mxu0 %v4479
    %4529 = vmatprep.subr.mxu0 %v4478
    %4530 = vmatpush1.msra.mxu0 %v4477
    %4531 = vmatprep.subr.mxu0 %v4476
    %4532 = vmatpush1.msra.mxu0 %v4475
    %4533 = vmatprep.subr.mxu0 %v4474
    %4534 = vmatpush1.msra.mxu0 %v4473
    %4535 = vmatprep.subr.mxu0 %v4472
    %4536 = vmatpush1.msra.mxu0 %v4471
    %4537 = vmatprep.subr.mxu0 %v4470
    %4538 = vmatpush1.msra.mxu0 %v4469
    %4539 = vmatprep.subr.mxu0 %v4468
    %4540 = vmatpush1.msra.mxu0 %v4467
    %4541 = vmatprep.subr.mxu0 %v4466
    %4542 = vmatpush1.msra.mxu0 %v4465
    %4543 = vmatprep.subr.mxu0 %v4464
    %4544 = vmatpush1.msra.mxu0 %v4463
    %4545 = vmatprep.subr.mxu0 %v4462
    %4546 = vmatpush1.msra.mxu0 %v4461
    %4547 = vmatprep.subr.mxu0 0.0
    %4548 = vmatpush2.msra.mxu0 0.0
    %4549 = vmatprep.subr.mxu0 0.0
    %4550 = vmatpush2.msra.mxu0 0.0
    %4551 = vmatprep.subr.mxu0 0.0
    %4552 = vmatpush2.msra.mxu0 0.0
    %4553 = vmatprep.subr.mxu0 0.0
    %4554 = vmatpush2.msra.mxu0 0.0
    %4555 = vmatprep.subr.mxu0 0.0
    %4556 = vmatpush2.msra.mxu0 0.0
    %4557 = vmatprep.subr.mxu0 0.0
    %4558 = vmatpush2.msra.mxu0 0.0
    %4559 = vmatprep.subr.mxu0 0.0
    %4560 = vmatpush2.msra.mxu0 0.0
    %4561 = vmatprep.subr.mxu0 0.0
    %4562 = vmatpush2.msra.mxu0 0.0
    %4563 = vmatprep.subr.mxu0 0.0
    %4564 = vmatpush2.msra.mxu0 0.0
    %4565 = vmatprep.subr.mxu0 0.0
    %4566 = vmatpush2.msra.mxu0 0.0
    %4567 = vmatprep.subr.mxu0 0.0
    %4568 = vmatpush2.msra.mxu0 0.0
    %4569 = vmatprep.subr.mxu0 %v4502
    %4570 = vmatpush2.msra.mxu0 %v4501
    %4571 = vmatprep.subr.mxu0 %v4500
    %4572 = vmatpush2.msra.mxu0 %v4499
    %4573 = vmatprep.subr.mxu0 %v4498
    %4574 = vmatpush2.msra.mxu0 %v4497
    %4575 = vmatprep.subr.mxu0 %v4496
    %4576 = vmatpush2.msra.mxu0 %v4495
    %4577 = vmatprep.subr.mxu0 %v4494
    %4578 = vmatpush2.msra.mxu0 %v4493
    %4579 = vmatprep.mubr.f32.mxu0 %v4511
    %4580 = vmatmul.mubr.f32.gmra.mxu0 %v4505
    %v4581 = vpop.f32.mrf.mxu0
    %v4582 = vadd.f32 0.0, %v4581
    %v4583 = vpop.f32.mrf.mxu0
    %v4584 = vadd.f32 0.0, %v4583
    %4585 = vmatprep.mubr.f32.mxu0 %v4513
    %4586 = vmatmul.mubr.f32.gmra.mxu0 %v4504
    %v4587 = vpop.f32.mrf.mxu0
    %v4588 = vadd.f32 0.0, %v4587
    %v4589 = vpop.f32.mrf.mxu0
    %v4590 = vadd.f32 0.0, %v4589
    %4591 = vdwg.mxu0
    %v4592 = vadd.f32 %v4451, %v4582
    %v4593 = vadd.f32 %v4453, %v4584
    %v4594 = vadd.f32 %v4457, %v4588
    %v4595 = vadd.f32 %v4459, %v4590
    %v4596 = vld [vmem:[%s2 + $0x3f0] sm:$0xff]
    %v4597 = vld [vmem:[%s2 + $0x3f8] sm:$0xff]
    %v4598 = vld [vmem:[%s2 + $0x400] sm:$0xff]
    %v4599 = vld [vmem:[%s2 + $0x408] sm:$0xff]
    %v4600 = vld [vmem:[%s2 + $0x410] sm:$0xff]
    %v4601 = vld [vmem:[%s2 + $0x418] sm:$0xff]
    %v4602 = vld [vmem:[%s2 + $0x420] sm:$0xff]
    %v4603 = vld [vmem:[%s2 + $0x428] sm:$0xff]
    %v4604 = vld [vmem:[%s2 + $0x430] sm:$0xff]
    %v4605 = vld [vmem:[%s2 + $0x438] sm:$0xff]
    %v4606 = vld [vmem:[%s2 + $0x440] sm:$0xff]
    %v4607 = vld [vmem:[%s2 + $0x448] sm:$0xff]
    %v4608 = vld [vmem:[%s2 + $0x450] sm:$0xff]
    %v4609 = vld [vmem:[%s2 + $0x458] sm:$0xff]
    %v4610 = vld [vmem:[%s2 + $0x460] sm:$0xff]
    %v4611 = vld [vmem:[%s2 + $0x468] sm:$0xff]
    %v4612 = vld [vmem:[%s2 + $0x470] sm:$0xff]
    %v4613 = vld [vmem:[%s2 + $0x478] sm:$0xff]
    %v4614 = vld [vmem:[%s2 + $0x480] sm:$0xff]
    %v4615 = vld [vmem:[%s2 + $0x488] sm:$0xff]
    %v4616 = vld [vmem:[%s2 + $0x490] sm:$0xff]
    %v4617 = vld [vmem:[%s2 + $0x498] sm:$0xff]
    %v4618 = vld [vmem:[%s2 + $0x4a0] sm:$0xff]
    %v4619 = vld [vmem:[%s2 + $0x4a8] sm:$0xff]
    %v4620 = vld [vmem:[%s2 + $0x4b0] sm:$0xff]
    %v4621 = vld [vmem:[%s2 + $0x4b8] sm:$0xff]
    %v4622 = vld [vmem:[%s2 + $0x4c0] sm:$0xff]
    %v4623 = vld [vmem:[%s2 + $0x4c8] sm:$0xff]
    %v4624 = vld [vmem:[%s2 + $0x4d0] sm:$0xff]
    %v4625 = vld [vmem:[%s2 + $0x4d8] sm:$0xff]
    %v4626 = vld [vmem:[%s2 + $0x4e0] sm:$0xff]
    %v4627 = vld [vmem:[%s2 + $0x4e8] sm:$0xff]
    %v4628 = vld [vmem:[%s2 + $0x4f0] sm:$0xff]
    %v4629 = vld [vmem:[%s2 + $0x4f8] sm:$0xff]
    %v4630 = vld [vmem:[%s2 + $0x500] sm:$0xff]
    %v4631 = vld [vmem:[%s2 + $0x508] sm:$0xff]
    %v4632 = vld [vmem:[%s2 + $0x510] sm:$0xff]
    %v4633 = vld [vmem:[%s2 + $0x518] sm:$0xff]
    %v4634 = vld [vmem:[%s2 + $0x520] sm:$0xff]
    %v4635 = vld [vmem:[%s2 + $0x528] sm:$0xff]
    %v4636 = vld [vmem:[%s2 + $0x530] sm:$0xff]
    %v4637 = vld [vmem:[%s2 + $0x538] sm:$0xff]
    %v4638 = vrot.slane %v4193, 3
    %v4639 = vrot.slane %v4199, 3
    %v4640 = vsel %vm2192, %v4638, %v4639
    %v4641 = vrot.slane %v4195, 3
    %v4642 = vrot.slane %v4201, 3
    %v4643 = vsel %vm2192, %v4641, %v4642
    %v4646 = vsel %vm1851, %v4643, 0
    %v4648 = vsel %vm1851, %v4642, 0
    %4650 = vmatprep.subr.mxu0 %v4627
    %4651 = vmatpush1.msra.mxu0 %v4626
    %4652 = vmatprep.subr.mxu0 %v4625
    %4653 = vmatpush1.msra.mxu0 %v4624
    %4654 = vmatprep.subr.mxu0 %v4623
    %4655 = vmatpush1.msra.mxu0 %v4622
    %4656 = vmatprep.subr.mxu0 %v4621
    %4657 = vmatpush1.msra.mxu0 %v4620
    %4658 = vmatprep.subr.mxu0 %v4619
    %4659 = vmatpush1.msra.mxu0 %v4618
    %4660 = vmatprep.subr.mxu0 %v4617
    %4661 = vmatpush1.msra.mxu0 %v4616
    %4662 = vmatprep.subr.mxu0 %v4615
    %4663 = vmatpush1.msra.mxu0 %v4614
    %4664 = vmatprep.subr.mxu0 %v4613
    %4665 = vmatpush1.msra.mxu0 %v4612
    %4666 = vmatprep.subr.mxu0 %v4611
    %4667 = vmatpush1.msra.mxu0 %v4610
    %4668 = vmatprep.subr.mxu0 %v4609
    %4669 = vmatpush1.msra.mxu0 %v4608
    %4670 = vmatprep.subr.mxu0 %v4607
    %4671 = vmatpush1.msra.mxu0 %v4606
    %4672 = vmatprep.subr.mxu0 %v4605
    %4673 = vmatpush1.msra.mxu0 %v4604
    %4674 = vmatprep.subr.mxu0 %v4603
    %4675 = vmatpush1.msra.mxu0 %v4602
    %4676 = vmatprep.subr.mxu0 %v4601
    %4677 = vmatpush1.msra.mxu0 %v4600
    %4678 = vmatprep.subr.mxu0 %v4599
    %4679 = vmatpush1.msra.mxu0 %v4598
    %4680 = vmatprep.subr.mxu0 %v4597
    %4681 = vmatpush1.msra.mxu0 %v4596
    %4682 = vmatprep.subr.mxu0 0.0
    %4683 = vmatpush2.msra.mxu0 0.0
    %4684 = vmatprep.subr.mxu0 0.0
    %4685 = vmatpush2.msra.mxu0 0.0
    %4686 = vmatprep.subr.mxu0 0.0
    %4687 = vmatpush2.msra.mxu0 0.0
    %4688 = vmatprep.subr.mxu0 0.0
    %4689 = vmatpush2.msra.mxu0 0.0
    %4690 = vmatprep.subr.mxu0 0.0
    %4691 = vmatpush2.msra.mxu0 0.0
    %4692 = vmatprep.subr.mxu0 0.0
    %4693 = vmatpush2.msra.mxu0 0.0
    %4694 = vmatprep.subr.mxu0 0.0
    %4695 = vmatpush2.msra.mxu0 0.0
    %4696 = vmatprep.subr.mxu0 0.0
    %4697 = vmatpush2.msra.mxu0 0.0
    %4698 = vmatprep.subr.mxu0 0.0
    %4699 = vmatpush2.msra.mxu0 0.0
    %4700 = vmatprep.subr.mxu0 0.0
    %4701 = vmatpush2.msra.mxu0 0.0
    %4702 = vmatprep.subr.mxu0 0.0
    %4703 = vmatpush2.msra.mxu0 0.0
    %4704 = vmatprep.subr.mxu0 %v4637
    %4705 = vmatpush2.msra.mxu0 %v4636
    %4706 = vmatprep.subr.mxu0 %v4635
    %4707 = vmatpush2.msra.mxu0 %v4634
    %4708 = vmatprep.subr.mxu0 %v4633
    %4709 = vmatpush2.msra.mxu0 %v4632
    %4710 = vmatprep.subr.mxu0 %v4631
    %4711 = vmatpush2.msra.mxu0 %v4630
    %4712 = vmatprep.subr.mxu0 %v4629
    %4713 = vmatpush2.msra.mxu0 %v4628
    %4714 = vmatprep.mubr.f32.mxu0 %v4646
    %4715 = vmatmul.mubr.f32.gmra.mxu0 %v4640
    %v4716 = vpop.f32.mrf.mxu0
    %v4717 = vadd.f32 0.0, %v4716
    %v4718 = vpop.f32.mrf.mxu0
    %v4719 = vadd.f32 0.0, %v4718
    %4720 = vmatprep.mubr.f32.mxu0 %v4648
    %4721 = vmatmul.mubr.f32.gmra.mxu0 %v4639
    %v4722 = vpop.f32.mrf.mxu0
    %v4723 = vadd.f32 0.0, %v4722
    %v4724 = vpop.f32.mrf.mxu0
    %v4725 = vadd.f32 0.0, %v4724
    %4726 = vdwg.mxu0
    %v4727 = vadd.f32 %v4592, %v4717
    %v4728 = vadd.f32 %v4593, %v4719
    %v4729 = vadd.f32 %v4594, %v4723
    %v4730 = vadd.f32 %v4595, %v4725
    %v4731 = vld [vmem:[%s2 + $0x540] sm:$0xff]
    %v4732 = vld [vmem:[%s2 + $0x548] sm:$0xff]
    %v4733 = vld [vmem:[%s2 + $0x550] sm:$0xff]
    %v4734 = vld [vmem:[%s2 + $0x558] sm:$0xff]
    %v4735 = vld [vmem:[%s2 + $0x560] sm:$0xff]
    %v4736 = vld [vmem:[%s2 + $0x568] sm:$0xff]
    %v4737 = vld [vmem:[%s2 + $0x570] sm:$0xff]
    %v4738 = vld [vmem:[%s2 + $0x578] sm:$0xff]
    %v4739 = vld [vmem:[%s2 + $0x580] sm:$0xff]
    %v4740 = vld [vmem:[%s2 + $0x588] sm:$0xff]
    %v4741 = vld [vmem:[%s2 + $0x590] sm:$0xff]
    %v4742 = vld [vmem:[%s2 + $0x598] sm:$0xff]
    %v4743 = vld [vmem:[%s2 + $0x5a0] sm:$0xff]
    %v4744 = vld [vmem:[%s2 + $0x5a8] sm:$0xff]
    %v4745 = vld [vmem:[%s2 + $0x5b0] sm:$0xff]
    %v4746 = vld [vmem:[%s2 + $0x5b8] sm:$0xff]
    %v4747 = vld [vmem:[%s2 + $0x5c0] sm:$0xff]
    %v4748 = vld [vmem:[%s2 + $0x5c8] sm:$0xff]
    %v4749 = vld [vmem:[%s2 + $0x5d0] sm:$0xff]
    %v4750 = vld [vmem:[%s2 + $0x5d8] sm:$0xff]
    %v4751 = vld [vmem:[%s2 + $0x5e0] sm:$0xff]
    %v4752 = vld [vmem:[%s2 + $0x5e8] sm:$0xff]
    %v4753 = vld [vmem:[%s2 + $0x5f0] sm:$0xff]
    %v4754 = vld [vmem:[%s2 + $0x5f8] sm:$0xff]
    %v4755 = vld [vmem:[%s2 + $0x600] sm:$0xff]
    %v4756 = vld [vmem:[%s2 + $0x608] sm:$0xff]
    %v4757 = vld [vmem:[%s2 + $0x610] sm:$0xff]
    %v4758 = vld [vmem:[%s2 + $0x618] sm:$0xff]
    %v4759 = vld [vmem:[%s2 + $0x620] sm:$0xff]
    %v4760 = vld [vmem:[%s2 + $0x628] sm:$0xff]
    %v4761 = vld [vmem:[%s2 + $0x630] sm:$0xff]
    %v4762 = vld [vmem:[%s2 + $0x638] sm:$0xff]
    %v4763 = vld [vmem:[%s2 + $0x640] sm:$0xff]
    %v4764 = vld [vmem:[%s2 + $0x648] sm:$0xff]
    %v4765 = vld [vmem:[%s2 + $0x650] sm:$0xff]
    %v4766 = vld [vmem:[%s2 + $0x658] sm:$0xff]
    %v4767 = vld [vmem:[%s2 + $0x660] sm:$0xff]
    %v4768 = vld [vmem:[%s2 + $0x668] sm:$0xff]
    %v4769 = vld [vmem:[%s2 + $0x670] sm:$0xff]
    %v4770 = vld [vmem:[%s2 + $0x678] sm:$0xff]
    %v4771 = vld [vmem:[%s2 + $0x680] sm:$0xff]
    %v4772 = vld [vmem:[%s2 + $0x688] sm:$0xff]
    %v4773 = vrot.slane %v4193, 4
    %v4774 = vrot.slane %v4199, 4
    %v4775 = vsel %vm1594, %v4773, %v4774
    %v4776 = vrot.slane %v4195, 4
    %v4777 = vrot.slane %v4201, 4
    %v4778 = vsel %vm1594, %v4776, %v4777
    %v4781 = vsel %vm1851, %v4778, 0
    %v4783 = vsel %vm1851, %v4777, 0
    %4785 = vmatprep.subr.mxu0 %v4762
    %4786 = vmatpush1.msra.mxu0 %v4761
    %4787 = vmatprep.subr.mxu0 %v4760
    %4788 = vmatpush1.msra.mxu0 %v4759
    %4789 = vmatprep.subr.mxu0 %v4758
    %4790 = vmatpush1.msra.mxu0 %v4757
    %4791 = vmatprep.subr.mxu0 %v4756
    %4792 = vmatpush1.msra.mxu0 %v4755
    %4793 = vmatprep.subr.mxu0 %v4754
    %4794 = vmatpush1.msra.mxu0 %v4753
    %4795 = vmatprep.subr.mxu0 %v4752
    %4796 = vmatpush1.msra.mxu0 %v4751
    %4797 = vmatprep.subr.mxu0 %v4750
    %4798 = vmatpush1.msra.mxu0 %v4749
    %4799 = vmatprep.subr.mxu0 %v4748
    %4800 = vmatpush1.msra.mxu0 %v4747
    %4801 = vmatprep.subr.mxu0 %v4746
    %4802 = vmatpush1.msra.mxu0 %v4745
    %4803 = vmatprep.subr.mxu0 %v4744
    %4804 = vmatpush1.msra.mxu0 %v4743
    %4805 = vmatprep.subr.mxu0 %v4742
    %4806 = vmatpush1.msra.mxu0 %v4741
    %4807 = vmatprep.subr.mxu0 %v4740
    %4808 = vmatpush1.msra.mxu0 %v4739
    %4809 = vmatprep.subr.mxu0 %v4738
    %4810 = vmatpush1.msra.mxu0 %v4737
    %4811 = vmatprep.subr.mxu0 %v4736
    %4812 = vmatpush1.msra.mxu0 %v4735
    %4813 = vmatprep.subr.mxu0 %v4734
    %4814 = vmatpush1.msra.mxu0 %v4733
    %4815 = vmatprep.subr.mxu0 %v4732
    %4816 = vmatpush1.msra.mxu0 %v4731
    %4817 = vmatprep.subr.mxu0 0.0
    %4818 = vmatpush2.msra.mxu0 0.0
    %4819 = vmatprep.subr.mxu0 0.0
    %4820 = vmatpush2.msra.mxu0 0.0
    %4821 = vmatprep.subr.mxu0 0.0
    %4822 = vmatpush2.msra.mxu0 0.0
    %4823 = vmatprep.subr.mxu0 0.0
    %4824 = vmatpush2.msra.mxu0 0.0
    %4825 = vmatprep.subr.mxu0 0.0
    %4826 = vmatpush2.msra.mxu0 0.0
    %4827 = vmatprep.subr.mxu0 0.0
    %4828 = vmatpush2.msra.mxu0 0.0
    %4829 = vmatprep.subr.mxu0 0.0
    %4830 = vmatpush2.msra.mxu0 0.0
    %4831 = vmatprep.subr.mxu0 0.0
    %4832 = vmatpush2.msra.mxu0 0.0
    %4833 = vmatprep.subr.mxu0 0.0
    %4834 = vmatpush2.msra.mxu0 0.0
    %4835 = vmatprep.subr.mxu0 0.0
    %4836 = vmatpush2.msra.mxu0 0.0
    %4837 = vmatprep.subr.mxu0 0.0
    %4838 = vmatpush2.msra.mxu0 0.0
    %4839 = vmatprep.subr.mxu0 %v4772
    %4840 = vmatpush2.msra.mxu0 %v4771
    %4841 = vmatprep.subr.mxu0 %v4770
    %4842 = vmatpush2.msra.mxu0 %v4769
    %4843 = vmatprep.subr.mxu0 %v4768
    %4844 = vmatpush2.msra.mxu0 %v4767
    %4845 = vmatprep.subr.mxu0 %v4766
    %4846 = vmatpush2.msra.mxu0 %v4765
    %4847 = vmatprep.subr.mxu0 %v4764
    %4848 = vmatpush2.msra.mxu0 %v4763
    %4849 = vmatprep.mubr.f32.mxu0 %v4781
    %4850 = vmatmul.mubr.f32.gmra.mxu0 %v4775
    %v4851 = vpop.f32.mrf.mxu0
    %v4852 = vadd.f32 0.0, %v4851
    %v4853 = vpop.f32.mrf.mxu0
    %v4854 = vadd.f32 0.0, %v4853
    %4855 = vmatprep.mubr.f32.mxu0 %v4783
    %4856 = vmatmul.mubr.f32.gmra.mxu0 %v4774
    %v4857 = vpop.f32.mrf.mxu0
    %v4858 = vadd.f32 0.0, %v4857
    %v4859 = vpop.f32.mrf.mxu0
    %v4860 = vadd.f32 0.0, %v4859
    %4861 = vdwg.mxu0
    %v4862 = vadd.f32 %v4727, %v4852
    %v4863 = vadd.f32 %v4728, %v4854
    %v4864 = vadd.f32 %v4729, %v4858
    %v4865 = vadd.f32 %v4730, %v4860
    %v4866 = vadd.f32 %v4862, %v42
    %v4867 = vadd.f32 %v4863, %v46
    %v4868 = vadd.f32 %v4864, %v42
    %v4869 = vadd.f32 %v4865, %v46
    %v4870 = vmax.f32 %v4866, 0.0
    %v4871 = vmax.f32 %v4867, 0.0
    %v4872 = vmax.f32 %v4868, 0.0
    %v4873 = vmax.f32 %v4869, 0.0
    %v4878 = vrot.slane %v4870, 1
    %v4879 = vrot.slane %v4872, 1
    %v4880 = vsel %vm1337, %v4878, %v4879
    %v4881 = vrot.slane %v4871, 1
    %v4882 = vrot.slane %v4873, 1
    %v4883 = vsel %vm1337, %v4881, %v4882
    %v4888 = vmax.f32 %v4870, %v4880
    %v4889 = vmax.f32 %v4871, %v4883
    %v4890 = vmax.f32 %v4872, %v4879
    %v4891 = vmax.f32 %v4873, %v4882
    %v4893 = vsel %vm2451, %v4890, 0
    %v4896 = vsel %vm2451, %v4891, 0
    %4898 = vmatprep.subr.mxu0 0.0
    %4899 = vmatpush1.msra.mxu0 0.0
    %4900 = vmatprep.subr.mxu0 0.0
    %4901 = vmatpush1.msra.mxu0 0.0
    %4902 = vmatprep.subr.mxu0 0.0
    %4903 = vmatpush1.msra.mxu0 0.0
    %4904 = vmatprep.subr.mxu0 0.0
    %4905 = vmatpush1.msra.mxu0 0.0
    %4906 = vmatprep.subr.mxu0 0.0
    %4907 = vmatpush1.msra.mxu0 0.0
    %4908 = vmatprep.subr.mxu0 0.0
    %4909 = vmatpush1.msra.mxu0 0.0
    %4910 = vmatprep.subr.mxu0 0.0
    %4911 = vmatpush1.msra.mxu0 0.0
    %4912 = vmatprep.subr.mxu0 0.0
    %4913 = vmatpush1.msra.mxu0 0.0
    %4914 = vmatprep.subr.mxu0 0.0
    %4915 = vmatpush1.msra.mxu0 0.0
    %4916 = vmatprep.subr.mxu0 0.0
    %4917 = vmatpush1.msra.mxu0 0.0
    %4918 = vmatprep.subr.mxu0 0.0
    %4919 = vmatpush1.msra.mxu0 0.0
    %4920 = vmatprep.subr.mxu0 0.0
    %4921 = vmatpush1.msra.mxu0 0.0
    %4922 = vmatprep.subr.mxu0 0.0
    %4923 = vmatpush1.msra.mxu0 0.0
    %4924 = vmatprep.subr.mxu0 0.0
    %4925 = vmatpush1.msra.mxu0 0.0
    %4926 = vmatprep.subr.mxu0 %v4896
    %4927 = vmatpush1.msra.mxu0 %v4893
    %4928 = vmatprep.subr.mxu0 %v4889
    %4929 = vmatpush1.msra.mxu0 %v4888
    %4930 = vmatprep.subr.mxu0 0.0
    %4931 = vmatpush2.msra.mxu0 0.0
    %4932 = vmatprep.subr.mxu0 0.0
    %4933 = vmatpush2.msra.mxu0 0.0
    %4934 = vmatprep.subr.mxu0 0.0
    %4935 = vmatpush2.msra.mxu0 0.0
    %4936 = vmatprep.subr.mxu0 0.0
    %4937 = vmatpush2.msra.mxu0 0.0
    %4938 = vmatprep.subr.mxu0 0.0
    %4939 = vmatpush2.msra.mxu0 0.0
    %4940 = vmatprep.subr.mxu0 0.0
    %4941 = vmatpush2.msra.mxu0 0.0
    %4942 = vmatprep.subr.mxu0 0.0
    %4943 = vmatpush2.msra.mxu0 0.0
    %4944 = vmatprep.subr.mxu0 0.0
    %4945 = vmatpush2.msra.mxu0 0.0
    %4946 = vmatprep.subr.mxu0 0.0
    %4947 = vmatpush2.msra.mxu0 0.0
    %4948 = vmatprep.subr.mxu0 0.0
    %4949 = vmatpush2.msra.mxu0 0.0
    %4950 = vmatprep.subr.mxu0 0.0
    %4951 = vmatpush2.msra.mxu0 0.0
    %4952 = vmatprep.subr.mxu0 0.0
    %4953 = vmatpush2.msra.mxu0 0.0
    %4954 = vmatprep.subr.mxu0 0.0
    %4955 = vmatpush2.msra.mxu0 0.0
    %4956 = vmatprep.subr.mxu0 0.0
    %4957 = vmatpush2.msra.mxu0 0.0
    %4958 = vmatprep.subr.mxu0 0.0
    %4959 = vmatpush2.msra.mxu0 0.0
    %4960 = vmatprep.subr.mxu0 0.0
    %4961 = vmatpush2.msra.mxu0 0.0
    %4962 = vmatprep.mubr.f32.mxu0 0.0
    %4963 = vmatmul.mubr.f32.gmra.mxu0 %v2449
    %v4964 = vpop.f32.mrf.mxu0
    %v4965 = vadd.f32 0.0, %v4964
    %v4966 = vpop.f32.mrf.mxu0
    %v4967 = vadd.f32 0.0, %v4966
    %4968 = vdwg.mxu0
    %4971 = vrot.lane.b32.xlu0 %v4965, 112
    %v4972 = vpop.permute.xlu0 %4971
    %4973 = vrot.lane.b32.xlu0 %v4967, 112
    %v4974 = vpop.permute.xlu0 %4973
    %v4975 = vsel %vm2535, %v4972, %v4974
    %v4978 = vmax.f32 %v4965, %v4975
    %v4979 = vmax.f32 %v4967, %v4974
    %v4982 = vcombine.low %v4978, %v4979
    %v4984 = vunpack.c.l.s4 1966171168
    %v4985 = vunpack.c.0.s8 %v4984
    %v4986 = vlaneseq
    %v4987 = vshrl.u32 %v4986, 7
    %v4988 = vsub.s32 %v4985, %v4987
    %v4989 = vrot.slane %v4982, %v4988
    %v4991 = vunpack.c.l.s4 1966171168
    %v4992 = vunpack.c.0.s8 %v4991
    %v4993 = vlaneseq
    %v4994 = vshrl.u32 %v4993, 7
    %v4995 = vsub.s32 %v4992, %v4994
    %v4996 = vrot.slane %v4989, %v4995
    %s4998 = scalar_lea.vmem [#allocation2], 1
    %4999 = vst.msk [vmem:[%s4998] ss:$2 sm:$0x3] %vm2562, %v4996
    %v5000 = vcombine.high %v4989, %v4989
    %v5002 = vunpack.c.l.s4 1966171168
    %v5003 = vunpack.c.0.s8 %v5002
    %v5004 = vlaneseq
    %v5005 = vshrl.u32 %v5004, 7
    %v5006 = vsub.s32 %v5003, %v5005
    %v5007 = vrot.slane %v5000, %v5006
    %s5009 = scalar_lea.vmem [#allocation2], 5
    %5010 = vst.msk [vmem:[%s5009] ss:$2 sm:$0x3] %vm2562, %v5007
    %v5011 = vcombine.high %v4996, %v4996
    %s5013 = scalar_lea.vmem [#allocation2], 9
    %5014 = vst.msk [vmem:[%s5013] ss:$2 sm:$0x3] %vm2562, %v5011
    %v5015 = vcombine.high %v5007, %v5007
    %s5017 = scalar_lea.vmem [#allocation2], 13
    %5018 = vst.msk [vmem:[%s5017] ss:$2 sm:$0x3] %vm2562, %v5015
    %v5019 = vcombine.high %v4978, %v4979
    %v5021 = vunpack.c.l.s4 1966171168
    %v5022 = vunpack.c.0.s8 %v5021
    %v5023 = vlaneseq
    %v5024 = vshrl.u32 %v5023, 7
    %v5025 = vsub.s32 %v5022, %v5024
    %v5026 = vrot.slane %v5019, %v5025
    %v5028 = vunpack.c.l.s4 1966171168
    %v5029 = vunpack.c.0.s8 %v5028
    %v5030 = vlaneseq
    %v5031 = vshrl.u32 %v5030, 7
    %v5032 = vsub.s32 %v5029, %v5031
    %v5033 = vrot.slane %v5026, %v5032
    %s5035 = scalar_lea.vmem [#allocation2], 17
    %5036 = vst.msk [vmem:[%s5035] ss:$2 sm:$0x3] %vm2562, %v5033
    %v5037 = vld [vmem:[#allocation2] sm:$0xff]
    %v5038 = vld [vmem:[#allocation2 + $0x8] sm:$0xff]
    %v5039 = vld [vmem:[#allocation2 + $0x10] sm:$0xf]
    %v5040 = vld [vmem:[%s2 + $0x6b0] sm:$0xff]
    %v5041 = vld [vmem:[%s2 + $0x6c0] sm:$0xff]
    %v5042 = vld [vmem:[%s2 + $0x6d0] sm:$0xff]
    %v5043 = vld [vmem:[%s2 + $0x6e0] sm:$0xff]
    %v5044 = vld [vmem:[%s2 + $0x6f0] sm:$0xff]
    %v5045 = vld [vmem:[%s2 + $0x700] sm:$0xff]
    %v5046 = vld [vmem:[%s2 + $0x710] sm:$0xff]
    %v5047 = vld [vmem:[%s2 + $0x720] sm:$0xff]
    %v5048 = vld [vmem:[%s2 + $0x730] sm:$0xff]
    %v5049 = vld [vmem:[%s2 + $0x740] sm:$0xff]
    %v5050 = vld [vmem:[%s2 + $0x750] sm:$0xff]
    %v5051 = vld [vmem:[%s2 + $0x760] sm:$0xff]
    %v5052 = vld [vmem:[%s2 + $0x770] sm:$0xff]
    %v5053 = vld [vmem:[%s2 + $0x780] sm:$0xff]
    %v5054 = vld [vmem:[%s2 + $0x790] sm:$0xff]
    %v5055 = vld [vmem:[%s2 + $0x7a0] sm:$0xff]
    %v5056 = vld [vmem:[%s2 + $0x7b0] sm:$0xff]
    %v5057 = vld [vmem:[%s2 + $0x7c0] sm:$0xff]
    %v5058 = vld [vmem:[%s2 + $0x7d0] sm:$0xff]
    %v5059 = vld [vmem:[%s2 + $0x7e0] sm:$0xff]
    %v5060 = vld [vmem:[%s2 + $0x7f0] sm:$0xff]
    %v5061 = vld [vmem:[%s2 + $0x800] sm:$0xff]
    %v5062 = vld [vmem:[%s2 + $0x810] sm:$0xff]
    %v5063 = vld [vmem:[%s2 + $0x820] sm:$0xff]
    %v5064 = vld [vmem:[%s2 + $0x830] sm:$0xff]
    %v5065 = vld [vmem:[%s2 + $0x840] sm:$0xff]
    %v5066 = vld [vmem:[%s2 + $0x850] sm:$0xff]
    %v5067 = vld [vmem:[%s2 + $0x860] sm:$0xff]
    %v5068 = vld [vmem:[%s2 + $0x870] sm:$0xff]
    %v5069 = vld [vmem:[%s2 + $0x880] sm:$0xff]
    %v5070 = vld [vmem:[%s2 + $0x890] sm:$0xff]
    %v5071 = vld [vmem:[%s2 + $0x8a0] sm:$0xff]
    %v5072 = vld [vmem:[%s2 + $0x8b0] sm:$0xff]
    %v5073 = vld [vmem:[%s2 + $0x8c0] sm:$0xff]
    %v5074 = vld [vmem:[%s2 + $0x8d0] sm:$0xff]
    %v5075 = vld [vmem:[%s2 + $0x8e0] sm:$0xff]
    %v5076 = vld [vmem:[%s2 + $0x8f0] sm:$0xff]
    %v5077 = vld [vmem:[%s2 + $0x900] sm:$0xff]
    %v5078 = vld [vmem:[%s2 + $0x910] sm:$0xff]
    %v5079 = vld [vmem:[%s2 + $0x920] sm:$0xff]
    %v5080 = vld [vmem:[%s2 + $0x930] sm:$0xff]
    %v5081 = vld [vmem:[%s2 + $0x940] sm:$0xff]
    %v5082 = vld [vmem:[%s2 + $0x950] sm:$0xff]
    %v5083 = vld [vmem:[%s2 + $0x960] sm:$0xff]
    %v5084 = vld [vmem:[%s2 + $0x970] sm:$0xff]
    %v5085 = vld [vmem:[%s2 + $0x980] sm:$0xff]
    %v5086 = vld [vmem:[%s2 + $0x990] sm:$0xff]
    %v5087 = vld [vmem:[%s2 + $0x9a0] sm:$0xff]
    %v5088 = vld [vmem:[%s2 + $0x9b0] sm:$0xff]
    %v5089 = vld [vmem:[%s2 + $0x9c0] sm:$0xff]
    %v5090 = vld [vmem:[%s2 + $0x9d0] sm:$0xff]
    %v5091 = vld [vmem:[%s2 + $0x9e0] sm:$0xff]
    %v5092 = vld [vmem:[%s2 + $0x9f0] sm:$0xff]
    %v5093 = vld [vmem:[%s2 + $0xa00] sm:$0xff]
    %v5094 = vld [vmem:[%s2 + $0xa10] sm:$0xff]
    %v5095 = vld [vmem:[%s2 + $0xa20] sm:$0xff]
    %v5096 = vld [vmem:[%s2 + $0xa30] sm:$0xff]
    %v5097 = vld [vmem:[%s2 + $0xa40] sm:$0xff]
    %v5098 = vld [vmem:[%s2 + $0xa50] sm:$0xff]
    %v5099 = vld [vmem:[%s2 + $0xa60] sm:$0xff]
    %v5100 = vld [vmem:[%s2 + $0xa70] sm:$0xff]
    %v5101 = vld [vmem:[%s2 + $0xa80] sm:$0xff]
    %v5102 = vld [vmem:[%s2 + $0xa90] sm:$0xff]
    %v5103 = vld [vmem:[%s2 + $0xaa0] sm:$0xff]
    %v5104 = vld [vmem:[%s2 + $0xab0] sm:$0xff]
    %v5105 = vld [vmem:[%s2 + $0xac0] sm:$0xff]
    %v5106 = vld [vmem:[%s2 + $0xad0] sm:$0xff]
    %v5107 = vld [vmem:[%s2 + $0xae0] sm:$0xff]
    %v5108 = vld [vmem:[%s2 + $0xaf0] sm:$0xff]
    %v5109 = vld [vmem:[%s2 + $0xb00] sm:$0xff]
    %v5110 = vld [vmem:[%s2 + $0xb10] sm:$0xff]
    %v5111 = vld [vmem:[%s2 + $0xb20] sm:$0xff]
    %v5112 = vld [vmem:[%s2 + $0xb30] sm:$0xff]
    %v5113 = vld [vmem:[%s2 + $0xb40] sm:$0xff]
    %v5114 = vld [vmem:[%s2 + $0xb50] sm:$0xff]
    %v5115 = vld [vmem:[%s2 + $0xb60] sm:$0xff]
    %v5116 = vld [vmem:[%s2 + $0xb70] sm:$0xff]
    %v5117 = vld [vmem:[%s2 + $0xb80] sm:$0xff]
    %v5118 = vld [vmem:[%s2 + $0xb90] sm:$0xff]
    %v5119 = vld [vmem:[%s2 + $0xba0] sm:$0xff]
    %v5120 = vld [vmem:[%s2 + $0xbb0] sm:$0xff]
    %v5121 = vld [vmem:[%s2 + $0xbc0] sm:$0xff]
    %v5122 = vld [vmem:[%s2 + $0xbd0] sm:$0xff]
    %v5123 = vld [vmem:[%s2 + $0xbe0] sm:$0xff]
    %v5124 = vld [vmem:[%s2 + $0xbf0] sm:$0xff]
    %v5125 = vld [vmem:[%s2 + $0xc00] sm:$0xff]
    %v5126 = vld [vmem:[%s2 + $0xc10] sm:$0xff]
    %v5127 = vld [vmem:[%s2 + $0xc20] sm:$0xff]
    %v5128 = vld [vmem:[%s2 + $0xc30] sm:$0xff]
    %v5129 = vld [vmem:[%s2 + $0xc40] sm:$0xff]
    %v5130 = vld [vmem:[%s2 + $0xc50] sm:$0xff]
    %v5131 = vld [vmem:[%s2 + $0xc60] sm:$0xff]
    %v5132 = vld [vmem:[%s2 + $0xc70] sm:$0xff]
    %v5133 = vld [vmem:[%s2 + $0xc80] sm:$0xff]
    %v5134 = vld [vmem:[%s2 + $0xc90] sm:$0xff]
    %v5135 = vld [vmem:[%s2 + $0xca0] sm:$0xff]
    %v5136 = vld [vmem:[%s2 + $0xcb0] sm:$0xff]
    %v5137 = vld [vmem:[%s2 + $0xcc0] sm:$0xff]
    %v5138 = vld [vmem:[%s2 + $0xcd0] sm:$0xff]
    %v5139 = vld [vmem:[%s2 + $0xce0] sm:$0xff]
    %v5140 = vld [vmem:[%s2 + $0xcf0] sm:$0xff]
    %v5141 = vld [vmem:[%s2 + $0xd00] sm:$0xff]
    %v5142 = vld [vmem:[%s2 + $0xd10] sm:$0xff]
    %v5143 = vld [vmem:[%s2 + $0xd20] sm:$0xff]
    %v5144 = vld [vmem:[%s2 + $0xd30] sm:$0xff]
    %v5145 = vld [vmem:[%s2 + $0xd40] sm:$0xff]
    %v5146 = vld [vmem:[%s2 + $0xd50] sm:$0xff]
    %v5147 = vld [vmem:[%s2 + $0xd60] sm:$0xff]
    %v5148 = vld [vmem:[%s2 + $0xd70] sm:$0xff]
    %v5149 = vld [vmem:[%s2 + $0xd80] sm:$0xff]
    %v5150 = vld [vmem:[%s2 + $0xd90] sm:$0xff]
    %v5151 = vld [vmem:[%s2 + $0xda0] sm:$0xff]
    %v5152 = vld [vmem:[%s2 + $0xdb0] sm:$0xff]
    %v5153 = vld [vmem:[%s2 + $0xdc0] sm:$0xff]
    %v5154 = vld [vmem:[%s2 + $0xdd0] sm:$0xff]
    %v5155 = vld [vmem:[%s2 + $0xde0] sm:$0xff]
    %v5156 = vld [vmem:[%s2 + $0xdf0] sm:$0xff]
    %v5157 = vld [vmem:[%s2 + $0xe00] sm:$0xff]
    %v5158 = vld [vmem:[%s2 + $0xe10] sm:$0xff]
    %v5159 = vld [vmem:[%s2 + $0xe20] sm:$0xff]
    %v5160 = vld [vmem:[%s2 + $0xe30] sm:$0xff]
    %v5161 = vld [vmem:[%s2 + $0xe40] sm:$0xff]
    %v5162 = vld [vmem:[%s2 + $0xe50] sm:$0xff]
    %v5163 = vld [vmem:[%s2 + $0xe60] sm:$0xff]
    %v5164 = vld [vmem:[%s2 + $0xe70] sm:$0xff]
    %v5165 = vld [vmem:[%s2 + $0xe80] sm:$0xff]
    %v5166 = vld [vmem:[%s2 + $0xe90] sm:$0xff]
    %v5167 = vld [vmem:[%s2 + $0xea0] sm:$0xff]
    %v5168 = vld [vmem:[%s2 + $0xeb0] sm:$0xff]
    %v5169 = vld [vmem:[%s2 + $0xec0] sm:$0xff]
    %v5170 = vld [vmem:[%s2 + $0xed0] sm:$0xff]
    %v5171 = vld [vmem:[%s2 + $0xee0] sm:$0xff]
    %v5172 = vld [vmem:[%s2 + $0xef0] sm:$0xff]
    %v5173 = vld [vmem:[%s2 + $0xf00] sm:$0xff]
    %v5174 = vld [vmem:[%s2 + $0xf10] sm:$0xff]
    %v5175 = vld [vmem:[%s2 + $0xf20] sm:$0xff]
    %v5176 = vld [vmem:[%s2 + $0xf30] sm:$0xff]
    %v5177 = vld [vmem:[%s2 + $0xf40] sm:$0xff]
    %v5178 = vld [vmem:[%s2 + $0xf50] sm:$0xff]
    %v5179 = vld [vmem:[%s2 + $0xf60] sm:$0xff]
    %v5180 = vld [vmem:[%s2 + $0xf70] sm:$0xff]
    %v5181 = vld [vmem:[%s2 + $0xf80] sm:$0xff]
    %v5182 = vld [vmem:[%s2 + $0xf90] sm:$0xff]
    %v5183 = vld [vmem:[%s2 + $0xfa0] sm:$0xff]
    %v5184 = vld [vmem:[%s2 + $0xfb0] sm:$0xff]
    %v5185 = vld [vmem:[%s2 + $0xfc0] sm:$0xff]
    %v5186 = vld [vmem:[%s2 + $0xfd0] sm:$0xff]
    %v5187 = vld [vmem:[%s2 + $0xfe0] sm:$0xff]
    %v5188 = vld [vmem:[%s2 + $0xff0] sm:$0xff]
    %v5189 = vld [vmem:[%s2 + $0x1000] sm:$0xff]
    %v5190 = vld [vmem:[%s2 + $0x1010] sm:$0xff]
    %v5191 = vld [vmem:[%s2 + $0x1020] sm:$0xff]
    %v5192 = vld [vmem:[%s2 + $0x1030] sm:$0xff]
    %v5193 = vld [vmem:[%s2 + $0x1040] sm:$0xff]
    %v5194 = vld [vmem:[%s2 + $0x1050] sm:$0xff]
    %v5195 = vld [vmem:[%s2 + $0x1060] sm:$0xff]
    %v5196 = vld [vmem:[%s2 + $0x1070] sm:$0xff]
    %v5197 = vld [vmem:[%s2 + $0x1080] sm:$0xff]
    %v5198 = vld [vmem:[%s2 + $0x1090] sm:$0xff]
    %v5199 = vld [vmem:[%s2 + $0x10a0] sm:$0xff]
    %v5200 = vld [vmem:[%s2 + $0x10b0] ss:$0 sm:$0xff]
    %v5204 = vcombine.high %v5037, %v5037
    %v5206 = vunpack.c.l.s4 1983009808
    %v5207 = vunpack.c.0.s8 %v5206
    %v5208 = vlaneseq
    %v5209 = vshrl.u32 %v5208, 7
    %v5210 = vsub.s32 %v5207, %v5209
    %v5211 = vrot.slane %v5037, %v5210
    %v5213 = vunpack.c.l.s4 1983009808
    %v5214 = vunpack.c.0.s8 %v5213
    %v5215 = vlaneseq
    %v5216 = vshrl.u32 %v5215, 7
    %v5217 = vsub.s32 %v5214, %v5216
    %v5218 = vrot.slane %v5204, %v5217
    %v5219 = vcombine.high %v5211, %v5211
    %v5220 = vcombine.high %v5218, %v5218
    %v5221 = vcombine.high %v5038, %v5038
    %v5223 = vunpack.c.l.s4 1983009808
    %v5224 = vunpack.c.0.s8 %v5223
    %v5225 = vlaneseq
    %v5226 = vshrl.u32 %v5225, 7
    %v5227 = vsub.s32 %v5224, %v5226
    %v5228 = vrot.slane %v5038, %v5227
    %v5230 = vunpack.c.l.s4 1983009808
    %v5231 = vunpack.c.0.s8 %v5230
    %v5232 = vlaneseq
    %v5233 = vshrl.u32 %v5232, 7
    %v5234 = vsub.s32 %v5231, %v5233
    %v5235 = vrot.slane %v5221, %v5234
    %v5236 = vcombine.high %v5228, %v5228
    %v5237 = vcombine.high %v5235, %v5235
    %v5239 = vunpack.c.l.s4 1983009808
    %v5240 = vunpack.c.0.s8 %v5239
    %v5241 = vlaneseq
    %v5242 = vshrl.u32 %v5241, 7
    %v5243 = vsub.s32 %v5240, %v5242
    %v5244 = vrot.slane %v5039, %v5243
    %v5245 = vcombine.high %v5244, %v5244
    %5256 = vmatprep.subr.mxu0 0.0
    %5257 = vmatpush1.msra.mxu0 %v5055
    %5258 = vmatprep.subr.mxu0 0.0
    %5259 = vmatpush1.msra.mxu0 %v5054
    %5260 = vmatprep.subr.mxu0 0.0
    %5261 = vmatpush1.msra.mxu0 %v5053
    %5262 = vmatprep.subr.mxu0 0.0
    %5263 = vmatpush1.msra.mxu0 %v5052
    %5264 = vmatprep.subr.mxu0 0.0
    %5265 = vmatpush1.msra.mxu0 %v5051
    %5266 = vmatprep.subr.mxu0 0.0
    %5267 = vmatpush1.msra.mxu0 %v5050
    %5268 = vmatprep.subr.mxu0 0.0
    %5269 = vmatpush1.msra.mxu0 %v5049
    %5270 = vmatprep.subr.mxu0 0.0
    %5271 = vmatpush1.msra.mxu0 %v5048
    %5272 = vmatprep.subr.mxu0 0.0
    %5273 = vmatpush1.msra.mxu0 %v5047
    %5274 = vmatprep.subr.mxu0 0.0
    %5275 = vmatpush1.msra.mxu0 %v5046
    %5276 = vmatprep.subr.mxu0 0.0
    %5277 = vmatpush1.msra.mxu0 %v5045
    %5278 = vmatprep.subr.mxu0 0.0
    %5279 = vmatpush1.msra.mxu0 %v5044
    %5280 = vmatprep.subr.mxu0 0.0
    %5281 = vmatpush1.msra.mxu0 %v5043
    %5282 = vmatprep.subr.mxu0 0.0
    %5283 = vmatpush1.msra.mxu0 %v5042
    %5284 = vmatprep.subr.mxu0 0.0
    %5285 = vmatpush1.msra.mxu0 %v5041
    %5286 = vmatprep.subr.mxu0 0.0
    %5287 = vmatpush1.msra.mxu0 %v5040
    %5288 = vmatprep.subr.mxu0 0.0
    %5289 = vmatpush2.msra.mxu0 %v5071
    %5290 = vmatprep.subr.mxu0 0.0
    %5291 = vmatpush2.msra.mxu0 %v5070
    %5292 = vmatprep.subr.mxu0 0.0
    %5293 = vmatpush2.msra.mxu0 %v5069
    %5294 = vmatprep.subr.mxu0 0.0
    %5295 = vmatpush2.msra.mxu0 %v5068
    %5296 = vmatprep.subr.mxu0 0.0
    %5297 = vmatpush2.msra.mxu0 %v5067
    %5298 = vmatprep.subr.mxu0 0.0
    %5299 = vmatpush2.msra.mxu0 %v5066
    %5300 = vmatprep.subr.mxu0 0.0
    %5301 = vmatpush2.msra.mxu0 %v5065
    %5302 = vmatprep.subr.mxu0 0.0
    %5303 = vmatpush2.msra.mxu0 %v5064
    %5304 = vmatprep.subr.mxu0 0.0
    %5305 = vmatpush2.msra.mxu0 %v5063
    %5306 = vmatprep.subr.mxu0 0.0
    %5307 = vmatpush2.msra.mxu0 %v5062
    %5308 = vmatprep.subr.mxu0 0.0
    %5309 = vmatpush2.msra.mxu0 %v5061
    %5310 = vmatprep.subr.mxu0 0.0
    %5311 = vmatpush2.msra.mxu0 %v5060
    %5312 = vmatprep.subr.mxu0 0.0
    %5313 = vmatpush2.msra.mxu0 %v5059
    %5314 = vmatprep.subr.mxu0 0.0
    %5315 = vmatpush2.msra.mxu0 %v5058
    %5316 = vmatprep.subr.mxu0 0.0
    %5317 = vmatpush2.msra.mxu0 %v5057
    %5318 = vmatprep.subr.mxu0 0.0
    %5319 = vmatpush2.msra.mxu0 %v5056
    %5320 = vmatprep.mubr.f32.mxu0 %v5219
    %5321 = vmatmul.mubr.f32.gmra.mxu0 %v5211
    %v5322 = vpop.f32.mrf.mxu0
    %v5323 = vadd.f32 %v5200, %v5322
    %v5324 = vpop.f32.mrf.mxu0
    %5325 = vdwg.mxu0
    %5326 = vmatprep.subr.mxu0 0.0
    %5327 = vmatpush1.msra.mxu0 %v5087
    %5328 = vmatprep.subr.mxu0 0.0
    %5329 = vmatpush1.msra.mxu0 %v5086
    %5330 = vmatprep.subr.mxu0 0.0
    %5331 = vmatpush1.msra.mxu0 %v5085
    %5332 = vmatprep.subr.mxu0 0.0
    %5333 = vmatpush1.msra.mxu0 %v5084
    %5334 = vmatprep.subr.mxu0 0.0
    %5335 = vmatpush1.msra.mxu0 %v5083
    %5336 = vmatprep.subr.mxu0 0.0
    %5337 = vmatpush1.msra.mxu0 %v5082
    %5338 = vmatprep.subr.mxu0 0.0
    %5339 = vmatpush1.msra.mxu0 %v5081
    %5340 = vmatprep.subr.mxu0 0.0
    %5341 = vmatpush1.msra.mxu0 %v5080
    %5342 = vmatprep.subr.mxu0 0.0
    %5343 = vmatpush1.msra.mxu0 %v5079
    %5344 = vmatprep.subr.mxu0 0.0
    %5345 = vmatpush1.msra.mxu0 %v5078
    %5346 = vmatprep.subr.mxu0 0.0
    %5347 = vmatpush1.msra.mxu0 %v5077
    %5348 = vmatprep.subr.mxu0 0.0
    %5349 = vmatpush1.msra.mxu0 %v5076
    %5350 = vmatprep.subr.mxu0 0.0
    %5351 = vmatpush1.msra.mxu0 %v5075
    %5352 = vmatprep.subr.mxu0 0.0
    %5353 = vmatpush1.msra.mxu0 %v5074
    %5354 = vmatprep.subr.mxu0 0.0
    %5355 = vmatpush1.msra.mxu0 %v5073
    %5356 = vmatprep.subr.mxu0 0.0
    %5357 = vmatpush1.msra.mxu0 %v5072
    %5358 = vmatprep.subr.mxu0 0.0
    %5359 = vmatpush2.msra.mxu0 %v5103
    %5360 = vmatprep.subr.mxu0 0.0
    %5361 = vmatpush2.msra.mxu0 %v5102
    %5362 = vmatprep.subr.mxu0 0.0
    %5363 = vmatpush2.msra.mxu0 %v5101
    %5364 = vmatprep.subr.mxu0 0.0
    %5365 = vmatpush2.msra.mxu0 %v5100
    %5366 = vmatprep.subr.mxu0 0.0
    %5367 = vmatpush2.msra.mxu0 %v5099
    %5368 = vmatprep.subr.mxu0 0.0
    %5369 = vmatpush2.msra.mxu0 %v5098
    %5370 = vmatprep.subr.mxu0 0.0
    %5371 = vmatpush2.msra.mxu0 %v5097
    %5372 = vmatprep.subr.mxu0 0.0
    %5373 = vmatpush2.msra.mxu0 %v5096
    %5374 = vmatprep.subr.mxu0 0.0
    %5375 = vmatpush2.msra.mxu0 %v5095
    %5376 = vmatprep.subr.mxu0 0.0
    %5377 = vmatpush2.msra.mxu0 %v5094
    %5378 = vmatprep.subr.mxu0 0.0
    %5379 = vmatpush2.msra.mxu0 %v5093
    %5380 = vmatprep.subr.mxu0 0.0
    %5381 = vmatpush2.msra.mxu0 %v5092
    %5382 = vmatprep.subr.mxu0 0.0
    %5383 = vmatpush2.msra.mxu0 %v5091
    %5384 = vmatprep.subr.mxu0 0.0
    %5385 = vmatpush2.msra.mxu0 %v5090
    %5386 = vmatprep.subr.mxu0 0.0
    %5387 = vmatpush2.msra.mxu0 %v5089
    %5388 = vmatprep.subr.mxu0 0.0
    %5389 = vmatpush2.msra.mxu0 %v5088
    %5390 = vmatprep.mubr.f32.mxu0 %v5220
    %5391 = vmatmul.mubr.f32.gmra.mxu0 %v5218
    %v5392 = vpop.f32.mrf.mxu0
    %v5393 = vadd.f32 %v5323, %v5392
    %v5394 = vpop.f32.mrf.mxu0
    %5395 = vdwg.mxu0
    %5396 = vmatprep.subr.mxu0 0.0
    %5397 = vmatpush1.msra.mxu0 %v5119
    %5398 = vmatprep.subr.mxu0 0.0
    %5399 = vmatpush1.msra.mxu0 %v5118
    %5400 = vmatprep.subr.mxu0 0.0
    %5401 = vmatpush1.msra.mxu0 %v5117
    %5402 = vmatprep.subr.mxu0 0.0
    %5403 = vmatpush1.msra.mxu0 %v5116
    %5404 = vmatprep.subr.mxu0 0.0
    %5405 = vmatpush1.msra.mxu0 %v5115
    %5406 = vmatprep.subr.mxu0 0.0
    %5407 = vmatpush1.msra.mxu0 %v5114
    %5408 = vmatprep.subr.mxu0 0.0
    %5409 = vmatpush1.msra.mxu0 %v5113
    %5410 = vmatprep.subr.mxu0 0.0
    %5411 = vmatpush1.msra.mxu0 %v5112
    %5412 = vmatprep.subr.mxu0 0.0
    %5413 = vmatpush1.msra.mxu0 %v5111
    %5414 = vmatprep.subr.mxu0 0.0
    %5415 = vmatpush1.msra.mxu0 %v5110
    %5416 = vmatprep.subr.mxu0 0.0
    %5417 = vmatpush1.msra.mxu0 %v5109
    %5418 = vmatprep.subr.mxu0 0.0
    %5419 = vmatpush1.msra.mxu0 %v5108
    %5420 = vmatprep.subr.mxu0 0.0
    %5421 = vmatpush1.msra.mxu0 %v5107
    %5422 = vmatprep.subr.mxu0 0.0
    %5423 = vmatpush1.msra.mxu0 %v5106
    %5424 = vmatprep.subr.mxu0 0.0
    %5425 = vmatpush1.msra.mxu0 %v5105
    %5426 = vmatprep.subr.mxu0 0.0
    %5427 = vmatpush1.msra.mxu0 %v5104
    %5428 = vmatprep.subr.mxu0 0.0
    %5429 = vmatpush2.msra.mxu0 %v5135
    %5430 = vmatprep.subr.mxu0 0.0
    %5431 = vmatpush2.msra.mxu0 %v5134
    %5432 = vmatprep.subr.mxu0 0.0
    %5433 = vmatpush2.msra.mxu0 %v5133
    %5434 = vmatprep.subr.mxu0 0.0
    %5435 = vmatpush2.msra.mxu0 %v5132
    %5436 = vmatprep.subr.mxu0 0.0
    %5437 = vmatpush2.msra.mxu0 %v5131
    %5438 = vmatprep.subr.mxu0 0.0
    %5439 = vmatpush2.msra.mxu0 %v5130
    %5440 = vmatprep.subr.mxu0 0.0
    %5441 = vmatpush2.msra.mxu0 %v5129
    %5442 = vmatprep.subr.mxu0 0.0
    %5443 = vmatpush2.msra.mxu0 %v5128
    %5444 = vmatprep.subr.mxu0 0.0
    %5445 = vmatpush2.msra.mxu0 %v5127
    %5446 = vmatprep.subr.mxu0 0.0
    %5447 = vmatpush2.msra.mxu0 %v5126
    %5448 = vmatprep.subr.mxu0 0.0
    %5449 = vmatpush2.msra.mxu0 %v5125
    %5450 = vmatprep.subr.mxu0 0.0
    %5451 = vmatpush2.msra.mxu0 %v5124
    %5452 = vmatprep.subr.mxu0 0.0
    %5453 = vmatpush2.msra.mxu0 %v5123
    %5454 = vmatprep.subr.mxu0 0.0
    %5455 = vmatpush2.msra.mxu0 %v5122
    %5456 = vmatprep.subr.mxu0 0.0
    %5457 = vmatpush2.msra.mxu0 %v5121
    %5458 = vmatprep.subr.mxu0 0.0
    %5459 = vmatpush2.msra.mxu0 %v5120
    %5460 = vmatprep.mubr.f32.mxu0 %v5236
    %5461 = vmatmul.mubr.f32.gmra.mxu0 %v5228
    %v5462 = vpop.f32.mrf.mxu0
    %v5463 = vadd.f32 %v5393, %v5462
    %v5464 = vpop.f32.mrf.mxu0
    %5465 = vdwg.mxu0
    %5466 = vmatprep.subr.mxu0 0.0
    %5467 = vmatpush1.msra.mxu0 %v5151
    %5468 = vmatprep.subr.mxu0 0.0
    %5469 = vmatpush1.msra.mxu0 %v5150
    %5470 = vmatprep.subr.mxu0 0.0
    %5471 = vmatpush1.msra.mxu0 %v5149
    %5472 = vmatprep.subr.mxu0 0.0
    %5473 = vmatpush1.msra.mxu0 %v5148
    %5474 = vmatprep.subr.mxu0 0.0
    %5475 = vmatpush1.msra.mxu0 %v5147
    %5476 = vmatprep.subr.mxu0 0.0
    %5477 = vmatpush1.msra.mxu0 %v5146
    %5478 = vmatprep.subr.mxu0 0.0
    %5479 = vmatpush1.msra.mxu0 %v5145
    %5480 = vmatprep.subr.mxu0 0.0
    %5481 = vmatpush1.msra.mxu0 %v5144
    %5482 = vmatprep.subr.mxu0 0.0
    %5483 = vmatpush1.msra.mxu0 %v5143
    %5484 = vmatprep.subr.mxu0 0.0
    %5485 = vmatpush1.msra.mxu0 %v5142
    %5486 = vmatprep.subr.mxu0 0.0
    %5487 = vmatpush1.msra.mxu0 %v5141
    %5488 = vmatprep.subr.mxu0 0.0
    %5489 = vmatpush1.msra.mxu0 %v5140
    %5490 = vmatprep.subr.mxu0 0.0
    %5491 = vmatpush1.msra.mxu0 %v5139
    %5492 = vmatprep.subr.mxu0 0.0
    %5493 = vmatpush1.msra.mxu0 %v5138
    %5494 = vmatprep.subr.mxu0 0.0
    %5495 = vmatpush1.msra.mxu0 %v5137
    %5496 = vmatprep.subr.mxu0 0.0
    %5497 = vmatpush1.msra.mxu0 %v5136
    %5498 = vmatprep.subr.mxu0 0.0
    %5499 = vmatpush2.msra.mxu0 %v5167
    %5500 = vmatprep.subr.mxu0 0.0
    %5501 = vmatpush2.msra.mxu0 %v5166
    %5502 = vmatprep.subr.mxu0 0.0
    %5503 = vmatpush2.msra.mxu0 %v5165
    %5504 = vmatprep.subr.mxu0 0.0
    %5505 = vmatpush2.msra.mxu0 %v5164
    %5506 = vmatprep.subr.mxu0 0.0
    %5507 = vmatpush2.msra.mxu0 %v5163
    %5508 = vmatprep.subr.mxu0 0.0
    %5509 = vmatpush2.msra.mxu0 %v5162
    %5510 = vmatprep.subr.mxu0 0.0
    %5511 = vmatpush2.msra.mxu0 %v5161
    %5512 = vmatprep.subr.mxu0 0.0
    %5513 = vmatpush2.msra.mxu0 %v5160
    %5514 = vmatprep.subr.mxu0 0.0
    %5515 = vmatpush2.msra.mxu0 %v5159
    %5516 = vmatprep.subr.mxu0 0.0
    %5517 = vmatpush2.msra.mxu0 %v5158
    %5518 = vmatprep.subr.mxu0 0.0
    %5519 = vmatpush2.msra.mxu0 %v5157
    %5520 = vmatprep.subr.mxu0 0.0
    %5521 = vmatpush2.msra.mxu0 %v5156
    %5522 = vmatprep.subr.mxu0 0.0
    %5523 = vmatpush2.msra.mxu0 %v5155
    %5524 = vmatprep.subr.mxu0 0.0
    %5525 = vmatpush2.msra.mxu0 %v5154
    %5526 = vmatprep.subr.mxu0 0.0
    %5527 = vmatpush2.msra.mxu0 %v5153
    %5528 = vmatprep.subr.mxu0 0.0
    %5529 = vmatpush2.msra.mxu0 %v5152
    %5530 = vmatprep.mubr.f32.mxu0 %v5237
    %5531 = vmatmul.mubr.f32.gmra.mxu0 %v5235
    %v5532 = vpop.f32.mrf.mxu0
    %v5533 = vadd.f32 %v5463, %v5532
    %v5534 = vpop.f32.mrf.mxu0
    %5535 = vdwg.mxu0
    %5536 = vmatprep.subr.mxu0 0.0
    %5537 = vmatpush1.msra.mxu0 %v5183
    %5538 = vmatprep.subr.mxu0 0.0
    %5539 = vmatpush1.msra.mxu0 %v5182
    %5540 = vmatprep.subr.mxu0 0.0
    %5541 = vmatpush1.msra.mxu0 %v5181
    %5542 = vmatprep.subr.mxu0 0.0
    %5543 = vmatpush1.msra.mxu0 %v5180
    %5544 = vmatprep.subr.mxu0 0.0
    %5545 = vmatpush1.msra.mxu0 %v5179
    %5546 = vmatprep.subr.mxu0 0.0
    %5547 = vmatpush1.msra.mxu0 %v5178
    %5548 = vmatprep.subr.mxu0 0.0
    %5549 = vmatpush1.msra.mxu0 %v5177
    %5550 = vmatprep.subr.mxu0 0.0
    %5551 = vmatpush1.msra.mxu0 %v5176
    %5552 = vmatprep.subr.mxu0 0.0
    %5553 = vmatpush1.msra.mxu0 %v5175
    %5554 = vmatprep.subr.mxu0 0.0
    %5555 = vmatpush1.msra.mxu0 %v5174
    %5556 = vmatprep.subr.mxu0 0.0
    %5557 = vmatpush1.msra.mxu0 %v5173
    %5558 = vmatprep.subr.mxu0 0.0
    %5559 = vmatpush1.msra.mxu0 %v5172
    %5560 = vmatprep.subr.mxu0 0.0
    %5561 = vmatpush1.msra.mxu0 %v5171
    %5562 = vmatprep.subr.mxu0 0.0
    %5563 = vmatpush1.msra.mxu0 %v5170
    %5564 = vmatprep.subr.mxu0 0.0
    %5565 = vmatpush1.msra.mxu0 %v5169
    %5566 = vmatprep.subr.mxu0 0.0
    %5567 = vmatpush1.msra.mxu0 %v5168
    %5568 = vmatprep.subr.mxu0 0.0
    %5569 = vmatpush2.msra.mxu0 %v5199
    %5570 = vmatprep.subr.mxu0 0.0
    %5571 = vmatpush2.msra.mxu0 %v5198
    %5572 = vmatprep.subr.mxu0 0.0
    %5573 = vmatpush2.msra.mxu0 %v5197
    %5574 = vmatprep.subr.mxu0 0.0
    %5575 = vmatpush2.msra.mxu0 %v5196
    %5576 = vmatprep.subr.mxu0 0.0
    %5577 = vmatpush2.msra.mxu0 %v5195
    %5578 = vmatprep.subr.mxu0 0.0
    %5579 = vmatpush2.msra.mxu0 %v5194
    %5580 = vmatprep.subr.mxu0 0.0
    %5581 = vmatpush2.msra.mxu0 %v5193
    %5582 = vmatprep.subr.mxu0 0.0
    %5583 = vmatpush2.msra.mxu0 %v5192
    %5584 = vmatprep.subr.mxu0 0.0
    %5585 = vmatpush2.msra.mxu0 %v5191
    %5586 = vmatprep.subr.mxu0 0.0
    %5587 = vmatpush2.msra.mxu0 %v5190
    %5588 = vmatprep.subr.mxu0 0.0
    %5589 = vmatpush2.msra.mxu0 %v5189
    %5590 = vmatprep.subr.mxu0 0.0
    %5591 = vmatpush2.msra.mxu0 %v5188
    %5592 = vmatprep.subr.mxu0 0.0
    %5593 = vmatpush2.msra.mxu0 %v5187
    %5594 = vmatprep.subr.mxu0 0.0
    %5595 = vmatpush2.msra.mxu0 %v5186
    %5596 = vmatprep.subr.mxu0 0.0
    %5597 = vmatpush2.msra.mxu0 %v5185
    %5598 = vmatprep.subr.mxu0 0.0
    %5599 = vmatpush2.msra.mxu0 %v5184
    %5600 = vmatprep.mubr.f32.mxu0 %v5245
    %5601 = vmatmul.mubr.f32.gmra.mxu0 %v5244
    %v5602 = vpop.f32.mrf.mxu0
    %v5603 = vadd.f32 %v5533, %v5602
    %v5604 = vpop.f32.mrf.mxu0
    %5605 = vdwg.mxu0
    %v5606 = vmax.f32 %v5603, 0.0
    %v5607 = vld [vmem:[%s2 + $0x10c0] sm:$0xff]
    %v5608 = vld [vmem:[%s2 + $0x10d0] sm:$0xff]
    %v5609 = vld [vmem:[%s2 + $0x10e0] sm:$0xff]
    %v5610 = vld [vmem:[%s2 + $0x10f0] sm:$0xff]
    %v5611 = vld [vmem:[%s2 + $0x1100] sm:$0xff]
    %v5612 = vld [vmem:[%s2 + $0x1110] sm:$0xff]
    %v5613 = vld [vmem:[%s2 + $0x1120] sm:$0xff]
    %v5614 = vld [vmem:[%s2 + $0x1130] sm:$0xff]
    %v5615 = vld [vmem:[%s2 + $0x1140] sm:$0xff]
    %v5616 = vld [vmem:[%s2 + $0x1150] sm:$0xff]
    %v5617 = vld [vmem:[%s2 + $0x1160] sm:$0xff]
    %v5618 = vld [vmem:[%s2 + $0x1170] sm:$0xff]
    %v5619 = vld [vmem:[%s2 + $0x1180] sm:$0xff]
    %v5620 = vld [vmem:[%s2 + $0x1190] sm:$0xff]
    %v5621 = vld [vmem:[%s2 + $0x11a0] sm:$0xff]
    %v5622 = vld [vmem:[%s2 + $0x11b0] ss:$0 sm:$0xff]
    %vm5623 = vcmask 982016
    %v5625 = vsel %vm5623, %v5606, 0
    %5627 = vmatprep.subr.mxu0 0.0
    %5628 = vmatpush1.msra.mxu0 0.0
    %5629 = vmatprep.subr.mxu0 0.0
    %5630 = vmatpush1.msra.mxu0 %v5621
    %5631 = vmatprep.subr.mxu0 0.0
    %5632 = vmatpush1.msra.mxu0 %v5620
    %5633 = vmatprep.subr.mxu0 0.0
    %5634 = vmatpush1.msra.mxu0 %v5619
    %5635 = vmatprep.subr.mxu0 0.0
    %5636 = vmatpush1.msra.mxu0 %v5618
    %5637 = vmatprep.subr.mxu0 0.0
    %5638 = vmatpush1.msra.mxu0 %v5617
    %5639 = vmatprep.subr.mxu0 0.0
    %5640 = vmatpush1.msra.mxu0 %v5616
    %5641 = vmatprep.subr.mxu0 0.0
    %5642 = vmatpush1.msra.mxu0 %v5615
    %5643 = vmatprep.subr.mxu0 0.0
    %5644 = vmatpush1.msra.mxu0 %v5614
    %5645 = vmatprep.subr.mxu0 0.0
    %5646 = vmatpush1.msra.mxu0 %v5613
    %5647 = vmatprep.subr.mxu0 0.0
    %5648 = vmatpush1.msra.mxu0 %v5612
    %5649 = vmatprep.subr.mxu0 0.0
    %5650 = vmatpush1.msra.mxu0 %v5611
    %5651 = vmatprep.subr.mxu0 0.0
    %5652 = vmatpush1.msra.mxu0 %v5610
    %5653 = vmatprep.subr.mxu0 0.0
    %5654 = vmatpush1.msra.mxu0 %v5609
    %5655 = vmatprep.subr.mxu0 0.0
    %5656 = vmatpush1.msra.mxu0 %v5608
    %5657 = vmatprep.subr.mxu0 0.0
    %5658 = vmatpush1.msra.mxu0 %v5607
    %5659 = vmatprep.subr.mxu0 0.0
    %5660 = vmatpush2.msra.mxu0 0.0
    %5661 = vmatprep.subr.mxu0 0.0
    %5662 = vmatpush2.msra.mxu0 0.0
    %5663 = vmatprep.subr.mxu0 0.0
    %5664 = vmatpush2.msra.mxu0 0.0
    %5665 = vmatprep.subr.mxu0 0.0
    %5666 = vmatpush2.msra.mxu0 0.0
    %5667 = vmatprep.subr.mxu0 0.0
    %5668 = vmatpush2.msra.mxu0 0.0
    %5669 = vmatprep.subr.mxu0 0.0
    %5670 = vmatpush2.msra.mxu0 0.0
    %5671 = vmatprep.subr.mxu0 0.0
    %5672 = vmatpush2.msra.mxu0 0.0
    %5673 = vmatprep.subr.mxu0 0.0
    %5674 = vmatpush2.msra.mxu0 0.0
    %5675 = vmatprep.subr.mxu0 0.0
    %5676 = vmatpush2.msra.mxu0 0.0
    %5677 = vmatprep.subr.mxu0 0.0
    %5678 = vmatpush2.msra.mxu0 0.0
    %5679 = vmatprep.subr.mxu0 0.0
    %5680 = vmatpush2.msra.mxu0 0.0
    %5681 = vmatprep.subr.mxu0 0.0
    %5682 = vmatpush2.msra.mxu0 0.0
    %5683 = vmatprep.subr.mxu0 0.0
    %5684 = vmatpush2.msra.mxu0 0.0
    %5685 = vmatprep.subr.mxu0 0.0
    %5686 = vmatpush2.msra.mxu0 0.0
    %5687 = vmatprep.subr.mxu0 0.0
    %5688 = vmatpush2.msra.mxu0 0.0
    %5689 = vmatprep.subr.mxu0 0.0
    %5690 = vmatpush2.msra.mxu0 0.0
    %5691 = vmatprep.mubr.f32.mxu0 0.0
    %5692 = vmatmul.mubr.f32.gmra.mxu0 %v5625
    %v5693 = vpop.f32.mrf.mxu0
    %v5694 = vadd.f32 %v5622, %v5693
    %v5695 = vpop.f32.mrf.mxu0
    %5696 = vdwg.mxu0
    %v5697 = vmax.f32 %v5694, 0.0
    %v5698 = vld [vmem:[%s2 + $0x11c0] sm:$0xff]
    %v5699 = vld [vmem:[%s2 + $0x11d0] sm:$0xff]
    %v5700 = vld [vmem:[%s2 + $0x11e0] sm:$0xff]
    %v5701 = vld [vmem:[%s2 + $0x11f0] sm:$0xff]
    %v5702 = vld [vmem:[%s2 + $0x1200] sm:$0xff]
    %v5703 = vld [vmem:[%s2 + $0x1210] sm:$0xff]
    %v5704 = vld [vmem:[%s2 + $0x1220] sm:$0xff]
    %v5705 = vld [vmem:[%s2 + $0x1230] sm:$0xff]
    %v5706 = vld [vmem:[%s2 + $0x1240] sm:$0xff]
    %v5707 = vld [vmem:[%s2 + $0x1250] sm:$0xff]
    %v5708 = vld [vmem:[%s2 + $0x1260] sm:$0xf]
    %v5709 = vld [vmem:[%s2 + $0x1270] ss:$0 sm:$0xff]
    %vm5710 = vcmask 687104
    %v5712 = vsel %vm5710, %v5697, 0
    %v5715 = vsel %vm1594, %v5708, 0
    %5717 = vmatprep.subr.mxu0 0.0
    %5718 = vmatpush1.msra.mxu0 0.0
    %5719 = vmatprep.subr.mxu0 0.0
    %5720 = vmatpush1.msra.mxu0 0.0
    %5721 = vmatprep.subr.mxu0 0.0
    %5722 = vmatpush1.msra.mxu0 0.0
    %5723 = vmatprep.subr.mxu0 0.0
    %5724 = vmatpush1.msra.mxu0 0.0
    %5725 = vmatprep.subr.mxu0 0.0
    %5726 = vmatpush1.msra.mxu0 0.0
    %5727 = vmatprep.subr.mxu0 0.0
    %5728 = vmatpush1.msra.mxu0 %v5715
    %5729 = vmatprep.subr.mxu0 0.0
    %5730 = vmatpush1.msra.mxu0 %v5707
    %5731 = vmatprep.subr.mxu0 0.0
    %5732 = vmatpush1.msra.mxu0 %v5706
    %5733 = vmatprep.subr.mxu0 0.0
    %5734 = vmatpush1.msra.mxu0 %v5705
    %5735 = vmatprep.subr.mxu0 0.0
    %5736 = vmatpush1.msra.mxu0 %v5704
    %5737 = vmatprep.subr.mxu0 0.0
    %5738 = vmatpush1.msra.mxu0 %v5703
    %5739 = vmatprep.subr.mxu0 0.0
    %5740 = vmatpush1.msra.mxu0 %v5702
    %5741 = vmatprep.subr.mxu0 0.0
    %5742 = vmatpush1.msra.mxu0 %v5701
    %5743 = vmatprep.subr.mxu0 0.0
    %5744 = vmatpush1.msra.mxu0 %v5700
    %5745 = vmatprep.subr.mxu0 0.0
    %5746 = vmatpush1.msra.mxu0 %v5699
    %5747 = vmatprep.subr.mxu0 0.0
    %5748 = vmatpush1.msra.mxu0 %v5698
    %5749 = vmatprep.subr.mxu0 0.0
    %5750 = vmatpush2.msra.mxu0 0.0
    %5751 = vmatprep.subr.mxu0 0.0
    %5752 = vmatpush2.msra.mxu0 0.0
    %5753 = vmatprep.subr.mxu0 0.0
    %5754 = vmatpush2.msra.mxu0 0.0
    %5755 = vmatprep.subr.mxu0 0.0
    %5756 = vmatpush2.msra.mxu0 0.0
    %5757 = vmatprep.subr.mxu0 0.0
    %5758 = vmatpush2.msra.mxu0 0.0
    %5759 = vmatprep.subr.mxu0 0.0
    %5760 = vmatpush2.msra.mxu0 0.0
    %5761 = vmatprep.subr.mxu0 0.0
    %5762 = vmatpush2.msra.mxu0 0.0
    %5763 = vmatprep.subr.mxu0 0.0
    %5764 = vmatpush2.msra.mxu0 0.0
    %5765 = vmatprep.subr.mxu0 0.0
    %5766 = vmatpush2.msra.mxu0 0.0
    %5767 = vmatprep.subr.mxu0 0.0
    %5768 = vmatpush2.msra.mxu0 0.0
    %5769 = vmatprep.subr.mxu0 0.0
    %5770 = vmatpush2.msra.mxu0 0.0
    %5771 = vmatprep.subr.mxu0 0.0
    %5772 = vmatpush2.msra.mxu0 0.0
    %5773 = vmatprep.subr.mxu0 0.0
    %5774 = vmatpush2.msra.mxu0 0.0
    %5775 = vmatprep.subr.mxu0 0.0
    %5776 = vmatpush2.msra.mxu0 0.0
    %5777 = vmatprep.subr.mxu0 0.0
    %5778 = vmatpush2.msra.mxu0 0.0
    %5779 = vmatprep.subr.mxu0 0.0
    %5780 = vmatpush2.msra.mxu0 0.0
    %5781 = vmatprep.mubr.f32.mxu0 0.0
    %5782 = vmatmul.mubr.f32.gmra.mxu0 %v5712
    %v5783 = vpop.f32.mrf.mxu0
    %v5784 = vadd.f32 %v5709, %v5783
    %v5785 = vpop.f32.mrf.mxu0
    %5786 = vdwg.mxu0
    %vm5787 = vcmask 74752
    %5788 = vst.msk [vmem:[#allocation3] sm:$0x3] %vm5787, %v5784
    // Predicated region
    $region14: #{fwd.1} parent=1 // pred_check
      _
    $region15: #{fwd.1} parent=1 // pred_check_branch
      %5790 = sbr.rel (0) target = $region17
    $region16: #{fwd.1} parent=1 // pred_region
      %s5792 = ssub.s32 32, 32
      %5793 = vsyncadd [#allocation4], %s5792
      %s5795 = sshll.u32 [#allocation3], 4
      %s5796 = int_to_ptr.vmem [resolvable:$true] %s5795
      %5798 = dma.vmem_to_hbm [thread:$0]  %s5796, 32, %s3, [#allocation4]
    $region17: #{fwd.1} parent=1 // pred_fallthru
      _
    // Predicated region
    $region18: #{fwd.1} parent=1 // pred_check
      _
    $region19: #{fwd.1} parent=1 // pred_check_branch
      %5800 = sbr.rel (0) target = $region21
    $region20: #{fwd.1} parent=1 // pred_region
      %5801 = dma.done [#allocation4], 32
    $region21: #{fwd.1} parent=1 // pred_fallthru
      _
    %5802 = vsyncpa [#allocation4], 1

</llo_original>
